<compile_context>
chip_gen: v7x
topology: tpu7x:2x2x1
jax: 0.10.0
libtpu: 0.0.40
codegen_flags: <defaults>
</compile_context>

<pallas_src>
import functools

import numpy as np
import jax
import jax.numpy as jnp
from jax.experimental import pallas as pl
from jax.experimental.pallas import tpu as pltpu

BN_EPS = 1e-5
HID1 = 128                  # fc_layer out features
HID2 = 64                   # get_network(128, 64)
TB = 128                    # batch rows per grid step (>=128: amortize weight stream)
VMEM_LIMIT = 32 * 1024 * 1024


def _pick_i_tile(d):
    """Chunk of the bilinear i-axis handled per reduction grid step."""
    for cand in (32, 16, 8):
        if d > cand and d % cand == 0:
            return cand
    return d                # small / odd D: single chunk (block == full dim, always legal)


def _head(feat, w1_ref, b1_ref, w2_ref, b2_ref, out_ref):
    """out_layer: Linear(128,64) (+folded BatchNorm) -> ReLU -> Dropout(eval=id)
    -> Linear(64,1) as VPU mul + lane reduce -> Sigmoid -> lane-dense store."""
    h = jnp.dot(feat, w1_ref[...], preferred_element_type=jnp.float32) + b1_ref[...]
    h = jnp.maximum(h, 0.0)                                      # ReLU (Dropout = identity)
    logit = jnp.sum(h * w2_ref[...], axis=-1, keepdims=True) + b2_ref[...]   # (TB, 1)
    prob = jax.nn.sigmoid(logit)
    # Lane-dense (TB, 128) store (broadcast across lanes) instead of a (TB, 1) block:
    # avoids masked partial stores; wrapper keeps column 0.
    out_ref[...] = jnp.broadcast_to(prob, out_ref.shape).astype(out_ref.dtype)


def _make_bilinear_kernel(tk_i):
    def kernel(xc_ref, xp_ref, w3_ref, bfc_ref, w1_ref, b1_ref, w2_ref, b2_ref,
               out_ref, acc_ref):
        k = pl.program_id(1)

        @pl.when(k == 0)
        def _init():
            acc_ref[...] = jnp.zeros_like(acc_ref)

        x_cols = xc_ref[0]                       # (TB, tk_i) columns i of x for this k-chunk
        xp = xp_ref[...]                         # (TB, D)
        contrib = jnp.zeros_like(acc_ref)
        # feat += sum_i x[:, i] * (x_ @ W_i): outer product fused in-kernel, no (B, D*D)
        # intermediate ever touches HBM.  Weight tile is bf16; compute/accumulate in f32.
        for i in range(tk_i):                    # unrolled, tk_i <= 32
            w_i = w3_ref[i].astype(jnp.float32)                              # (D, 128)
            p = jnp.dot(xp, w_i, preferred_element_type=jnp.float32)         # (TB, 128)
            contrib = contrib + x_cols[:, i:i + 1] * p
        acc_ref[...] += contrib

        @pl.when(k == pl.num_programs(1) - 1)
        def _finalize():
            feat = acc_ref[...] + bfc_ref[...]
            _head(feat, w1_ref, b1_ref, w2_ref, b2_ref, out_ref)

    return kernel


def _linear_kernel(x_ref, xp_ref, wl1_ref, wl2_ref, bfc_ref,
                   w1_ref, b1_ref, w2_ref, b2_ref, out_ref):
    # cat([x, x_], -1) @ W.T == x @ W[:, :D].T + x_ @ W[:, D:].T   (no concat needed)
    feat = (jnp.dot(x_ref[...], wl1_ref[...].astype(jnp.float32),
                    preferred_element_type=jnp.float32)
            + jnp.dot(xp_ref[...], wl2_ref[...].astype(jnp.float32),
                      preferred_element_type=jnp.float32)
            + bfc_ref[...])
    _head(feat, w1_ref, b1_ref, w2_ref, b2_ref, out_ref)


def init_params(key, in_dim, bilinear):
    """Returns (kernel_params, reference_params)."""
    ks = jax.random.split(key, 10)
    kp, rp = {}, {}

    if bilinear:
        bound = 1.0 / np.sqrt(in_dim)
        w = jax.random.uniform(ks[0], (HID1, in_dim, in_dim), jnp.float32, -bound, bound)
        b = jax.random.uniform(ks[1], (HID1,), jnp.float32, -bound, bound)
        w_bf = w.astype(jnp.bfloat16)                      # bf16 storage halves the weight stream
        rp["wfc"] = w_bf.astype(jnp.float32)               # reference sees the same rounded weights
        kp["wfc3"] = jnp.transpose(w_bf, (1, 2, 0))        # (D, D, 128) bf16: wfc3[i,j,k] = W[k,i,j]
    else:
        bound = 1.0 / np.sqrt(2 * in_dim)
        w = jax.random.uniform(ks[0], (HID1, 2 * in_dim), jnp.float32, -bound, bound)
        b = jax.random.uniform(ks[1], (HID1,), jnp.float32, -bound, bound)
        w_bf = w.astype(jnp.bfloat16)
        rp["wfc"] = w_bf.astype(jnp.float32)
        kp["wl1"] = jnp.transpose(w_bf[:, :in_dim])        # (D, 128) bf16
        kp["wl2"] = jnp.transpose(w_bf[:, in_dim:])        # (D, 128) bf16
    kp["bfc"] = rp["bfc"] = b.reshape(1, HID1)

    bound1 = 1.0 / np.sqrt(HID1)
    w1 = jax.random.uniform(ks[2], (HID2, HID1), jnp.float32, -bound1, bound1)
    b1 = jax.random.uniform(ks[3], (HID2,), jnp.float32, -bound1, bound1)
    gamma = jax.random.uniform(ks[4], (HID2,), jnp.float32, 0.5, 1.5)
    beta = jax.random.uniform(ks[5], (HID2,), jnp.float32, -0.5, 0.5)
    mean = 0.1 * jax.random.normal(ks[6], (HID2,), jnp.float32)      # nontrivial running stats
    var = jax.random.uniform(ks[7], (HID2,), jnp.float32, 0.5, 1.5)
    rp.update(w1=w1, b1=b1, gamma=gamma, beta=beta, mean=mean, var=var)

    bound2 = 1.0 / np.sqrt(HID2)
    w2 = jax.random.uniform(ks[8], (1, HID2), jnp.float32, -bound2, bound2)
    b2 = jax.random.uniform(ks[9], (1,), jnp.float32, -bound2, bound2)
    rp["w2"], rp["b2"] = w2, b2

    # Fold eval-mode BatchNorm1d into Linear(128,64):  y = (h - mean)*gamma*rsqrt(var+eps) + beta
    scale = gamma * jax.lax.rsqrt(var + BN_EPS)                      # (64,)
    kp["w1"] = w1.T * scale[None, :]                                 # (128, 64) f32, BN folded
    kp["b1"] = ((b1 - mean) * scale + beta).reshape(1, HID2)
    kp["w2"] = w2                                                    # (1, 64) row for VPU reduce
    kp["b2"] = b2.reshape(1, 1)
    return kp, rp


@functools.partial(jax.jit, static_argnames=("bilinear",))
def binn_forward(params, x, x_, bilinear):
    B, D = x.shape
    Bp = ((B + TB - 1) // TB) * TB
    G = Bp // TB
    if Bp != B:
        x = jnp.pad(x, ((0, Bp - B), (0, 0)))
        x_ = jnp.pad(x_, ((0, Bp - B), (0, 0)))

    head = (params["w1"], params["b1"], params["w2"], params["b2"])
    out_shape = jax.ShapeDtypeStruct((Bp, HID1), jnp.float32)        # lane-dense output slab

    if bilinear:
        tk_i = _pick_i_tile(D)
        nk = D // tk_i
        # Tiny layout plumbing (Bp*D floats): x3[k, b, i] = x[b, k*tk_i + i], so each
        # reduction step gets its i-chunk of x already in (TB, tk_i) layout.
        x3 = jnp.transpose(x.reshape(Bp, nk, tk_i), (1, 0, 2))       # (nk, Bp, tk_i)
        fixed = lambda b, k: (0, 0)
        in_specs = [
            pl.BlockSpec((1, TB, tk_i), lambda b, k: (k, b, 0)),         # x i-chunk
            pl.BlockSpec((TB, D), lambda b, k: (b, 0)),                  # x_
            pl.BlockSpec((tk_i, D, HID1), lambda b, k: (k, 0, 0)),       # bf16 weight K-tile
            pl.BlockSpec((1, HID1), fixed),                              # bfc
            pl.BlockSpec((HID1, HID2), fixed),                           # w1 (BN folded)
            pl.BlockSpec((1, HID2), fixed),                              # b1 (BN folded)
            pl.BlockSpec((1, HID2), fixed),                              # w2 row
            pl.BlockSpec((1, 1), fixed),                                 # b2
        ]
        out = pl.pallas_call(
            _make_bilinear_kernel(tk_i),
            out_shape=out_shape,
            grid=(G, nk),                                                # reduction axis last
            in_specs=in_specs,
            out_specs=pl.BlockSpec((TB, HID1), lambda b, k: (b, 0)),
            scratch_shapes=[pltpu.VMEM((TB, HID1), jnp.float32)],        # feat accumulator
            compiler_params=pltpu.CompilerParams(
                dimension_semantics=("parallel", "arbitrary"),           # batch tiles -> v7x cores
                vmem_limit_bytes=VMEM_LIMIT),
        )(x3, x_, params["wfc3"], params["bfc"], *head)
    else:
        fixed = lambda b: (0, 0)
        in_specs = [
            pl.BlockSpec((TB, D), lambda b: (b, 0)),
            pl.BlockSpec((TB, D), lambda b: (b, 0)),
            pl.BlockSpec((D, HID1), fixed),                              # wl1 (bf16)
            pl.BlockSpec((D, HID1), fixed),                              # wl2 (bf16)
            pl.BlockSpec((1, HID1), fixed),
            pl.BlockSpec((HID1, HID2), fixed),
            pl.BlockSpec((1, HID2), fixed),
            pl.BlockSpec((1, HID2), fixed),
            pl.BlockSpec((1, 1), fixed),
        ]
        out = pl.pallas_call(
            _linear_kernel,
            out_shape=out_shape,
            grid=(G,),
            in_specs=in_specs,
            out_specs=pl.BlockSpec((TB, HID1), lambda b: (b, 0)),
            compiler_params=pltpu.CompilerParams(
                dimension_semantics=("parallel",),
                vmem_limit_bytes=VMEM_LIMIT),
        )(x, x_, params["wl1"], params["wl2"], params["bfc"], *head)

    return out[:B, :1]


def binn_reference(rp, x, x_, bilinear):
    """Pure-JAX reference mirroring the PyTorch forward (eval mode)."""
    if bilinear:
        feat = jnp.einsum("bi,kij,bj->bk", x, rp["wfc"], x_) + rp["bfc"]
    else:
        feat = jnp.concatenate([x, x_], axis=-1) @ rp["wfc"].T + rp["bfc"]
    h = feat @ rp["w1"].T + rp["b1"]
    h = (h - rp["mean"]) / jnp.sqrt(rp["var"] + BN_EPS) * rp["gamma"] + rp["beta"]
    h = jnp.maximum(h, 0.0)
    logit = h @ rp["w2"].T + rp["b2"]
    return jax.nn.sigmoid(logit)


if __name__ == "__main__":
    B, IN_DIM = 8, 32
    key = jax.random.PRNGKey(0)
    kx, kxp, kparams = jax.random.split(key, 3)
    x = jax.random.normal(kx, (B, IN_DIM), jnp.float32)
    x_ = jax.random.normal(kxp, (B, IN_DIM), jnp.float32)

    for bilinear in (True, False):
        kp, rp = init_params(kparams, IN_DIM, bilinear)
        out = jax.block_until_ready(binn_forward(kp, x, x_, bilinear=bilinear))
        ref = np.asarray(binn_reference(rp, x, x_, bilinear))
        assert out.shape == (B, 1) and out.dtype == jnp.float32
        np.testing.assert_allclose(np.asarray(out), ref, rtol=2e-5, atol=2e-5)

    print("KERNEL_OK")
</pallas_src>

<mosaic_0001>
module attributes {stable_mosaic.version = 11 : i64} {
  func.func @kernel(%arg0: i32, %arg1: i32, %arg2: memref<1x128x16xf32, #tpu.memory_space<vmem>>, %arg3: memref<128x32xf32, #tpu.memory_space<vmem>>, %arg4: memref<16x32x128xbf16, #tpu.memory_space<vmem>>, %arg5: memref<1x128xf32, #tpu.memory_space<vmem>>, %arg6: memref<128x64xf32, #tpu.memory_space<vmem>>, %arg7: memref<1x64xf32, #tpu.memory_space<vmem>>, %arg8: memref<1x64xf32, #tpu.memory_space<vmem>>, %arg9: memref<1x1xf32, #tpu.memory_space<vmem>>, %arg10: memref<128x128xf32, #tpu.memory_space<vmem>>, %arg11: memref<128x128xf32, #tpu.memory_space<vmem>>) attributes {dimension_semantics = [#tpu.dimension_semantics<parallel>, #tpu.dimension_semantics<arbitrary>], iteration_bounds = array<i64: 1, 2>, scalar_prefetch = 0 : i64, scratch_operands = 1 : i64, tpu.core_type = #tpu.core_type<tc>, window_params = [{transform_indices = @transform_0, window_bounds = array<i64: 1, 128, 16>}, {transform_indices = @transform_1, window_bounds = array<i64: 128, 32>}, {transform_indices = @transform_2, window_bounds = array<i64: 16, 32, 128>}, {pipeline_mode = #tpu.pipeline_mode<synchronous>, transform_indices = @transform_3, window_bounds = array<i64: 1, 128>}, {pipeline_mode = #tpu.pipeline_mode<synchronous>, transform_indices = @transform_4, window_bounds = array<i64: 128, 64>}, {pipeline_mode = #tpu.pipeline_mode<synchronous>, transform_indices = @transform_5, window_bounds = array<i64: 1, 64>}, {pipeline_mode = #tpu.pipeline_mode<synchronous>, transform_indices = @transform_6, window_bounds = array<i64: 1, 64>}, {pipeline_mode = #tpu.pipeline_mode<synchronous>, transform_indices = @transform_7, window_bounds = array<i64: 1, 1>}, {transform_indices = @transform_8, window_bounds = array<i64: 128, 128>}]} {
    %c0_i32 = arith.constant 0 : i32
    %0 = arith.cmpi eq, %arg1, %c0_i32 : i32
    %1 = arith.extui %0 : i1 to i32
    %c0_i32_0 = arith.constant 0 : i32
    %2 = arith.cmpi ne, %1, %c0_i32_0 : i32
    scf.if %2 {
      %cst_59 = arith.constant 0.000000e+00 : f32
      %141 = vector.broadcast %cst_59 : f32 to vector<128x128xf32>
      %c0_60 = arith.constant 0 : index
      %c0_61 = arith.constant 0 : index
      %142 = vector.load %arg11[%c0_60, %c0_61] : memref<128x128xf32, #tpu.memory_space<vmem>>, vector<128x128xf32>
      tpu.vector_store %arg11[%c0_60, %c0_61], %141 {strides = array<i32>} : memref<128x128xf32, #tpu.memory_space<vmem>>, vector<128x128xf32>,
    } else {
    }
    %c0 = arith.constant 0 : index
    %c0_1 = arith.constant 0 : index
    %c0_2 = arith.constant 0 : index
    %3 = vector.load %arg2[%c0, %c0_1, %c0_2] : memref<1x128x16xf32, #tpu.memory_space<vmem>>, vector<1x128x16xf32>
    %4 = vector.shape_cast %3 : vector<1x128x16xf32> to vector<128x16xf32>
    %c0_3 = arith.constant 0 : index
    %c0_4 = arith.constant 0 : index
    %5 = vector.load %arg3[%c0_3, %c0_4] : memref<128x32xf32, #tpu.memory_space<vmem>>, vector<128x32xf32>
    %cst = arith.constant 0.000000e+00 : f32
    %6 = vector.broadcast %cst : f32 to vector<128x128xf32>
    %c0_5 = arith.constant 0 : index
    %c0_6 = arith.constant 0 : index
    %c0_7 = arith.constant 0 : index
    %7 = vector.load %arg4[%c0_5, %c0_6, %c0_7] : memref<16x32x128xbf16, #tpu.memory_space<vmem>>, vector<1x32x128xbf16>
    %8 = vector.shape_cast %7 : vector<1x32x128xbf16> to vector<32x128xbf16>
    %9 = arith.extf %8 : vector<32x128xbf16> to vector<32x128xf32>
    %cst_8 = arith.constant dense<0.000000e+00> : vector<128x128xf32>
    %10 = tpu.matmul %5, %9, %cst_8 {dimension_numbers = #tpu.dot_dimension_numbers<[1], [0], [0], [1], [0, 0, 1, 1], [], []>} : vector<128x32xf32>, vector<32x128xf32>, vector<128x128xf32> -> vector<128x128xf32>
    %11 = vector.extract_strided_slice %4 {offsets = [0, 0], sizes = [128, 1], strides = [1, 1]} : vector<128x16xf32> to vector<128x1xf32>
    %12 = vector.broadcast %11 : vector<128x1xf32> to vector<128x128xf32>
    %13 = arith.mulf %12, %10 : vector<128x128xf32>
    %14 = arith.addf %6, %13 : vector<128x128xf32>
    %c1 = arith.constant 1 : index
    %c0_9 = arith.constant 0 : index
    %c0_10 = arith.constant 0 : index
    %15 = vector.load %arg4[%c1, %c0_9, %c0_10] : memref<16x32x128xbf16, #tpu.memory_space<vmem>>, vector<1x32x128xbf16>
    %16 = vector.shape_cast %15 : vector<1x32x128xbf16> to vector<32x128xbf16>
    %17 = arith.extf %16 : vector<32x128xbf16> to vector<32x128xf32>
    %cst_11 = arith.constant dense<0.000000e+00> : vector<128x128xf32>
    %18 = tpu.matmul %5, %17, %cst_11 {dimension_numbers = #tpu.dot_dimension_numbers<[1], [0], [0], [1], [0, 0, 1, 1], [], []>} : vector<128x32xf32>, vector<32x128xf32>, vector<128x128xf32> -> vector<128x128xf32>
    %19 = vector.extract_strided_slice %4 {offsets = [0, 1], sizes = [128, 1], strides = [1, 1]} : vector<128x16xf32> to vector<128x1xf32>
    %20 = vector.broadcast %19 : vector<128x1xf32> to vector<128x128xf32>
    %21 = arith.mulf %20, %18 : vector<128x128xf32>
    %22 = arith.addf %14, %21 : vector<128x128xf32>
    %c2 = arith.constant 2 : index
    %c0_12 = arith.constant 0 : index
    %c0_13 = arith.constant 0 : index
    %23 = vector.load %arg4[%c2, %c0_12, %c0_13] : memref<16x32x128xbf16, #tpu.memory_space<vmem>>, vector<1x32x128xbf16>
    %24 = vector.shape_cast %23 : vector<1x32x128xbf16> to vector<32x128xbf16>
    %25 = arith.extf %24 : vector<32x128xbf16> to vector<32x128xf32>
    %cst_14 = arith.constant dense<0.000000e+00> : vector<128x128xf32>
    %26 = tpu.matmul %5, %25, %cst_14 {dimension_numbers = #tpu.dot_dimension_numbers<[1], [0], [0], [1], [0, 0, 1, 1], [], []>} : vector<128x32xf32>, vector<32x128xf32>, vector<128x128xf32> -> vector<128x128xf32>
    %27 = vector.extract_strided_slice %4 {offsets = [0, 2], sizes = [128, 1], strides = [1, 1]} : vector<128x16xf32> to vector<128x1xf32>
    %28 = vector.broadcast %27 : vector<128x1xf32> to vector<128x128xf32>
    %29 = arith.mulf %28, %26 : vector<128x128xf32>
    %30 = arith.addf %22, %29 : vector<128x128xf32>
    %c3 = arith.constant 3 : index
    %c0_15 = arith.constant 0 : index
    %c0_16 = arith.constant 0 : index
    %31 = vector.load %arg4[%c3, %c0_15, %c0_16] : memref<16x32x128xbf16, #tpu.memory_space<vmem>>, vector<1x32x128xbf16>
    %32 = vector.shape_cast %31 : vector<1x32x128xbf16> to vector<32x128xbf16>
    %33 = arith.extf %32 : vector<32x128xbf16> to vector<32x128xf32>
    %cst_17 = arith.constant dense<0.000000e+00> : vector<128x128xf32>
    %34 = tpu.matmul %5, %33, %cst_17 {dimension_numbers = #tpu.dot_dimension_numbers<[1], [0], [0], [1], [0, 0, 1, 1], [], []>} : vector<128x32xf32>, vector<32x128xf32>, vector<128x128xf32> -> vector<128x128xf32>
    %35 = vector.extract_strided_slice %4 {offsets = [0, 3], sizes = [128, 1], strides = [1, 1]} : vector<128x16xf32> to vector<128x1xf32>
    %36 = vector.broadcast %35 : vector<128x1xf32> to vector<128x128xf32>
    %37 = arith.mulf %36, %34 : vector<128x128xf32>
    %38 = arith.addf %30, %37 : vector<128x128xf32>
    %c4 = arith.constant 4 : index
    %c0_18 = arith.constant 0 : index
    %c0_19 = arith.constant 0 : index
    %39 = vector.load %arg4[%c4, %c0_18, %c0_19] : memref<16x32x128xbf16, #tpu.memory_space<vmem>>, vector<1x32x128xbf16>
    %40 = vector.shape_cast %39 : vector<1x32x128xbf16> to vector<32x128xbf16>
    %41 = arith.extf %40 : vector<32x128xbf16> to vector<32x128xf32>
    %cst_20 = arith.constant dense<0.000000e+00> : vector<128x128xf32>
    %42 = tpu.matmul %5, %41, %cst_20 {dimension_numbers = #tpu.dot_dimension_numbers<[1], [0], [0], [1], [0, 0, 1, 1], [], []>} : vector<128x32xf32>, vector<32x128xf32>, vector<128x128xf32> -> vector<128x128xf32>
    %43 = vector.extract_strided_slice %4 {offsets = [0, 4], sizes = [128, 1], strides = [1, 1]} : vector<128x16xf32> to vector<128x1xf32>
    %44 = vector.broadcast %43 : vector<128x1xf32> to vector<128x128xf32>
    %45 = arith.mulf %44, %42 : vector<128x128xf32>
    %46 = arith.addf %38, %45 : vector<128x128xf32>
    %c5 = arith.constant 5 : index
    %c0_21 = arith.constant 0 : index
    %c0_22 = arith.constant 0 : index
    %47 = vector.load %arg4[%c5, %c0_21, %c0_22] : memref<16x32x128xbf16, #tpu.memory_space<vmem>>, vector<1x32x128xbf16>
    %48 = vector.shape_cast %47 : vector<1x32x128xbf16> to vector<32x128xbf16>
    %49 = arith.extf %48 : vector<32x128xbf16> to vector<32x128xf32>
    %cst_23 = arith.constant dense<0.000000e+00> : vector<128x128xf32>
    %50 = tpu.matmul %5, %49, %cst_23 {dimension_numbers = #tpu.dot_dimension_numbers<[1], [0], [0], [1], [0, 0, 1, 1], [], []>} : vector<128x32xf32>, vector<32x128xf32>, vector<128x128xf32> -> vector<128x128xf32>
    %51 = vector.extract_strided_slice %4 {offsets = [0, 5], sizes = [128, 1], strides = [1, 1]} : vector<128x16xf32> to vector<128x1xf32>
    %52 = vector.broadcast %51 : vector<128x1xf32> to vector<128x128xf32>
    %53 = arith.mulf %52, %50 : vector<128x128xf32>
    %54 = arith.addf %46, %53 : vector<128x128xf32>
    %c6 = arith.constant 6 : index
    %c0_24 = arith.constant 0 : index
    %c0_25 = arith.constant 0 : index
    %55 = vector.load %arg4[%c6, %c0_24, %c0_25] : memref<16x32x128xbf16, #tpu.memory_space<vmem>>, vector<1x32x128xbf16>
    %56 = vector.shape_cast %55 : vector<1x32x128xbf16> to vector<32x128xbf16>
    %57 = arith.extf %56 : vector<32x128xbf16> to vector<32x128xf32>
    %cst_26 = arith.constant dense<0.000000e+00> : vector<128x128xf32>
    %58 = tpu.matmul %5, %57, %cst_26 {dimension_numbers = #tpu.dot_dimension_numbers<[1], [0], [0], [1], [0, 0, 1, 1], [], []>} : vector<128x32xf32>, vector<32x128xf32>, vector<128x128xf32> -> vector<128x128xf32>
    %59 = vector.extract_strided_slice %4 {offsets = [0, 6], sizes = [128, 1], strides = [1, 1]} : vector<128x16xf32> to vector<128x1xf32>
    %60 = vector.broadcast %59 : vector<128x1xf32> to vector<128x128xf32>
    %61 = arith.mulf %60, %58 : vector<128x128xf32>
    %62 = arith.addf %54, %61 : vector<128x128xf32>
    %c7 = arith.constant 7 : index
    %c0_27 = arith.constant 0 : index
    %c0_28 = arith.constant 0 : index
    %63 = vector.load %arg4[%c7, %c0_27, %c0_28] : memref<16x32x128xbf16, #tpu.memory_space<vmem>>, vector<1x32x128xbf16>
    %64 = vector.shape_cast %63 : vector<1x32x128xbf16> to vector<32x128xbf16>
    %65 = arith.extf %64 : vector<32x128xbf16> to vector<32x128xf32>
    %cst_29 = arith.constant dense<0.000000e+00> : vector<128x128xf32>
    %66 = tpu.matmul %5, %65, %cst_29 {dimension_numbers = #tpu.dot_dimension_numbers<[1], [0], [0], [1], [0, 0, 1, 1], [], []>} : vector<128x32xf32>, vector<32x128xf32>, vector<128x128xf32> -> vector<128x128xf32>
    %67 = vector.extract_strided_slice %4 {offsets = [0, 7], sizes = [128, 1], strides = [1, 1]} : vector<128x16xf32> to vector<128x1xf32>
    %68 = vector.broadcast %67 : vector<128x1xf32> to vector<128x128xf32>
    %69 = arith.mulf %68, %66 : vector<128x128xf32>
    %70 = arith.addf %62, %69 : vector<128x128xf32>
    %c8 = arith.constant 8 : index
    %c0_30 = arith.constant 0 : index
    %c0_31 = arith.constant 0 : index
    %71 = vector.load %arg4[%c8, %c0_30, %c0_31] : memref<16x32x128xbf16, #tpu.memory_space<vmem>>, vector<1x32x128xbf16>
    %72 = vector.shape_cast %71 : vector<1x32x128xbf16> to vector<32x128xbf16>
    %73 = arith.extf %72 : vector<32x128xbf16> to vector<32x128xf32>
    %cst_32 = arith.constant dense<0.000000e+00> : vector<128x128xf32>
    %74 = tpu.matmul %5, %73, %cst_32 {dimension_numbers = #tpu.dot_dimension_numbers<[1], [0], [0], [1], [0, 0, 1, 1], [], []>} : vector<128x32xf32>, vector<32x128xf32>, vector<128x128xf32> -> vector<128x128xf32>
    %75 = vector.extract_strided_slice %4 {offsets = [0, 8], sizes = [128, 1], strides = [1, 1]} : vector<128x16xf32> to vector<128x1xf32>
    %76 = vector.broadcast %75 : vector<128x1xf32> to vector<128x128xf32>
    %77 = arith.mulf %76, %74 : vector<128x128xf32>
    %78 = arith.addf %70, %77 : vector<128x128xf32>
    %c9 = arith.constant 9 : index
    %c0_33 = arith.constant 0 : index
    %c0_34 = arith.constant 0 : index
    %79 = vector.load %arg4[%c9, %c0_33, %c0_34] : memref<16x32x128xbf16, #tpu.memory_space<vmem>>, vector<1x32x128xbf16>
    %80 = vector.shape_cast %79 : vector<1x32x128xbf16> to vector<32x128xbf16>
    %81 = arith.extf %80 : vector<32x128xbf16> to vector<32x128xf32>
    %cst_35 = arith.constant dense<0.000000e+00> : vector<128x128xf32>
    %82 = tpu.matmul %5, %81, %cst_35 {dimension_numbers = #tpu.dot_dimension_numbers<[1], [0], [0], [1], [0, 0, 1, 1], [], []>} : vector<128x32xf32>, vector<32x128xf32>, vector<128x128xf32> -> vector<128x128xf32>
    %83 = vector.extract_strided_slice %4 {offsets = [0, 9], sizes = [128, 1], strides = [1, 1]} : vector<128x16xf32> to vector<128x1xf32>
    %84 = vector.broadcast %83 : vector<128x1xf32> to vector<128x128xf32>
    %85 = arith.mulf %84, %82 : vector<128x128xf32>
    %86 = arith.addf %78, %85 : vector<128x128xf32>
    %c10 = arith.constant 10 : index
    %c0_36 = arith.constant 0 : index
    %c0_37 = arith.constant 0 : index
    %87 = vector.load %arg4[%c10, %c0_36, %c0_37] : memref<16x32x128xbf16, #tpu.memory_space<vmem>>, vector<1x32x128xbf16>
    %88 = vector.shape_cast %87 : vector<1x32x128xbf16> to vector<32x128xbf16>
    %89 = arith.extf %88 : vector<32x128xbf16> to vector<32x128xf32>
    %cst_38 = arith.constant dense<0.000000e+00> : vector<128x128xf32>
    %90 = tpu.matmul %5, %89, %cst_38 {dimension_numbers = #tpu.dot_dimension_numbers<[1], [0], [0], [1], [0, 0, 1, 1], [], []>} : vector<128x32xf32>, vector<32x128xf32>, vector<128x128xf32> -> vector<128x128xf32>
    %91 = vector.extract_strided_slice %4 {offsets = [0, 10], sizes = [128, 1], strides = [1, 1]} : vector<128x16xf32> to vector<128x1xf32>
    %92 = vector.broadcast %91 : vector<128x1xf32> to vector<128x128xf32>
    %93 = arith.mulf %92, %90 : vector<128x128xf32>
    %94 = arith.addf %86, %93 : vector<128x128xf32>
    %c11 = arith.constant 11 : index
    %c0_39 = arith.constant 0 : index
    %c0_40 = arith.constant 0 : index
    %95 = vector.load %arg4[%c11, %c0_39, %c0_40] : memref<16x32x128xbf16, #tpu.memory_space<vmem>>, vector<1x32x128xbf16>
    %96 = vector.shape_cast %95 : vector<1x32x128xbf16> to vector<32x128xbf16>
    %97 = arith.extf %96 : vector<32x128xbf16> to vector<32x128xf32>
    %cst_41 = arith.constant dense<0.000000e+00> : vector<128x128xf32>
    %98 = tpu.matmul %5, %97, %cst_41 {dimension_numbers = #tpu.dot_dimension_numbers<[1], [0], [0], [1], [0, 0, 1, 1], [], []>} : vector<128x32xf32>, vector<32x128xf32>, vector<128x128xf32> -> vector<128x128xf32>
    %99 = vector.extract_strided_slice %4 {offsets = [0, 11], sizes = [128, 1], strides = [1, 1]} : vector<128x16xf32> to vector<128x1xf32>
    %100 = vector.broadcast %99 : vector<128x1xf32> to vector<128x128xf32>
    %101 = arith.mulf %100, %98 : vector<128x128xf32>
    %102 = arith.addf %94, %101 : vector<128x128xf32>
    %c12 = arith.constant 12 : index
    %c0_42 = arith.constant 0 : index
    %c0_43 = arith.constant 0 : index
    %103 = vector.load %arg4[%c12, %c0_42, %c0_43] : memref<16x32x128xbf16, #tpu.memory_space<vmem>>, vector<1x32x128xbf16>
    %104 = vector.shape_cast %103 : vector<1x32x128xbf16> to vector<32x128xbf16>
    %105 = arith.extf %104 : vector<32x128xbf16> to vector<32x128xf32>
    %cst_44 = arith.constant dense<0.000000e+00> : vector<128x128xf32>
    %106 = tpu.matmul %5, %105, %cst_44 {dimension_numbers = #tpu.dot_dimension_numbers<[1], [0], [0], [1], [0, 0, 1, 1], [], []>} : vector<128x32xf32>, vector<32x128xf32>, vector<128x128xf32> -> vector<128x128xf32>
    %107 = vector.extract_strided_slice %4 {offsets = [0, 12], sizes = [128, 1], strides = [1, 1]} : vector<128x16xf32> to vector<128x1xf32>
    %108 = vector.broadcast %107 : vector<128x1xf32> to vector<128x128xf32>
    %109 = arith.mulf %108, %106 : vector<128x128xf32>
    %110 = arith.addf %102, %109 : vector<128x128xf32>
    %c13 = arith.constant 13 : index
    %c0_45 = arith.constant 0 : index
    %c0_46 = arith.constant 0 : index
    %111 = vector.load %arg4[%c13, %c0_45, %c0_46] : memref<16x32x128xbf16, #tpu.memory_space<vmem>>, vector<1x32x128xbf16>
    %112 = vector.shape_cast %111 : vector<1x32x128xbf16> to vector<32x128xbf16>
    %113 = arith.extf %112 : vector<32x128xbf16> to vector<32x128xf32>
    %cst_47 = arith.constant dense<0.000000e+00> : vector<128x128xf32>
    %114 = tpu.matmul %5, %113, %cst_47 {dimension_numbers = #tpu.dot_dimension_numbers<[1], [0], [0], [1], [0, 0, 1, 1], [], []>} : vector<128x32xf32>, vector<32x128xf32>, vector<128x128xf32> -> vector<128x128xf32>
    %115 = vector.extract_strided_slice %4 {offsets = [0, 13], sizes = [128, 1], strides = [1, 1]} : vector<128x16xf32> to vector<128x1xf32>
    %116 = vector.broadcast %115 : vector<128x1xf32> to vector<128x128xf32>
    %117 = arith.mulf %116, %114 : vector<128x128xf32>
    %118 = arith.addf %110, %117 : vector<128x128xf32>
    %c14 = arith.constant 14 : index
    %c0_48 = arith.constant 0 : index
    %c0_49 = arith.constant 0 : index
    %119 = vector.load %arg4[%c14, %c0_48, %c0_49] : memref<16x32x128xbf16, #tpu.memory_space<vmem>>, vector<1x32x128xbf16>
    %120 = vector.shape_cast %119 : vector<1x32x128xbf16> to vector<32x128xbf16>
    %121 = arith.extf %120 : vector<32x128xbf16> to vector<32x128xf32>
    %cst_50 = arith.constant dense<0.000000e+00> : vector<128x128xf32>
    %122 = tpu.matmul %5, %121, %cst_50 {dimension_numbers = #tpu.dot_dimension_numbers<[1], [0], [0], [1], [0, 0, 1, 1], [], []>} : vector<128x32xf32>, vector<32x128xf32>, vector<128x128xf32> -> vector<128x128xf32>
    %123 = vector.extract_strided_slice %4 {offsets = [0, 14], sizes = [128, 1], strides = [1, 1]} : vector<128x16xf32> to vector<128x1xf32>
    %124 = vector.broadcast %123 : vector<128x1xf32> to vector<128x128xf32>
    %125 = arith.mulf %124, %122 : vector<128x128xf32>
    %126 = arith.addf %118, %125 : vector<128x128xf32>
    %c15 = arith.constant 15 : index
    %c0_51 = arith.constant 0 : index
    %c0_52 = arith.constant 0 : index
    %127 = vector.load %arg4[%c15, %c0_51, %c0_52] : memref<16x32x128xbf16, #tpu.memory_space<vmem>>, vector<1x32x128xbf16>
    %128 = vector.shape_cast %127 : vector<1x32x128xbf16> to vector<32x128xbf16>
    %129 = arith.extf %128 : vector<32x128xbf16> to vector<32x128xf32>
    %cst_53 = arith.constant dense<0.000000e+00> : vector<128x128xf32>
    %130 = tpu.matmul %5, %129, %cst_53 {dimension_numbers = #tpu.dot_dimension_numbers<[1], [0], [0], [1], [0, 0, 1, 1], [], []>} : vector<128x32xf32>, vector<32x128xf32>, vector<128x128xf32> -> vector<128x128xf32>
    %131 = vector.extract_strided_slice %4 {offsets = [0, 15], sizes = [128, 1], strides = [1, 1]} : vector<128x16xf32> to vector<128x1xf32>
    %132 = vector.broadcast %131 : vector<128x1xf32> to vector<128x128xf32>
    %133 = arith.mulf %132, %130 : vector<128x128xf32>
    %134 = arith.addf %126, %133 : vector<128x128xf32>
    %c0_54 = arith.constant 0 : index
    %c0_55 = arith.constant 0 : index
    %135 = vector.load %arg11[%c0_54, %c0_55] : memref<128x128xf32, #tpu.memory_space<vmem>>, vector<128x128xf32>
    %136 = arith.addf %135, %134 : vector<128x128xf32>
    %c0_56 = arith.constant 0 : index
    %c0_57 = arith.constant 0 : index
    %137 = vector.load %arg11[%c0_56, %c0_57] : memref<128x128xf32, #tpu.memory_space<vmem>>, vector<128x128xf32>
    tpu.vector_store %arg11[%c0_56, %c0_57], %136 {strides = array<i32>} : memref<128x128xf32, #tpu.memory_space<vmem>>, vector<128x128xf32>,
    %c1_i32 = arith.constant 1 : i32
    %138 = arith.cmpi eq, %arg1, %c1_i32 : i32
    %139 = arith.extui %138 : i1 to i32
    %c0_i32_58 = arith.constant 0 : i32
    %140 = arith.cmpi ne, %139, %c0_i32_58 : i32
    scf.if %140 {
      %c0_59 = arith.constant 0 : index
      %c0_60 = arith.constant 0 : index
      %141 = vector.load %arg11[%c0_59, %c0_60] : memref<128x128xf32, #tpu.memory_space<vmem>>, vector<128x128xf32>
      %c0_61 = arith.constant 0 : index
      %c0_62 = arith.constant 0 : index
      %142 = vector.load %arg5[%c0_61, %c0_62] : memref<1x128xf32, #tpu.memory_space<vmem>>, vector<1x128xf32>
      %143 = vector.broadcast %142 : vector<1x128xf32> to vector<128x128xf32>
      %144 = arith.addf %141, %143 : vector<128x128xf32>
      %c0_63 = arith.constant 0 : index
      %c0_64 = arith.constant 0 : index
      %145 = vector.load %arg6[%c0_63, %c0_64] : memref<128x64xf32, #tpu.memory_space<vmem>>, vector<128x64xf32>
      %cst_65 = arith.constant dense<0.000000e+00> : vector<128x64xf32>
      %146 = tpu.matmul %144, %145, %cst_65 {dimension_numbers = #tpu.dot_dimension_numbers<[1], [0], [0], [1], [0, 0, 1, 1], [], []>} : vector<128x128xf32>, vector<128x64xf32>, vector<128x64xf32> -> vector<128x64xf32>
      %c0_66 = arith.constant 0 : index
      %c0_67 = arith.constant 0 : index
      %147 = vector.load %arg7[%c0_66, %c0_67] : memref<1x64xf32, #tpu.memory_space<vmem>>, vector<1x64xf32>
      %148 = vector.broadcast %147 : vector<1x64xf32> to vector<128x64xf32>
      %149 = arith.addf %146, %148 : vector<128x64xf32>
      %cst_68 = arith.constant 0.000000e+00 : f32
      %150 = vector.broadcast %cst_68 : f32 to vector<128x64xf32>
      %151 = arith.maximumf %149, %150 : vector<128x64xf32>
      %c0_69 = arith.constant 0 : index
      %c0_70 = arith.constant 0 : index
      %152 = vector.load %arg8[%c0_69, %c0_70] : memref<1x64xf32, #tpu.memory_space<vmem>>, vector<1x64xf32>
      %153 = vector.broadcast %152 : vector<1x64xf32> to vector<128x64xf32>
      %154 = arith.mulf %151, %153 : vector<128x64xf32>
      %cst_71 = arith.constant dense<0.000000e+00> : vector<128xf32>
      %155 = vector.multi_reduction <add>, %154, %cst_71 [1] : vector<128x64xf32> to vector<128xf32>
      %156 = vector.shape_cast %155 : vector<128xf32> to vector<128x1xf32>
      %c0_72 = arith.constant 0 : index
      %c0_73 = arith.constant 0 : index
      %157 = vector.load %arg9[%c0_72, %c0_73] : memref<1x1xf32, #tpu.memory_space<vmem>>, vector<1x1xf32>
      %158 = vector.broadcast %157 : vector<1x1xf32> to vector<128x1xf32>
      %159 = arith.addf %156, %158 : vector<128x1xf32>
      %160 = arith.negf %159 : vector<128x1xf32>
      %161 = math.exp %160 : vector<128x1xf32>
      %cst_74 = arith.constant 1.000000e+00 : f32
      %162 = vector.broadcast %cst_74 : f32 to vector<128x1xf32>
      %163 = arith.addf %162, %161 : vector<128x1xf32>
      %164 = arith.divf %162, %163 : vector<128x1xf32>
      %165 = vector.shape_cast %164 : vector<128x1xf32> to vector<128x1xf32>
      %166 = vector.broadcast %165 : vector<128x1xf32> to vector<128x128xf32>
      %c0_75 = arith.constant 0 : index
      %c0_76 = arith.constant 0 : index
      %167 = vector.load %arg10[%c0_75, %c0_76] : memref<128x128xf32, #tpu.memory_space<vmem>>, vector<128x128xf32>
      tpu.vector_store %arg10[%c0_75, %c0_76], %166 {strides = array<i32>} : memref<128x128xf32, #tpu.memory_space<vmem>>, vector<128x128xf32>,
    } else {
    }
    return
  }
  func.func @transform_0(%arg0: i32, %arg1: i32) -> (i32, i32, i32) {
    %c0_i32 = arith.constant 0 : i32
    %c0_i32_0 = arith.constant 0 : i32
    return %arg1, %arg0, %c0_i32 : i32, i32, i32
  }
  func.func @transform_1(%arg0: i32, %arg1: i32) -> (i32, i32) {
    %c0_i32 = arith.constant 0 : i32
    %c0_i32_0 = arith.constant 0 : i32
    return %arg0, %c0_i32 : i32, i32
  }
  func.func @transform_2(%arg0: i32, %arg1: i32) -> (i32, i32, i32) {
    %c0_i32 = arith.constant 0 : i32
    %c0_i32_0 = arith.constant 0 : i32
    %c0_i32_1 = arith.constant 0 : i32
    return %arg1, %c0_i32, %c0_i32_0 : i32, i32, i32
  }
  func.func @transform_3(%arg0: i32, %arg1: i32) -> (i32, i32) {
    %c0_i32 = arith.constant 0 : i32
    %c0_i32_0 = arith.constant 0 : i32
    %c0_i32_1 = arith.constant 0 : i32
    return %c0_i32, %c0_i32_0 : i32, i32
  }
  func.func @transform_4(%arg0: i32, %arg1: i32) -> (i32, i32) {
    %c0_i32 = arith.constant 0 : i32
    %c0_i32_0 = arith.constant 0 : i32
    %c0_i32_1 = arith.constant 0 : i32
    return %c0_i32, %c0_i32_0 : i32, i32
  }
  func.func @transform_5(%arg0: i32, %arg1: i32) -> (i32, i32) {
    %c0_i32 = arith.constant 0 : i32
    %c0_i32_0 = arith.constant 0 : i32
    %c0_i32_1 = arith.constant 0 : i32
    return %c0_i32, %c0_i32_0 : i32, i32
  }
  func.func @transform_6(%arg0: i32, %arg1: i32) -> (i32, i32) {
    %c0_i32 = arith.constant 0 : i32
    %c0_i32_0 = arith.constant 0 : i32
    %c0_i32_1 = arith.constant 0 : i32
    return %c0_i32, %c0_i32_0 : i32, i32
  }
  func.func @transform_7(%arg0: i32, %arg1: i32) -> (i32, i32) {
    %c0_i32 = arith.constant 0 : i32
    %c0_i32_0 = arith.constant 0 : i32
    %c0_i32_1 = arith.constant 0 : i32
    return %c0_i32, %c0_i32_0 : i32, i32
  }
  func.func @transform_8(%arg0: i32, %arg1: i32) -> (i32, i32) {
    %c0_i32 = arith.constant 0 : i32
    %c0_i32_0 = arith.constant 0 : i32
    return %arg0, %c0_i32 : i32, i32
  }
}

</mosaic_0001>

<llo_original>
// kernel: binn_forward.1
$region0: #{binn_forward.1}
  #allocation0 [shape = 'u32[]', space=smem, size = 0x4, offset = 0x4, fixed_abs, tag = 'smem constant byte address 0x4 - core index']
  #allocation1 [shape = 'u32[144,128]{1,0:T(1,128)}', space=vmem, size = 0x12000, scoped, tag = 'internal scratch']
  #allocation2 [shape = 'f32[128,128]{1,0:T(8,128)}', space=vmem, size = 0x10000, scoped, tag = 'scratch operand']
  #allocation3 [shape = 'f32[1,1]{1,0:T(1,128)S(1)}', space=vmem, size = 0x200, scoped, tag = 'scoped memory for binn_forward.1']
  %s0 = inlined_call_operand.vmem [shape: f32[2,128,16], index: 0, kind: input, shape index: {}]
  %s1 = inlined_call_operand.vmem [shape: f32[128,32], index: 1, kind: input, shape index: {}]
  %s2 = inlined_call_operand.vmem [shape: bf16[32,32,128], index: 2, kind: input, shape index: {}]
  %s3 = inlined_call_operand.vmem [shape: f32[1,128], index: 3, kind: input, shape index: {}]
  %s4 = inlined_call_operand.vmem [shape: f32[128,64], index: 4, kind: input, shape index: {}]
  %s5 = inlined_call_operand.vmem [shape: f32[1,64], index: 5, kind: input, shape index: {}]
  %s6 = inlined_call_operand.vmem [shape: f32[1,64], index: 6, kind: input, shape index: {}]
  %s7 = inlined_call_operand.<no memory space> [shape: f32[1,1], index: 7, kind: input, shape index: {}]
  %s8 = inlined_call_operand.vmem [shape: f32[128,128], index: 8, kind: output, shape index: {}]
  %s9 = sld [smem:[#allocation0]]
  $region73: #{binn_forward.1} parent=0
    _
  %s11 = ssub.s32 1, %s9
  %s12 = scalar_select 0, %s11, %s9
  %v13 = vstv %s7
  %14 = vst [vmem:[#allocation3] sm:$0x1] %v13
  loop: start=0, step=1, limit=4
  $region2: #{binn_forward.1} parent=0 // loop_pre_header
    _
  $region3: #{binn_forward.1} parent=0 // loop_header
    %s16 = sphi 0, %s20
    %p17 = scmp.ge.s32.totalorder %s16, 4
    %s23 = sphi 0, %s35
    %s24 = sphi 0, %s31
    %s25 = sphi 0, %s23
    %s26 = sphi 0, %s24
    %s27 = sphi 0, %s25
    %s28 = sphi 0, %s26
    %s40 = sphi 0, %s42
    %s43 = sphi 0, %s40
    %s44 = sphi 0, %s43
    %s60 = sphi 0, %s44
    %s66 = sphi 0, %s68
    %s69 = sphi 0, %s66
    %s70 = sphi 0, %s69
    %s86 = sphi 0, %s70
    %s92 = sphi 0, %s94
    %s95 = sphi 0, %s92
    %s96 = sphi 0, %s95
    %s112 = sphi 0, %s96
    %s116 = sphi 0, %s116
    %s118 = sphi 0, %s116
    %s119 = sphi 0, %s118
    %s133 = sphi 0, %s119
    %s137 = sphi 0, %s137
    %s139 = sphi 0, %s137
    %s140 = sphi 0, %s139
    %s154 = sphi 0, %s140
    %s158 = sphi 0, %s158
    %s160 = sphi 0, %s158
    %s161 = sphi 0, %s160
    %s175 = sphi 0, %s161
    %s179 = sphi 0, %s179
    %s181 = sphi 0, %s179
    %s182 = sphi 0, %s181
    %s196 = sphi 0, %s182
    %s200 = sphi 0, %s200
    %s202 = sphi 0, %s200
    %s203 = sphi 0, %s202
    %s217 = sphi 0, %s203
    %s223 = sphi 0, %s225
    %s226 = sphi 0, %s223
    %s227 = sphi 0, %s226
    %s243 = sphi 0, %s227
  $region4: #{binn_forward.1} parent=0 // loop_header_branch
    %19 = sbr.rel (%p17) target = $region8
  $region5: #{binn_forward.1} parent=0 // loop_body
    %s21 = ssub.s32 %s16, 1
    %s22 = ssub.s32 %s16, 2
    %s29 = sadd.s32 1, %s24
    %p30 = scmp.ge.s32.totalorder %s29, 2
    %s31 = scalar_select %p30, 0, %s29
    %s32 = sadd.s32 1, %s23
    %s33 = scalar_select %p30, %s32, %s23
    %p34 = scmp.ge.s32.totalorder %s33, 1
    %s35 = scalar_select %p34, 0, %s33
    %s36 = ssub.s32 %s24, %s31
    %s37 = ssub.s32 %s23, %s35
    %s38 = sor.u32 %s36, %s37
    %p39 = scmp.eq.s32.totalorder %s38, 0
    %s41 = sadd.s32 %s40, 1
    %s42 = scalar_select %p39, %s40, %s41
    %p45 = pneg %p39
    %p46 = scmp.eq.s32.totalorder %s16, 1
    %p47 = por %p45, %p46
    %p48 = scmp.ne.s32.totalorder %s40, %s43
    %p49 = scmp.eq.s32.totalorder %s16, 0
    %p50 = por %p48, %p49
    %p51 = scmp.ne.s32.totalorder %s40, %s43
    %p52 = scmp.eq.s32.totalorder %s21, 1
    %p53 = por %p51, %p52
    %p54 = scmp.ne.s32.totalorder %s43, %s44
    %p55 = scmp.eq.s32.totalorder %s21, 0
    %p56 = por %p54, %p55
    %p57 = scmp.ne.s32.totalorder %s43, %s44
    %p58 = scmp.eq.s32.totalorder %s22, 1
    %p59 = por %p57, %p58
    %p61 = scmp.ne.s32.totalorder %s44, %s60
    %p62 = scmp.eq.s32.totalorder %s22, 0
    %p63 = por %p61, %p62
    %s64 = ssub.s32 %s23, %s35
    %p65 = scmp.eq.s32.totalorder %s64, 0
    %s67 = sadd.s32 %s66, 1
    %s68 = scalar_select %p65, %s66, %s67
    %p71 = pneg %p65
    %p72 = scmp.eq.s32.totalorder %s16, 1
    %p73 = por %p71, %p72
    %p74 = scmp.ne.s32.totalorder %s66, %s69
    %p75 = scmp.eq.s32.totalorder %s16, 0
    %p76 = por %p74, %p75
    %p77 = scmp.ne.s32.totalorder %s66, %s69
    %p78 = scmp.eq.s32.totalorder %s21, 1
    %p79 = por %p77, %p78
    %p80 = scmp.ne.s32.totalorder %s69, %s70
    %p81 = scmp.eq.s32.totalorder %s21, 0
    %p82 = por %p80, %p81
    %p83 = scmp.ne.s32.totalorder %s69, %s70
    %p84 = scmp.eq.s32.totalorder %s22, 1
    %p85 = por %p83, %p84
    %p87 = scmp.ne.s32.totalorder %s70, %s86
    %p88 = scmp.eq.s32.totalorder %s22, 0
    %p89 = por %p87, %p88
    %s90 = ssub.s32 %s24, %s31
    %p91 = scmp.eq.s32.totalorder %s90, 0
    %s93 = sadd.s32 %s92, 1
    %s94 = scalar_select %p91, %s92, %s93
    %p97 = pneg %p91
    %p98 = scmp.eq.s32.totalorder %s16, 1
    %p99 = por %p97, %p98
    %p100 = scmp.ne.s32.totalorder %s92, %s95
    %p101 = scmp.eq.s32.totalorder %s16, 0
    %p102 = por %p100, %p101
    %p103 = scmp.ne.s32.totalorder %s92, %s95
    %p104 = scmp.eq.s32.totalorder %s21, 1
    %p105 = por %p103, %p104
    %p106 = scmp.ne.s32.totalorder %s95, %s96
    %p107 = scmp.eq.s32.totalorder %s21, 0
    %p108 = por %p106, %p107
    %p109 = scmp.ne.s32.totalorder %s95, %s96
    %p110 = scmp.eq.s32.totalorder %s22, 1
    %p111 = por %p109, %p110
    %p113 = scmp.ne.s32.totalorder %s96, %s112
    %p114 = scmp.eq.s32.totalorder %s22, 0
    %p115 = por %p113, %p114
    %s117 = sadd.s32 %s116, 1
    %p120 = scmp.eq.s32.totalorder %s16, 1
    %p121 = scmp.ne.s32.totalorder %s116, %s118
    %p122 = scmp.eq.s32.totalorder %s16, 0
    %p123 = por %p121, %p122
    %p124 = scmp.ne.s32.totalorder %s116, %s118
    %p125 = scmp.eq.s32.totalorder %s21, 1
    %p126 = por %p124, %p125
    %p127 = scmp.ne.s32.totalorder %s118, %s119
    %p128 = scmp.eq.s32.totalorder %s21, 0
    %p129 = por %p127, %p128
    %p130 = scmp.ne.s32.totalorder %s118, %s119
    %p131 = scmp.eq.s32.totalorder %s22, 1
    %p132 = por %p130, %p131
    %p134 = scmp.ne.s32.totalorder %s119, %s133
    %p135 = scmp.eq.s32.totalorder %s22, 0
    %p136 = por %p134, %p135
    %s138 = sadd.s32 %s137, 1
    %p141 = scmp.eq.s32.totalorder %s16, 1
    %p142 = scmp.ne.s32.totalorder %s137, %s139
    %p143 = scmp.eq.s32.totalorder %s16, 0
    %p144 = por %p142, %p143
    %p145 = scmp.ne.s32.totalorder %s137, %s139
    %p146 = scmp.eq.s32.totalorder %s21, 1
    %p147 = por %p145, %p146
    %p148 = scmp.ne.s32.totalorder %s139, %s140
    %p149 = scmp.eq.s32.totalorder %s21, 0
    %p150 = por %p148, %p149
    %p151 = scmp.ne.s32.totalorder %s139, %s140
    %p152 = scmp.eq.s32.totalorder %s22, 1
    %p153 = por %p151, %p152
    %p155 = scmp.ne.s32.totalorder %s140, %s154
    %p156 = scmp.eq.s32.totalorder %s22, 0
    %p157 = por %p155, %p156
    %s159 = sadd.s32 %s158, 1
    %p162 = scmp.eq.s32.totalorder %s16, 1
    %p163 = scmp.ne.s32.totalorder %s158, %s160
    %p164 = scmp.eq.s32.totalorder %s16, 0
    %p165 = por %p163, %p164
    %p166 = scmp.ne.s32.totalorder %s158, %s160
    %p167 = scmp.eq.s32.totalorder %s21, 1
    %p168 = por %p166, %p167
    %p169 = scmp.ne.s32.totalorder %s160, %s161
    %p170 = scmp.eq.s32.totalorder %s21, 0
    %p171 = por %p169, %p170
    %p172 = scmp.ne.s32.totalorder %s160, %s161
    %p173 = scmp.eq.s32.totalorder %s22, 1
    %p174 = por %p172, %p173
    %p176 = scmp.ne.s32.totalorder %s161, %s175
    %p177 = scmp.eq.s32.totalorder %s22, 0
    %p178 = por %p176, %p177
    %s180 = sadd.s32 %s179, 1
    %p183 = scmp.eq.s32.totalorder %s16, 1
    %p184 = scmp.ne.s32.totalorder %s179, %s181
    %p185 = scmp.eq.s32.totalorder %s16, 0
    %p186 = por %p184, %p185
    %p187 = scmp.ne.s32.totalorder %s179, %s181
    %p188 = scmp.eq.s32.totalorder %s21, 1
    %p189 = por %p187, %p188
    %p190 = scmp.ne.s32.totalorder %s181, %s182
    %p191 = scmp.eq.s32.totalorder %s21, 0
    %p192 = por %p190, %p191
    %p193 = scmp.ne.s32.totalorder %s181, %s182
    %p194 = scmp.eq.s32.totalorder %s22, 1
    %p195 = por %p193, %p194
    %p197 = scmp.ne.s32.totalorder %s182, %s196
    %p198 = scmp.eq.s32.totalorder %s22, 0
    %p199 = por %p197, %p198
    %s201 = sadd.s32 %s200, 1
    %p204 = scmp.eq.s32.totalorder %s16, 1
    %p205 = scmp.ne.s32.totalorder %s200, %s202
    %p206 = scmp.eq.s32.totalorder %s16, 0
    %p207 = por %p205, %p206
    %p208 = scmp.ne.s32.totalorder %s200, %s202
    %p209 = scmp.eq.s32.totalorder %s21, 1
    %p210 = por %p208, %p209
    %p211 = scmp.ne.s32.totalorder %s202, %s203
    %p212 = scmp.eq.s32.totalorder %s21, 0
    %p213 = por %p211, %p212
    %p214 = scmp.ne.s32.totalorder %s202, %s203
    %p215 = scmp.eq.s32.totalorder %s22, 1
    %p216 = por %p214, %p215
    %p218 = scmp.ne.s32.totalorder %s203, %s217
    %p219 = scmp.eq.s32.totalorder %s22, 0
    %p220 = por %p218, %p219
    %s221 = ssub.s32 %s23, %s35
    %p222 = scmp.eq.s32.totalorder %s221, 0
    %s224 = sadd.s32 %s223, 1
    %s225 = scalar_select %p222, %s223, %s224
    %p228 = pneg %p222
    %p229 = scmp.eq.s32.totalorder %s16, 1
    %p230 = por %p228, %p229
    %p231 = scmp.ne.s32.totalorder %s223, %s226
    %p232 = scmp.eq.s32.totalorder %s16, 0
    %p233 = por %p231, %p232
    %p234 = scmp.ne.s32.totalorder %s223, %s226
    %p235 = scmp.eq.s32.totalorder %s21, 1
    %p236 = por %p234, %p235
    %p237 = scmp.ne.s32.totalorder %s226, %s227
    %p238 = scmp.eq.s32.totalorder %s21, 0
    %p239 = por %p237, %p238
    %p240 = scmp.ne.s32.totalorder %s226, %s227
    %p241 = scmp.eq.s32.totalorder %s22, 1
    %p242 = por %p240, %p241
    %p244 = scmp.ne.s32.totalorder %s227, %s243
    %p245 = scmp.eq.s32.totalorder %s22, 0
    %p246 = por %p244, %p245
    %p247 = scmp.le.s32.totalorder 1, %s16
    %p248 = scmp.lt.s32.totalorder %s16, 3
    %p249 = pnand %p247, %p248
    %p250 = pneg %p249
    // Predicated region
    $region9: #{binn_forward.1} parent=5 // pred_check
      _
    $region10: #{binn_forward.1} parent=5 // pred_check_branch
      %252 = sbr.rel (%p249) target = $region12
    $region11: #{binn_forward.1} parent=5 // pred_region
      %s253 = ssub.s32 %s16, 1
      // Predicated region
      $region13: #{binn_forward.1} parent=11 // pred_check
        %p254 = pneg %p82
      $region14: #{binn_forward.1} parent=11 // pred_check_branch
        %256 = sbr.rel (%p254) target = $region16
      $region15: #{binn_forward.1} parent=11 // pred_region
        %s257 = smul.u32 16, %s25
        %p258 = scmp.lt.s32.totalorder %s257, 15
        %s259 = scalar_select %p258, %s257, 15
        %s260 = smul.addr %s259, 8
        %s261 = scalar_lea.vmem %s1, %s260
        %s262 = smul.u32 16, %s25
      $region16: #{binn_forward.1} parent=11 // pred_fallthru
        _
      // Predicated region
      $region17: #{binn_forward.1} parent=11 // pred_check
        %p263 = pneg %p129
      $region18: #{binn_forward.1} parent=11 // pred_check_branch
        %265 = sbr.rel (%p263) target = $region20
      $region19: #{binn_forward.1} parent=11 // pred_region
        _
      $region20: #{binn_forward.1} parent=11 // pred_fallthru
        _
      // Predicated region
      $region21: #{binn_forward.1} parent=11 // pred_check
        %p266 = pneg %p150
      $region22: #{binn_forward.1} parent=11 // pred_check_branch
        %268 = sbr.rel (%p266) target = $region24
      $region23: #{binn_forward.1} parent=11 // pred_region
        _
      $region24: #{binn_forward.1} parent=11 // pred_fallthru
        _
      // Predicated region
      $region25: #{binn_forward.1} parent=11 // pred_check
        %p269 = pneg %p171
      $region26: #{binn_forward.1} parent=11 // pred_check_branch
        %271 = sbr.rel (%p269) target = $region28
      $region27: #{binn_forward.1} parent=11 // pred_region
        _
      $region28: #{binn_forward.1} parent=11 // pred_fallthru
        _
      // Predicated region
      $region29: #{binn_forward.1} parent=11 // pred_check
        %p272 = pneg %p192
      $region30: #{binn_forward.1} parent=11 // pred_check_branch
        %274 = sbr.rel (%p272) target = $region32
      $region31: #{binn_forward.1} parent=11 // pred_region
        _
      $region32: #{binn_forward.1} parent=11 // pred_fallthru
        _
      // Predicated region
      $region33: #{binn_forward.1} parent=11 // pred_check
        %p275 = pneg %p213
      $region34: #{binn_forward.1} parent=11 // pred_check_branch
        %277 = sbr.rel (%p275) target = $region36
      $region35: #{binn_forward.1} parent=11 // pred_region
        _
      $region36: #{binn_forward.1} parent=11 // pred_fallthru
        _
    $region12: #{binn_forward.1} parent=5 // pred_fallthru
      _
    %p278 = scmp.lt.s32.totalorder %s16, 2
    // Predicated region
    $region37: #{binn_forward.1} parent=5 // pred_check
      %p279 = pneg %p278
    $region38: #{binn_forward.1} parent=5 // pred_check_branch
      %281 = sbr.rel (%p279) target = $region40
    $region39: #{binn_forward.1} parent=5 // pred_region
      // Predicated region
      $region41: #{binn_forward.1} parent=39 // pred_check
        %p282 = pneg %p50
      $region42: #{binn_forward.1} parent=39 // pred_check_branch
        %284 = sbr.rel (%p282) target = $region44
      $region43: #{binn_forward.1} parent=39 // pred_region
        %s285 = smul.u32 16, %s23
        %p286 = scmp.lt.s32.totalorder %s24, 1
        %s287 = scalar_select %p286, %s24, 1
        %p288 = scmp.lt.s32.totalorder %s285, 15
        %s289 = scalar_select %p288, %s285, 15
        %s290 = smul.addr %s287, 16
        %s291 = sadd.s32 %s289, %s290
        %s292 = smul.addr %s291, 8
        %s293 = scalar_lea.vmem %s0, %s292
        %s294 = smul.u32 16, %s23
      $region44: #{binn_forward.1} parent=39 // pred_fallthru
        _
      // Predicated region
      $region45: #{binn_forward.1} parent=39 // pred_check
        %p295 = pneg %p102
      $region46: #{binn_forward.1} parent=39 // pred_check_branch
        %297 = sbr.rel (%p295) target = $region48
      $region47: #{binn_forward.1} parent=39 // pred_region
        %s298 = smul.u32 16, %s24
        %p299 = scmp.lt.s32.totalorder %s298, 31
        %s300 = scalar_select %p299, %s298, 31
        %s301 = smul.addr %s300, 4
        %s302 = smul.addr %s301, 4
        %s303 = scalar_lea.vmem %s2, %s302
        %s304 = smul.u32 16, %s24
      $region48: #{binn_forward.1} parent=39 // pred_fallthru
        _
    $region40: #{binn_forward.1} parent=5 // pred_fallthru
      _
    %p305 = scmp.le.s32.totalorder 1, %s16
    %p306 = scmp.lt.s32.totalorder %s16, 3
    %p307 = pnand %p305, %p306
    %p308 = pneg %p307
    // Predicated region
    $region49: #{binn_forward.1} parent=5 // pred_check
      _
    $region50: #{binn_forward.1} parent=5 // pred_check_branch
      %310 = sbr.rel (%p307) target = $region52
    $region51: #{binn_forward.1} parent=5 // pred_region
      %s311 = ssub.s32 %s16, 1
      %s312 = smul.u32 16, %s25
      %p313 = scmp.lt.s32.totalorder %s26, 1
      %s314 = scalar_select %p313, %s26, 1
      %p315 = scmp.lt.s32.totalorder %s312, 15
      %s316 = scalar_select %p315, %s312, 15
      %s317 = smul.addr %s314, 16
      %s318 = sadd.s32 %s316, %s317
      %s319 = smul.addr %s318, 8
      %s320 = scalar_lea.vmem %s0, %s319
      %p321 = pneg %p56
      %p322 = pneg %p53
      %s323 = smul.u32 16, %s25
      %p324 = scmp.lt.s32.totalorder %s323, 15
      %s325 = scalar_select %p324, %s323, 15
      %s326 = smul.addr %s325, 8
      %s327 = scalar_lea.vmem %s1, %s326
      %p328 = pneg %p82
      %p329 = pneg %p79
      %s330 = smul.u32 16, %s26
      %p331 = scmp.lt.s32.totalorder %s330, 31
      %s332 = scalar_select %p331, %s330, 31
      %s333 = smul.addr %s332, 4
      %s334 = smul.addr %s333, 4
      %s335 = scalar_lea.vmem %s2, %s334
      %p336 = pneg %p108
      %p337 = pneg %p105
      %p338 = pneg %p129
      %p339 = pneg %p126
      %p340 = pneg %p150
      %p341 = pneg %p147
      %p342 = pneg %p171
      %p343 = pneg %p168
      %p344 = pneg %p192
      %p345 = pneg %p189
      %p346 = pneg %p213
      %p347 = pneg %p210
      %p348 = pneg %p239
      %p349 = pneg %p236
      %s350 = smul.u32 16, %s25
      %p351 = scmp.lt.s32.totalorder %s350, 15
      %s352 = scalar_select %p351, %s350, 15
      %s353 = smul.addr %s352, 8
      %s354 = scalar_lea.vmem %s8, %s353
      %s355 = smul.u32 16, %s25
      %p356 = scmp.lt.s32.totalorder %s26, 1
      %s357 = scalar_select %p356, %s26, 1
      %p358 = scmp.lt.s32.totalorder %s355, 15
      %s359 = scalar_select %p358, %s355, 15
      %s360 = smul.addr %s357, 16
      %s361 = sadd.s32 %s359, %s360
      %s362 = smul.addr %s361, 8
      %s363 = scalar_lea.vmem %s0, %s362
      %s364 = smul.u32 16, %s25
      %s365 = smul.u32 16, %s25
      %p366 = scmp.lt.s32.totalorder %s365, 15
      %s367 = scalar_select %p366, %s365, 15
      %s368 = smul.addr %s367, 8
      %s369 = scalar_lea.vmem %s1, %s368
      %s370 = smul.u32 16, %s25
      %s371 = smul.u32 16, %s26
      %p372 = scmp.lt.s32.totalorder %s371, 31
      %s373 = scalar_select %p372, %s371, 31
      %s374 = smul.addr %s373, 4
      %s375 = smul.addr %s374, 4
      %s376 = scalar_lea.vmem %s2, %s375
      %s377 = smul.u32 16, %s26
      %s378 = smul.u32 16, %s25
      %p379 = scmp.lt.s32.totalorder %s378, 15
      %s380 = scalar_select %p379, %s378, 15
      %s381 = smul.addr %s380, 8
      %s382 = scalar_lea.vmem %s8, %s381
      %s383 = smul.u32 16, %s25
      %p384 = scmp.eq.s32.totalorder %s26, 0
      // Predicated region
      $region53: #{binn_forward.1} parent=51 // pred_check
        %p385 = pneg %p384
      $region54: #{binn_forward.1} parent=51 // pred_check_branch
        %387 = sbr.rel (%p385) target = $region56
      $region55: #{binn_forward.1} parent=51 // pred_region
        %388 = vst [vmem:[#allocation2] sm:$0xff] 0.0
        %389 = vst [vmem:[#allocation2 + $0x8] sm:$0xff] 0.0
        %390 = vst [vmem:[#allocation2 + $0x10] sm:$0xff] 0.0
        %391 = vst [vmem:[#allocation2 + $0x18] sm:$0xff] 0.0
        %392 = vst [vmem:[#allocation2 + $0x20] sm:$0xff] 0.0
        %393 = vst [vmem:[#allocation2 + $0x28] sm:$0xff] 0.0
        %394 = vst [vmem:[#allocation2 + $0x30] sm:$0xff] 0.0
        %395 = vst [vmem:[#allocation2 + $0x38] sm:$0xff] 0.0
        %396 = vst [vmem:[#allocation2 + $0x40] sm:$0xff] 0.0
        %397 = vst [vmem:[#allocation2 + $0x48] sm:$0xff] 0.0
        %398 = vst [vmem:[#allocation2 + $0x50] sm:$0xff] 0.0
        %399 = vst [vmem:[#allocation2 + $0x58] sm:$0xff] 0.0
        %400 = vst [vmem:[#allocation2 + $0x60] sm:$0xff] 0.0
        %401 = vst [vmem:[#allocation2 + $0x68] sm:$0xff] 0.0
        %402 = vst [vmem:[#allocation2 + $0x70] sm:$0xff] 0.0
        %403 = vst [vmem:[#allocation2 + $0x78] sm:$0xff] 0.0
      $region56: #{binn_forward.1} parent=51 // pred_fallthru
        _
      %v404 = vld [vmem:[%s363] sm:$0xff]
      %v405 = vld [vmem:[%s363 + $0x8] sm:$0xff]
      %v406 = vld [vmem:[%s363 + $0x10] sm:$0xff]
      %v407 = vld [vmem:[%s363 + $0x18] sm:$0xff]
      %v408 = vld [vmem:[%s363 + $0x20] sm:$0xff]
      %v409 = vld [vmem:[%s363 + $0x28] sm:$0xff]
      %v410 = vld [vmem:[%s363 + $0x30] sm:$0xff]
      %v411 = vld [vmem:[%s363 + $0x38] sm:$0xff]
      %v412 = vld [vmem:[%s363 + $0x40] sm:$0xff]
      %v413 = vld [vmem:[%s363 + $0x48] sm:$0xff]
      %v414 = vld [vmem:[%s363 + $0x50] sm:$0xff]
      %v415 = vld [vmem:[%s363 + $0x58] sm:$0xff]
      %v416 = vld [vmem:[%s363 + $0x60] sm:$0xff]
      %v417 = vld [vmem:[%s363 + $0x68] sm:$0xff]
      %v418 = vld [vmem:[%s363 + $0x70] sm:$0xff]
      %v419 = vld [vmem:[%s363 + $0x78] sm:$0xff]
      %v420 = vld [vmem:[%s369] sm:$0xff]
      %v421 = vld [vmem:[%s369 + $0x8] sm:$0xff]
      %v422 = vld [vmem:[%s369 + $0x10] sm:$0xff]
      %v423 = vld [vmem:[%s369 + $0x18] sm:$0xff]
      %v424 = vld [vmem:[%s369 + $0x20] sm:$0xff]
      %v425 = vld [vmem:[%s369 + $0x28] sm:$0xff]
      %v426 = vld [vmem:[%s369 + $0x30] sm:$0xff]
      %v427 = vld [vmem:[%s369 + $0x38] sm:$0xff]
      %v428 = vld [vmem:[%s369 + $0x40] sm:$0xff]
      %v429 = vld [vmem:[%s369 + $0x48] sm:$0xff]
      %v430 = vld [vmem:[%s369 + $0x50] sm:$0xff]
      %v431 = vld [vmem:[%s369 + $0x58] sm:$0xff]
      %v432 = vld [vmem:[%s369 + $0x60] sm:$0xff]
      %v433 = vld [vmem:[%s369 + $0x68] sm:$0xff]
      %v434 = vld [vmem:[%s369 + $0x70] sm:$0xff]
      %v435 = vld [vmem:[%s369 + $0x78] sm:$0xff]
      %v436 = vld [vmem:[%s376] sm:$0xf]
      %v437 = vld [vmem:[%s376 + $0x4] sm:$0xf]
      %v438 = vld [vmem:[%s376 + $0x8] sm:$0xf]
      %v439 = vld [vmem:[%s376 + $0xc] sm:$0xf]
      %v440 = vunpack.c.l.bf16 %v436
      %v441 = vunpack.c.l.bf16 %v437
      %v442 = vunpack.c.l.bf16 %v438
      %v443 = vunpack.c.l.bf16 %v439
      %vm444 = vcmask 261120
      %v446 = vsel %vm444, %v420, 0
      %v449 = vsel %vm444, %v421, 0
      %v452 = vsel %vm444, %v422, 0
      %v455 = vsel %vm444, %v423, 0
      %v458 = vsel %vm444, %v424, 0
      %v461 = vsel %vm444, %v425, 0
      %v464 = vsel %vm444, %v426, 0
      %v467 = vsel %vm444, %v427, 0
      %v470 = vsel %vm444, %v428, 0
      %v473 = vsel %vm444, %v429, 0
      %v476 = vsel %vm444, %v430, 0
      %v479 = vsel %vm444, %v431, 0
      %v482 = vsel %vm444, %v432, 0
      %v485 = vsel %vm444, %v433, 0
      %v488 = vsel %vm444, %v434, 0
      %v491 = vsel %vm444, %v435, 0
      %493 = vmatprep.subr.mxu0 0.0
      %494 = vmatpush1.msra.mxu0 %v440
      %495 = vmatprep.subr.mxu0 0.0
      %496 = vmatpush1.msra.mxu0 %v441
      %497 = vmatprep.subr.mxu0 0.0
      %498 = vmatpush1.msra.mxu0 %v442
      %499 = vmatprep.subr.mxu0 0.0
      %500 = vmatpush1.msra.mxu0 %v443
      %501 = vmatprep.subr.mxu0 0.0
      %502 = vmatpush1.msra.mxu0 0.0
      %503 = vmatprep.subr.mxu0 0.0
      %504 = vmatpush1.msra.mxu0 0.0
      %505 = vmatprep.subr.mxu0 0.0
      %506 = vmatpush1.msra.mxu0 0.0
      %507 = vmatprep.subr.mxu0 0.0
      %508 = vmatpush1.msra.mxu0 0.0
      %509 = vmatprep.subr.mxu0 0.0
      %510 = vmatpush1.msra.mxu0 0.0
      %511 = vmatprep.subr.mxu0 0.0
      %512 = vmatpush1.msra.mxu0 0.0
      %513 = vmatprep.subr.mxu0 0.0
      %514 = vmatpush1.msra.mxu0 0.0
      %515 = vmatprep.subr.mxu0 0.0
      %516 = vmatpush1.msra.mxu0 0.0
      %517 = vmatprep.subr.mxu0 0.0
      %518 = vmatpush1.msra.mxu0 0.0
      %519 = vmatprep.subr.mxu0 0.0
      %520 = vmatpush1.msra.mxu0 0.0
      %521 = vmatprep.subr.mxu0 0.0
      %522 = vmatpush1.msra.mxu0 0.0
      %523 = vmatprep.subr.mxu0 0.0
      %524 = vmatpush1.msra.mxu0 0.0
      %525 = vmatprep.subr.mxu0 0.0
      %526 = vmatpush1.msra.mxu0 0.0
      %527 = vmatprep.subr.mxu0 0.0
      %528 = vmatpush1.msra.mxu0 0.0
      %529 = vmatprep.subr.mxu0 0.0
      %530 = vmatpush1.msra.mxu0 0.0
      %531 = vmatprep.subr.mxu0 0.0
      %532 = vmatpush1.msra.mxu0 0.0
      %533 = vmatprep.subr.mxu0 0.0
      %534 = vmatpush1.msra.mxu0 0.0
      %535 = vmatprep.subr.mxu0 0.0
      %536 = vmatpush1.msra.mxu0 0.0
      %537 = vmatprep.subr.mxu0 0.0
      %538 = vmatpush1.msra.mxu0 0.0
      %539 = vmatprep.subr.mxu0 0.0
      %540 = vmatpush1.msra.mxu0 0.0
      %541 = vmatprep.subr.mxu0 0.0
      %542 = vmatpush1.msra.mxu0 0.0
      %543 = vmatprep.subr.mxu0 0.0
      %544 = vmatpush1.msra.mxu0 0.0
      %545 = vmatprep.subr.mxu0 0.0
      %546 = vmatpush1.msra.mxu0 0.0
      %547 = vmatprep.subr.mxu0 0.0
      %548 = vmatpush1.msra.mxu0 0.0
      %549 = vmatprep.subr.mxu0 0.0
      %550 = vmatpush1.msra.mxu0 0.0
      %551 = vmatprep.subr.mxu0 0.0
      %552 = vmatpush1.msra.mxu0 0.0
      %553 = vmatprep.subr.mxu0 0.0
      %554 = vmatpush1.msra.mxu0 0.0
      %555 = vmatprep.subr.mxu0 0.0
      %556 = vmatpush1.msra.mxu0 0.0
      %557 = vmatprep.mubr.f32.mxu0 0.0
      %558 = vmatmul.mubr.f32.gmra.mrb[0].mxu0 %v446
      %v559 = vpop.f32.mrb[0].mxu0
      %v560 = vadd.f32 0.0, %v559
      %v561 = vpop.f32.mrb[0].mxu0
      %562 = vmatprep.mubr.f32.mxu0 0.0
      %563 = vmatmul.mubr.f32.gmra.mrb[0].mxu0 %v449
      %v564 = vpop.f32.mrb[0].mxu0
      %v565 = vadd.f32 0.0, %v564
      %v566 = vpop.f32.mrb[0].mxu0
      %567 = vmatprep.mubr.f32.mxu0 0.0
      %568 = vmatmul.mubr.f32.gmra.mrb[0].mxu0 %v452
      %v569 = vpop.f32.mrb[0].mxu0
      %v570 = vadd.f32 0.0, %v569
      %v571 = vpop.f32.mrb[0].mxu0
      %572 = vmatprep.mubr.f32.mxu0 0.0
      %573 = vmatmul.mubr.f32.gmra.mrb[0].mxu0 %v455
      %v574 = vpop.f32.mrb[0].mxu0
      %v575 = vadd.f32 0.0, %v574
      %v576 = vpop.f32.mrb[0].mxu0
      %577 = vmatprep.mubr.f32.mxu0 0.0
      %578 = vmatmul.mubr.f32.gmra.mrb[0].mxu0 %v458
      %v579 = vpop.f32.mrb[0].mxu0
      %v580 = vadd.f32 0.0, %v579
      %v581 = vpop.f32.mrb[0].mxu0
      %582 = vmatprep.mubr.f32.mxu0 0.0
      %583 = vmatmul.mubr.f32.gmra.mrb[0].mxu0 %v461
      %v584 = vpop.f32.mrb[0].mxu0
      %v585 = vadd.f32 0.0, %v584
      %v586 = vpop.f32.mrb[0].mxu0
      %587 = vmatprep.mubr.f32.mxu0 0.0
      %588 = vmatmul.mubr.f32.gmra.mrb[0].mxu0 %v464
      %v589 = vpop.f32.mrb[0].mxu0
      %v590 = vadd.f32 0.0, %v589
      %v591 = vpop.f32.mrb[0].mxu0
      %592 = vmatprep.mubr.f32.mxu0 0.0
      %593 = vmatmul.mubr.f32.gmra.mrb[0].mxu0 %v467
      %v594 = vpop.f32.mrb[0].mxu0
      %v595 = vadd.f32 0.0, %v594
      %v596 = vpop.f32.mrb[0].mxu0
      %597 = vmatprep.mubr.f32.mxu0 0.0
      %598 = vmatmul.mubr.f32.gmra.mrb[0].mxu0 %v470
      %v599 = vpop.f32.mrb[0].mxu0
      %v600 = vadd.f32 0.0, %v599
      %v601 = vpop.f32.mrb[0].mxu0
      %602 = vmatprep.mubr.f32.mxu0 0.0
      %603 = vmatmul.mubr.f32.gmra.mrb[0].mxu0 %v473
      %v604 = vpop.f32.mrb[0].mxu0
      %v605 = vadd.f32 0.0, %v604
      %v606 = vpop.f32.mrb[0].mxu0
      %607 = vmatprep.mubr.f32.mxu0 0.0
      %608 = vmatmul.mubr.f32.gmra.mrb[0].mxu0 %v476
      %v609 = vpop.f32.mrb[0].mxu0
      %v610 = vadd.f32 0.0, %v609
      %v611 = vpop.f32.mrb[0].mxu0
      %612 = vmatprep.mubr.f32.mxu0 0.0
      %613 = vmatmul.mubr.f32.gmra.mrb[0].mxu0 %v479
      %v614 = vpop.f32.mrb[0].mxu0
      %v615 = vadd.f32 0.0, %v614
      %v616 = vpop.f32.mrb[0].mxu0
      %617 = vmatprep.mubr.f32.mxu0 0.0
      %618 = vmatmul.mubr.f32.gmra.mrb[0].mxu0 %v482
      %v619 = vpop.f32.mrb[0].mxu0
      %v620 = vadd.f32 0.0, %v619
      %v621 = vpop.f32.mrb[0].mxu0
      %622 = vmatprep.mubr.f32.mxu0 0.0
      %623 = vmatmul.mubr.f32.gmra.mrb[0].mxu0 %v485
      %v624 = vpop.f32.mrb[0].mxu0
      %v625 = vadd.f32 0.0, %v624
      %v626 = vpop.f32.mrb[0].mxu0
      %627 = vmatprep.mubr.f32.mxu0 0.0
      %628 = vmatmul.mubr.f32.gmra.mrb[0].mxu0 %v488
      %v629 = vpop.f32.mrb[0].mxu0
      %v630 = vadd.f32 0.0, %v629
      %v631 = vpop.f32.mrb[0].mxu0
      %632 = vmatprep.mubr.f32.mxu0 0.0
      %633 = vmatmul.mubr.f32.gmra.mrb[0].mxu0 %v491
      %v634 = vpop.f32.mrb[0].mxu0
      %v635 = vadd.f32 0.0, %v634
      %v636 = vpop.f32.mrb[0].mxu0
      %637 = vdwg.mxu0
      %639 = vset.pattern.permute.xlu0 0
      %640 = vperm.xlu0 %639, %v404
      %v641 = vpop.permute.xlu0 %640
      %644 = vset.pattern.permute.xlu0 0
      %645 = vperm.xlu0 %644, %v405
      %v646 = vpop.permute.xlu0 %645
      %649 = vset.pattern.permute.xlu0 0
      %650 = vperm.xlu0 %649, %v406
      %v651 = vpop.permute.xlu0 %650
      %654 = vset.pattern.permute.xlu0 0
      %655 = vperm.xlu0 %654, %v407
      %v656 = vpop.permute.xlu0 %655
      %659 = vset.pattern.permute.xlu0 0
      %660 = vperm.xlu0 %659, %v408
      %v661 = vpop.permute.xlu0 %660
      %664 = vset.pattern.permute.xlu0 0
      %665 = vperm.xlu0 %664, %v409
      %v666 = vpop.permute.xlu0 %665
      %669 = vset.pattern.permute.xlu0 0
      %670 = vperm.xlu0 %669, %v410
      %v671 = vpop.permute.xlu0 %670
      %674 = vset.pattern.permute.xlu0 0
      %675 = vperm.xlu0 %674, %v411
      %v676 = vpop.permute.xlu0 %675
      %679 = vset.pattern.permute.xlu0 0
      %680 = vperm.xlu0 %679, %v412
      %v681 = vpop.permute.xlu0 %680
      %684 = vset.pattern.permute.xlu0 0
      %685 = vperm.xlu0 %684, %v413
      %v686 = vpop.permute.xlu0 %685
      %689 = vset.pattern.permute.xlu0 0
      %690 = vperm.xlu0 %689, %v414
      %v691 = vpop.permute.xlu0 %690
      %694 = vset.pattern.permute.xlu0 0
      %695 = vperm.xlu0 %694, %v415
      %v696 = vpop.permute.xlu0 %695
      %699 = vset.pattern.permute.xlu0 0
      %700 = vperm.xlu0 %699, %v416
      %v701 = vpop.permute.xlu0 %700
      %704 = vset.pattern.permute.xlu0 0
      %705 = vperm.xlu0 %704, %v417
      %v706 = vpop.permute.xlu0 %705
      %709 = vset.pattern.permute.xlu0 0
      %710 = vperm.xlu0 %709, %v418
      %v711 = vpop.permute.xlu0 %710
      %714 = vset.pattern.permute.xlu0 0
      %715 = vperm.xlu0 %714, %v419
      %v716 = vpop.permute.xlu0 %715
      %v718 = vmul.f32 %v641, %v560
      %v719 = vmul.f32 %v646, %v565
      %v720 = vmul.f32 %v651, %v570
      %v721 = vmul.f32 %v656, %v575
      %v722 = vmul.f32 %v661, %v580
      %v723 = vmul.f32 %v666, %v585
      %v724 = vmul.f32 %v671, %v590
      %v725 = vmul.f32 %v676, %v595
      %v726 = vmul.f32 %v681, %v600
      %v727 = vmul.f32 %v686, %v605
      %v728 = vmul.f32 %v691, %v610
      %v729 = vmul.f32 %v696, %v615
      %v730 = vmul.f32 %v701, %v620
      %v731 = vmul.f32 %v706, %v625
      %v732 = vmul.f32 %v711, %v630
      %v733 = vmul.f32 %v716, %v635
      %v734 = vadd.f32 %v718, 0.0
      %v735 = vadd.f32 %v719, 0.0
      %v736 = vadd.f32 %v720, 0.0
      %v737 = vadd.f32 %v721, 0.0
      %v738 = vadd.f32 %v722, 0.0
      %v739 = vadd.f32 %v723, 0.0
      %v740 = vadd.f32 %v724, 0.0
      %v741 = vadd.f32 %v725, 0.0
      %v742 = vadd.f32 %v726, 0.0
      %v743 = vadd.f32 %v727, 0.0
      %v744 = vadd.f32 %v728, 0.0
      %v745 = vadd.f32 %v729, 0.0
      %v746 = vadd.f32 %v730, 0.0
      %v747 = vadd.f32 %v731, 0.0
      %v748 = vadd.f32 %v732, 0.0
      %v749 = vadd.f32 %v733, 0.0
      %s750 = scalar_lea.vmem %s376, 16
      %v751 = vld [vmem:[%s750] sm:$0xf]
      %v752 = vld [vmem:[%s750 + $0x4] sm:$0xf]
      %v753 = vld [vmem:[%s750 + $0x8] sm:$0xf]
      %v754 = vld [vmem:[%s750 + $0xc] sm:$0xf]
      %v755 = vunpack.c.l.bf16 %v751
      %v756 = vunpack.c.l.bf16 %v752
      %v757 = vunpack.c.l.bf16 %v753
      %v758 = vunpack.c.l.bf16 %v754
      %759 = vmatprep.subr.mxu0 0.0
      %760 = vmatpush1.msra.mxu0 %v755
      %761 = vmatprep.subr.mxu0 0.0
      %762 = vmatpush1.msra.mxu0 %v756
      %763 = vmatprep.subr.mxu0 0.0
      %764 = vmatpush1.msra.mxu0 %v757
      %765 = vmatprep.subr.mxu0 0.0
      %766 = vmatpush1.msra.mxu0 %v758
      %767 = vmatprep.subr.mxu0 0.0
      %768 = vmatpush1.msra.mxu0 0.0
      %769 = vmatprep.subr.mxu0 0.0
      %770 = vmatpush1.msra.mxu0 0.0
      %771 = vmatprep.subr.mxu0 0.0
      %772 = vmatpush1.msra.mxu0 0.0
      %773 = vmatprep.subr.mxu0 0.0
      %774 = vmatpush1.msra.mxu0 0.0
      %775 = vmatprep.subr.mxu0 0.0
      %776 = vmatpush1.msra.mxu0 0.0
      %777 = vmatprep.subr.mxu0 0.0
      %778 = vmatpush1.msra.mxu0 0.0
      %779 = vmatprep.subr.mxu0 0.0
      %780 = vmatpush1.msra.mxu0 0.0
      %781 = vmatprep.subr.mxu0 0.0
      %782 = vmatpush1.msra.mxu0 0.0
      %783 = vmatprep.subr.mxu0 0.0
      %784 = vmatpush1.msra.mxu0 0.0
      %785 = vmatprep.subr.mxu0 0.0
      %786 = vmatpush1.msra.mxu0 0.0
      %787 = vmatprep.subr.mxu0 0.0
      %788 = vmatpush1.msra.mxu0 0.0
      %789 = vmatprep.subr.mxu0 0.0
      %790 = vmatpush1.msra.mxu0 0.0
      %791 = vmatprep.subr.mxu0 0.0
      %792 = vmatpush1.msra.mxu0 0.0
      %793 = vmatprep.subr.mxu0 0.0
      %794 = vmatpush1.msra.mxu0 0.0
      %795 = vmatprep.subr.mxu0 0.0
      %796 = vmatpush1.msra.mxu0 0.0
      %797 = vmatprep.subr.mxu0 0.0
      %798 = vmatpush1.msra.mxu0 0.0
      %799 = vmatprep.subr.mxu0 0.0
      %800 = vmatpush1.msra.mxu0 0.0
      %801 = vmatprep.subr.mxu0 0.0
      %802 = vmatpush1.msra.mxu0 0.0
      %803 = vmatprep.subr.mxu0 0.0
      %804 = vmatpush1.msra.mxu0 0.0
      %805 = vmatprep.subr.mxu0 0.0
      %806 = vmatpush1.msra.mxu0 0.0
      %807 = vmatprep.subr.mxu0 0.0
      %808 = vmatpush1.msra.mxu0 0.0
      %809 = vmatprep.subr.mxu0 0.0
      %810 = vmatpush1.msra.mxu0 0.0
      %811 = vmatprep.subr.mxu0 0.0
      %812 = vmatpush1.msra.mxu0 0.0
      %813 = vmatprep.subr.mxu0 0.0
      %814 = vmatpush1.msra.mxu0 0.0
      %815 = vmatprep.subr.mxu0 0.0
      %816 = vmatpush1.msra.mxu0 0.0
      %817 = vmatprep.subr.mxu0 0.0
      %818 = vmatpush1.msra.mxu0 0.0
      %819 = vmatprep.subr.mxu0 0.0
      %820 = vmatpush1.msra.mxu0 0.0
      %821 = vmatprep.subr.mxu0 0.0
      %822 = vmatpush1.msra.mxu0 0.0
      %823 = vmatprep.mubr.f32.mxu0 0.0
      %824 = vmatmul.mubr.f32.gmra.mrb[0].mxu0 %v446
      %v825 = vpop.f32.mrb[0].mxu0
      %v826 = vadd.f32 0.0, %v825
      %v827 = vpop.f32.mrb[0].mxu0
      %828 = vmatprep.mubr.f32.mxu0 0.0
      %829 = vmatmul.mubr.f32.gmra.mrb[0].mxu0 %v449
      %v830 = vpop.f32.mrb[0].mxu0
      %v831 = vadd.f32 0.0, %v830
      %v832 = vpop.f32.mrb[0].mxu0
      %833 = vmatprep.mubr.f32.mxu0 0.0
      %834 = vmatmul.mubr.f32.gmra.mrb[0].mxu0 %v452
      %v835 = vpop.f32.mrb[0].mxu0
      %v836 = vadd.f32 0.0, %v835
      %v837 = vpop.f32.mrb[0].mxu0
      %838 = vmatprep.mubr.f32.mxu0 0.0
      %839 = vmatmul.mubr.f32.gmra.mrb[0].mxu0 %v455
      %v840 = vpop.f32.mrb[0].mxu0
      %v841 = vadd.f32 0.0, %v840
      %v842 = vpop.f32.mrb[0].mxu0
      %843 = vmatprep.mubr.f32.mxu0 0.0
      %844 = vmatmul.mubr.f32.gmra.mrb[0].mxu0 %v458
      %v845 = vpop.f32.mrb[0].mxu0
      %v846 = vadd.f32 0.0, %v845
      %v847 = vpop.f32.mrb[0].mxu0
      %848 = vmatprep.mubr.f32.mxu0 0.0
      %849 = vmatmul.mubr.f32.gmra.mrb[0].mxu0 %v461
      %v850 = vpop.f32.mrb[0].mxu0
      %v851 = vadd.f32 0.0, %v850
      %v852 = vpop.f32.mrb[0].mxu0
      %853 = vmatprep.mubr.f32.mxu0 0.0
      %854 = vmatmul.mubr.f32.gmra.mrb[0].mxu0 %v464
      %v855 = vpop.f32.mrb[0].mxu0
      %v856 = vadd.f32 0.0, %v855
      %v857 = vpop.f32.mrb[0].mxu0
      %858 = vmatprep.mubr.f32.mxu0 0.0
      %859 = vmatmul.mubr.f32.gmra.mrb[0].mxu0 %v467
      %v860 = vpop.f32.mrb[0].mxu0
      %v861 = vadd.f32 0.0, %v860
      %v862 = vpop.f32.mrb[0].mxu0
      %863 = vmatprep.mubr.f32.mxu0 0.0
      %864 = vmatmul.mubr.f32.gmra.mrb[0].mxu0 %v470
      %v865 = vpop.f32.mrb[0].mxu0
      %v866 = vadd.f32 0.0, %v865
      %v867 = vpop.f32.mrb[0].mxu0
      %868 = vmatprep.mubr.f32.mxu0 0.0
      %869 = vmatmul.mubr.f32.gmra.mrb[0].mxu0 %v473
      %v870 = vpop.f32.mrb[0].mxu0
      %v871 = vadd.f32 0.0, %v870
      %v872 = vpop.f32.mrb[0].mxu0
      %873 = vmatprep.mubr.f32.mxu0 0.0
      %874 = vmatmul.mubr.f32.gmra.mrb[0].mxu0 %v476
      %v875 = vpop.f32.mrb[0].mxu0
      %v876 = vadd.f32 0.0, %v875
      %v877 = vpop.f32.mrb[0].mxu0
      %878 = vmatprep.mubr.f32.mxu0 0.0
      %879 = vmatmul.mubr.f32.gmra.mrb[0].mxu0 %v479
      %v880 = vpop.f32.mrb[0].mxu0
      %v881 = vadd.f32 0.0, %v880
      %v882 = vpop.f32.mrb[0].mxu0
      %883 = vmatprep.mubr.f32.mxu0 0.0
      %884 = vmatmul.mubr.f32.gmra.mrb[0].mxu0 %v482
      %v885 = vpop.f32.mrb[0].mxu0
      %v886 = vadd.f32 0.0, %v885
      %v887 = vpop.f32.mrb[0].mxu0
      %888 = vmatprep.mubr.f32.mxu0 0.0
      %889 = vmatmul.mubr.f32.gmra.mrb[0].mxu0 %v485
      %v890 = vpop.f32.mrb[0].mxu0
      %v891 = vadd.f32 0.0, %v890
      %v892 = vpop.f32.mrb[0].mxu0
      %893 = vmatprep.mubr.f32.mxu0 0.0
      %894 = vmatmul.mubr.f32.gmra.mrb[0].mxu0 %v488
      %v895 = vpop.f32.mrb[0].mxu0
      %v896 = vadd.f32 0.0, %v895
      %v897 = vpop.f32.mrb[0].mxu0
      %898 = vmatprep.mubr.f32.mxu0 0.0
      %899 = vmatmul.mubr.f32.gmra.mrb[0].mxu0 %v491
      %v900 = vpop.f32.mrb[0].mxu0
      %v901 = vadd.f32 0.0, %v900
      %v902 = vpop.f32.mrb[0].mxu0
      %903 = vdwg.mxu0
      %904 = vset.pattern.permute.xlu0 1
      %905 = vperm.xlu0 %904, %v404
      %v906 = vpop.permute.xlu0 %905
      %908 = vset.pattern.permute.xlu0 1
      %909 = vperm.xlu0 %908, %v405
      %v910 = vpop.permute.xlu0 %909
      %912 = vset.pattern.permute.xlu0 1
      %913 = vperm.xlu0 %912, %v406
      %v914 = vpop.permute.xlu0 %913
      %916 = vset.pattern.permute.xlu0 1
      %917 = vperm.xlu0 %916, %v407
      %v918 = vpop.permute.xlu0 %917
      %920 = vset.pattern.permute.xlu0 1
      %921 = vperm.xlu0 %920, %v408
      %v922 = vpop.permute.xlu0 %921
      %924 = vset.pattern.permute.xlu0 1
      %925 = vperm.xlu0 %924, %v409
      %v926 = vpop.permute.xlu0 %925
      %928 = vset.pattern.permute.xlu0 1
      %929 = vperm.xlu0 %928, %v410
      %v930 = vpop.permute.xlu0 %929
      %932 = vset.pattern.permute.xlu0 1
      %933 = vperm.xlu0 %932, %v411
      %v934 = vpop.permute.xlu0 %933
      %936 = vset.pattern.permute.xlu0 1
      %937 = vperm.xlu0 %936, %v412
      %v938 = vpop.permute.xlu0 %937
      %940 = vset.pattern.permute.xlu0 1
      %941 = vperm.xlu0 %940, %v413
      %v942 = vpop.permute.xlu0 %941
      %944 = vset.pattern.permute.xlu0 1
      %945 = vperm.xlu0 %944, %v414
      %v946 = vpop.permute.xlu0 %945
      %948 = vset.pattern.permute.xlu0 1
      %949 = vperm.xlu0 %948, %v415
      %v950 = vpop.permute.xlu0 %949
      %952 = vset.pattern.permute.xlu0 1
      %953 = vperm.xlu0 %952, %v416
      %v954 = vpop.permute.xlu0 %953
      %956 = vset.pattern.permute.xlu0 1
      %957 = vperm.xlu0 %956, %v417
      %v958 = vpop.permute.xlu0 %957
      %960 = vset.pattern.permute.xlu0 1
      %961 = vperm.xlu0 %960, %v418
      %v962 = vpop.permute.xlu0 %961
      %964 = vset.pattern.permute.xlu0 1
      %965 = vperm.xlu0 %964, %v419
      %v966 = vpop.permute.xlu0 %965
      %v968 = vmul.f32 %v906, %v826
      %v969 = vmul.f32 %v910, %v831
      %v970 = vmul.f32 %v914, %v836
      %v971 = vmul.f32 %v918, %v841
      %v972 = vmul.f32 %v922, %v846
      %v973 = vmul.f32 %v926, %v851
      %v974 = vmul.f32 %v930, %v856
      %v975 = vmul.f32 %v934, %v861
      %v976 = vmul.f32 %v938, %v866
      %v977 = vmul.f32 %v942, %v871
      %v978 = vmul.f32 %v946, %v876
      %v979 = vmul.f32 %v950, %v881
      %v980 = vmul.f32 %v954, %v886
      %v981 = vmul.f32 %v958, %v891
      %v982 = vmul.f32 %v962, %v896
      %v983 = vmul.f32 %v966, %v901
      %v984 = vadd.f32 %v734, %v968
      %v985 = vadd.f32 %v735, %v969
      %v986 = vadd.f32 %v736, %v970
      %v987 = vadd.f32 %v737, %v971
      %v988 = vadd.f32 %v738, %v972
      %v989 = vadd.f32 %v739, %v973
      %v990 = vadd.f32 %v740, %v974
      %v991 = vadd.f32 %v741, %v975
      %v992 = vadd.f32 %v742, %v976
      %v993 = vadd.f32 %v743, %v977
      %v994 = vadd.f32 %v744, %v978
      %v995 = vadd.f32 %v745, %v979
      %v996 = vadd.f32 %v746, %v980
      %v997 = vadd.f32 %v747, %v981
      %v998 = vadd.f32 %v748, %v982
      %v999 = vadd.f32 %v749, %v983
      %s1000 = scalar_lea.vmem %s376, 32
      %v1001 = vld [vmem:[%s1000] sm:$0xf]
      %v1002 = vld [vmem:[%s1000 + $0x4] sm:$0xf]
      %v1003 = vld [vmem:[%s1000 + $0x8] sm:$0xf]
      %v1004 = vld [vmem:[%s1000 + $0xc] sm:$0xf]
      %v1005 = vunpack.c.l.bf16 %v1001
      %v1006 = vunpack.c.l.bf16 %v1002
      %v1007 = vunpack.c.l.bf16 %v1003
      %v1008 = vunpack.c.l.bf16 %v1004
      %1009 = vmatprep.subr.mxu0 0.0
      %1010 = vmatpush1.msra.mxu0 %v1005
      %1011 = vmatprep.subr.mxu0 0.0
      %1012 = vmatpush1.msra.mxu0 %v1006
      %1013 = vmatprep.subr.mxu0 0.0
      %1014 = vmatpush1.msra.mxu0 %v1007
      %1015 = vmatprep.subr.mxu0 0.0
      %1016 = vmatpush1.msra.mxu0 %v1008
      %1017 = vmatprep.subr.mxu0 0.0
      %1018 = vmatpush1.msra.mxu0 0.0
      %1019 = vmatprep.subr.mxu0 0.0
      %1020 = vmatpush1.msra.mxu0 0.0
      %1021 = vmatprep.subr.mxu0 0.0
      %1022 = vmatpush1.msra.mxu0 0.0
      %1023 = vmatprep.subr.mxu0 0.0
      %1024 = vmatpush1.msra.mxu0 0.0
      %1025 = vmatprep.subr.mxu0 0.0
      %1026 = vmatpush1.msra.mxu0 0.0
      %1027 = vmatprep.subr.mxu0 0.0
      %1028 = vmatpush1.msra.mxu0 0.0
      %1029 = vmatprep.subr.mxu0 0.0
      %1030 = vmatpush1.msra.mxu0 0.0
      %1031 = vmatprep.subr.mxu0 0.0
      %1032 = vmatpush1.msra.mxu0 0.0
      %1033 = vmatprep.subr.mxu0 0.0
      %1034 = vmatpush1.msra.mxu0 0.0
      %1035 = vmatprep.subr.mxu0 0.0
      %1036 = vmatpush1.msra.mxu0 0.0
      %1037 = vmatprep.subr.mxu0 0.0
      %1038 = vmatpush1.msra.mxu0 0.0
      %1039 = vmatprep.subr.mxu0 0.0
      %1040 = vmatpush1.msra.mxu0 0.0
      %1041 = vmatprep.subr.mxu0 0.0
      %1042 = vmatpush1.msra.mxu0 0.0
      %1043 = vmatprep.subr.mxu0 0.0
      %1044 = vmatpush1.msra.mxu0 0.0
      %1045 = vmatprep.subr.mxu0 0.0
      %1046 = vmatpush1.msra.mxu0 0.0
      %1047 = vmatprep.subr.mxu0 0.0
      %1048 = vmatpush1.msra.mxu0 0.0
      %1049 = vmatprep.subr.mxu0 0.0
      %1050 = vmatpush1.msra.mxu0 0.0
      %1051 = vmatprep.subr.mxu0 0.0
      %1052 = vmatpush1.msra.mxu0 0.0
      %1053 = vmatprep.subr.mxu0 0.0
      %1054 = vmatpush1.msra.mxu0 0.0
      %1055 = vmatprep.subr.mxu0 0.0
      %1056 = vmatpush1.msra.mxu0 0.0
      %1057 = vmatprep.subr.mxu0 0.0
      %1058 = vmatpush1.msra.mxu0 0.0
      %1059 = vmatprep.subr.mxu0 0.0
      %1060 = vmatpush1.msra.mxu0 0.0
      %1061 = vmatprep.subr.mxu0 0.0
      %1062 = vmatpush1.msra.mxu0 0.0
      %1063 = vmatprep.subr.mxu0 0.0
      %1064 = vmatpush1.msra.mxu0 0.0
      %1065 = vmatprep.subr.mxu0 0.0
      %1066 = vmatpush1.msra.mxu0 0.0
      %1067 = vmatprep.subr.mxu0 0.0
      %1068 = vmatpush1.msra.mxu0 0.0
      %1069 = vmatprep.subr.mxu0 0.0
      %1070 = vmatpush1.msra.mxu0 0.0
      %1071 = vmatprep.subr.mxu0 0.0
      %1072 = vmatpush1.msra.mxu0 0.0
      %1073 = vmatprep.mubr.f32.mxu0 0.0
      %1074 = vmatmul.mubr.f32.gmra.mrb[0].mxu0 %v446
      %v1075 = vpop.f32.mrb[0].mxu0
      %v1076 = vadd.f32 0.0, %v1075
      %v1077 = vpop.f32.mrb[0].mxu0
      %1078 = vmatprep.mubr.f32.mxu0 0.0
      %1079 = vmatmul.mubr.f32.gmra.mrb[0].mxu0 %v449
      %v1080 = vpop.f32.mrb[0].mxu0
      %v1081 = vadd.f32 0.0, %v1080
      %v1082 = vpop.f32.mrb[0].mxu0
      %1083 = vmatprep.mubr.f32.mxu0 0.0
      %1084 = vmatmul.mubr.f32.gmra.mrb[0].mxu0 %v452
      %v1085 = vpop.f32.mrb[0].mxu0
      %v1086 = vadd.f32 0.0, %v1085
      %v1087 = vpop.f32.mrb[0].mxu0
      %1088 = vmatprep.mubr.f32.mxu0 0.0
      %1089 = vmatmul.mubr.f32.gmra.mrb[0].mxu0 %v455
      %v1090 = vpop.f32.mrb[0].mxu0
      %v1091 = vadd.f32 0.0, %v1090
      %v1092 = vpop.f32.mrb[0].mxu0
      %1093 = vmatprep.mubr.f32.mxu0 0.0
      %1094 = vmatmul.mubr.f32.gmra.mrb[0].mxu0 %v458
      %v1095 = vpop.f32.mrb[0].mxu0
      %v1096 = vadd.f32 0.0, %v1095
      %v1097 = vpop.f32.mrb[0].mxu0
      %1098 = vmatprep.mubr.f32.mxu0 0.0
      %1099 = vmatmul.mubr.f32.gmra.mrb[0].mxu0 %v461
      %v1100 = vpop.f32.mrb[0].mxu0
      %v1101 = vadd.f32 0.0, %v1100
      %v1102 = vpop.f32.mrb[0].mxu0
      %1103 = vmatprep.mubr.f32.mxu0 0.0
      %1104 = vmatmul.mubr.f32.gmra.mrb[0].mxu0 %v464
      %v1105 = vpop.f32.mrb[0].mxu0
      %v1106 = vadd.f32 0.0, %v1105
      %v1107 = vpop.f32.mrb[0].mxu0
      %1108 = vmatprep.mubr.f32.mxu0 0.0
      %1109 = vmatmul.mubr.f32.gmra.mrb[0].mxu0 %v467
      %v1110 = vpop.f32.mrb[0].mxu0
      %v1111 = vadd.f32 0.0, %v1110
      %v1112 = vpop.f32.mrb[0].mxu0
      %1113 = vmatprep.mubr.f32.mxu0 0.0
      %1114 = vmatmul.mubr.f32.gmra.mrb[0].mxu0 %v470
      %v1115 = vpop.f32.mrb[0].mxu0
      %v1116 = vadd.f32 0.0, %v1115
      %v1117 = vpop.f32.mrb[0].mxu0
      %1118 = vmatprep.mubr.f32.mxu0 0.0
      %1119 = vmatmul.mubr.f32.gmra.mrb[0].mxu0 %v473
      %v1120 = vpop.f32.mrb[0].mxu0
      %v1121 = vadd.f32 0.0, %v1120
      %v1122 = vpop.f32.mrb[0].mxu0
      %1123 = vmatprep.mubr.f32.mxu0 0.0
      %1124 = vmatmul.mubr.f32.gmra.mrb[0].mxu0 %v476
      %v1125 = vpop.f32.mrb[0].mxu0
      %v1126 = vadd.f32 0.0, %v1125
      %v1127 = vpop.f32.mrb[0].mxu0
      %1128 = vmatprep.mubr.f32.mxu0 0.0
      %1129 = vmatmul.mubr.f32.gmra.mrb[0].mxu0 %v479
      %v1130 = vpop.f32.mrb[0].mxu0
      %v1131 = vadd.f32 0.0, %v1130
      %v1132 = vpop.f32.mrb[0].mxu0
      %1133 = vmatprep.mubr.f32.mxu0 0.0
      %1134 = vmatmul.mubr.f32.gmra.mrb[0].mxu0 %v482
      %v1135 = vpop.f32.mrb[0].mxu0
      %v1136 = vadd.f32 0.0, %v1135
      %v1137 = vpop.f32.mrb[0].mxu0
      %1138 = vmatprep.mubr.f32.mxu0 0.0
      %1139 = vmatmul.mubr.f32.gmra.mrb[0].mxu0 %v485
      %v1140 = vpop.f32.mrb[0].mxu0
      %v1141 = vadd.f32 0.0, %v1140
      %v1142 = vpop.f32.mrb[0].mxu0
      %1143 = vmatprep.mubr.f32.mxu0 0.0
      %1144 = vmatmul.mubr.f32.gmra.mrb[0].mxu0 %v488
      %v1145 = vpop.f32.mrb[0].mxu0
      %v1146 = vadd.f32 0.0, %v1145
      %v1147 = vpop.f32.mrb[0].mxu0
      %1148 = vmatprep.mubr.f32.mxu0 0.0
      %1149 = vmatmul.mubr.f32.gmra.mrb[0].mxu0 %v491
      %v1150 = vpop.f32.mrb[0].mxu0
      %v1151 = vadd.f32 0.0, %v1150
      %v1152 = vpop.f32.mrb[0].mxu0
      %1153 = vdwg.mxu0
      %1154 = vset.pattern.permute.xlu0 2
      %1155 = vperm.xlu0 %1154, %v404
      %v1156 = vpop.permute.xlu0 %1155
      %1158 = vset.pattern.permute.xlu0 2
      %1159 = vperm.xlu0 %1158, %v405
      %v1160 = vpop.permute.xlu0 %1159
      %1162 = vset.pattern.permute.xlu0 2
      %1163 = vperm.xlu0 %1162, %v406
      %v1164 = vpop.permute.xlu0 %1163
      %1166 = vset.pattern.permute.xlu0 2
      %1167 = vperm.xlu0 %1166, %v407
      %v1168 = vpop.permute.xlu0 %1167
      %1170 = vset.pattern.permute.xlu0 2
      %1171 = vperm.xlu0 %1170, %v408
      %v1172 = vpop.permute.xlu0 %1171
      %1174 = vset.pattern.permute.xlu0 2
      %1175 = vperm.xlu0 %1174, %v409
      %v1176 = vpop.permute.xlu0 %1175
      %1178 = vset.pattern.permute.xlu0 2
      %1179 = vperm.xlu0 %1178, %v410
      %v1180 = vpop.permute.xlu0 %1179
      %1182 = vset.pattern.permute.xlu0 2
      %1183 = vperm.xlu0 %1182, %v411
      %v1184 = vpop.permute.xlu0 %1183
      %1186 = vset.pattern.permute.xlu0 2
      %1187 = vperm.xlu0 %1186, %v412
      %v1188 = vpop.permute.xlu0 %1187
      %1190 = vset.pattern.permute.xlu0 2
      %1191 = vperm.xlu0 %1190, %v413
      %v1192 = vpop.permute.xlu0 %1191
      %1194 = vset.pattern.permute.xlu0 2
      %1195 = vperm.xlu0 %1194, %v414
      %v1196 = vpop.permute.xlu0 %1195
      %1198 = vset.pattern.permute.xlu0 2
      %1199 = vperm.xlu0 %1198, %v415
      %v1200 = vpop.permute.xlu0 %1199
      %1202 = vset.pattern.permute.xlu0 2
      %1203 = vperm.xlu0 %1202, %v416
      %v1204 = vpop.permute.xlu0 %1203
      %1206 = vset.pattern.permute.xlu0 2
      %1207 = vperm.xlu0 %1206, %v417
      %v1208 = vpop.permute.xlu0 %1207
      %1210 = vset.pattern.permute.xlu0 2
      %1211 = vperm.xlu0 %1210, %v418
      %v1212 = vpop.permute.xlu0 %1211
      %1214 = vset.pattern.permute.xlu0 2
      %1215 = vperm.xlu0 %1214, %v419
      %v1216 = vpop.permute.xlu0 %1215
      %v1218 = vmul.f32 %v1156, %v1076
      %v1219 = vmul.f32 %v1160, %v1081
      %v1220 = vmul.f32 %v1164, %v1086
      %v1221 = vmul.f32 %v1168, %v1091
      %v1222 = vmul.f32 %v1172, %v1096
      %v1223 = vmul.f32 %v1176, %v1101
      %v1224 = vmul.f32 %v1180, %v1106
      %v1225 = vmul.f32 %v1184, %v1111
      %v1226 = vmul.f32 %v1188, %v1116
      %v1227 = vmul.f32 %v1192, %v1121
      %v1228 = vmul.f32 %v1196, %v1126
      %v1229 = vmul.f32 %v1200, %v1131
      %v1230 = vmul.f32 %v1204, %v1136
      %v1231 = vmul.f32 %v1208, %v1141
      %v1232 = vmul.f32 %v1212, %v1146
      %v1233 = vmul.f32 %v1216, %v1151
      %v1234 = vadd.f32 %v984, %v1218
      %v1235 = vadd.f32 %v985, %v1219
      %v1236 = vadd.f32 %v986, %v1220
      %v1237 = vadd.f32 %v987, %v1221
      %v1238 = vadd.f32 %v988, %v1222
      %v1239 = vadd.f32 %v989, %v1223
      %v1240 = vadd.f32 %v990, %v1224
      %v1241 = vadd.f32 %v991, %v1225
      %v1242 = vadd.f32 %v992, %v1226
      %v1243 = vadd.f32 %v993, %v1227
      %v1244 = vadd.f32 %v994, %v1228
      %v1245 = vadd.f32 %v995, %v1229
      %v1246 = vadd.f32 %v996, %v1230
      %v1247 = vadd.f32 %v997, %v1231
      %v1248 = vadd.f32 %v998, %v1232
      %v1249 = vadd.f32 %v999, %v1233
      %s1250 = scalar_lea.vmem %s376, 48
      %v1251 = vld [vmem:[%s1250] sm:$0xf]
      %v1252 = vld [vmem:[%s1250 + $0x4] sm:$0xf]
      %v1253 = vld [vmem:[%s1250 + $0x8] sm:$0xf]
      %v1254 = vld [vmem:[%s1250 + $0xc] sm:$0xf]
      %v1255 = vunpack.c.l.bf16 %v1251
      %v1256 = vunpack.c.l.bf16 %v1252
      %v1257 = vunpack.c.l.bf16 %v1253
      %v1258 = vunpack.c.l.bf16 %v1254
      %1259 = vmatprep.subr.mxu0 0.0
      %1260 = vmatpush1.msra.mxu0 %v1255
      %1261 = vmatprep.subr.mxu0 0.0
      %1262 = vmatpush1.msra.mxu0 %v1256
      %1263 = vmatprep.subr.mxu0 0.0
      %1264 = vmatpush1.msra.mxu0 %v1257
      %1265 = vmatprep.subr.mxu0 0.0
      %1266 = vmatpush1.msra.mxu0 %v1258
      %1267 = vmatprep.subr.mxu0 0.0
      %1268 = vmatpush1.msra.mxu0 0.0
      %1269 = vmatprep.subr.mxu0 0.0
      %1270 = vmatpush1.msra.mxu0 0.0
      %1271 = vmatprep.subr.mxu0 0.0
      %1272 = vmatpush1.msra.mxu0 0.0
      %1273 = vmatprep.subr.mxu0 0.0
      %1274 = vmatpush1.msra.mxu0 0.0
      %1275 = vmatprep.subr.mxu0 0.0
      %1276 = vmatpush1.msra.mxu0 0.0
      %1277 = vmatprep.subr.mxu0 0.0
      %1278 = vmatpush1.msra.mxu0 0.0
      %1279 = vmatprep.subr.mxu0 0.0
      %1280 = vmatpush1.msra.mxu0 0.0
      %1281 = vmatprep.subr.mxu0 0.0
      %1282 = vmatpush1.msra.mxu0 0.0
      %1283 = vmatprep.subr.mxu0 0.0
      %1284 = vmatpush1.msra.mxu0 0.0
      %1285 = vmatprep.subr.mxu0 0.0
      %1286 = vmatpush1.msra.mxu0 0.0
      %1287 = vmatprep.subr.mxu0 0.0
      %1288 = vmatpush1.msra.mxu0 0.0
      %1289 = vmatprep.subr.mxu0 0.0
      %1290 = vmatpush1.msra.mxu0 0.0
      %1291 = vmatprep.subr.mxu0 0.0
      %1292 = vmatpush1.msra.mxu0 0.0
      %1293 = vmatprep.subr.mxu0 0.0
      %1294 = vmatpush1.msra.mxu0 0.0
      %1295 = vmatprep.subr.mxu0 0.0
      %1296 = vmatpush1.msra.mxu0 0.0
      %1297 = vmatprep.subr.mxu0 0.0
      %1298 = vmatpush1.msra.mxu0 0.0
      %1299 = vmatprep.subr.mxu0 0.0
      %1300 = vmatpush1.msra.mxu0 0.0
      %1301 = vmatprep.subr.mxu0 0.0
      %1302 = vmatpush1.msra.mxu0 0.0
      %1303 = vmatprep.subr.mxu0 0.0
      %1304 = vmatpush1.msra.mxu0 0.0
      %1305 = vmatprep.subr.mxu0 0.0
      %1306 = vmatpush1.msra.mxu0 0.0
      %1307 = vmatprep.subr.mxu0 0.0
      %1308 = vmatpush1.msra.mxu0 0.0
      %1309 = vmatprep.subr.mxu0 0.0
      %1310 = vmatpush1.msra.mxu0 0.0
      %1311 = vmatprep.subr.mxu0 0.0
      %1312 = vmatpush1.msra.mxu0 0.0
      %1313 = vmatprep.subr.mxu0 0.0
      %1314 = vmatpush1.msra.mxu0 0.0
      %1315 = vmatprep.subr.mxu0 0.0
      %1316 = vmatpush1.msra.mxu0 0.0
      %1317 = vmatprep.subr.mxu0 0.0
      %1318 = vmatpush1.msra.mxu0 0.0
      %1319 = vmatprep.subr.mxu0 0.0
      %1320 = vmatpush1.msra.mxu0 0.0
      %1321 = vmatprep.subr.mxu0 0.0
      %1322 = vmatpush1.msra.mxu0 0.0
      %1323 = vmatprep.mubr.f32.mxu0 0.0
      %1324 = vmatmul.mubr.f32.gmra.mrb[0].mxu0 %v446
      %v1325 = vpop.f32.mrb[0].mxu0
      %v1326 = vadd.f32 0.0, %v1325
      %v1327 = vpop.f32.mrb[0].mxu0
      %1328 = vmatprep.mubr.f32.mxu0 0.0
      %1329 = vmatmul.mubr.f32.gmra.mrb[0].mxu0 %v449
      %v1330 = vpop.f32.mrb[0].mxu0
      %v1331 = vadd.f32 0.0, %v1330
      %v1332 = vpop.f32.mrb[0].mxu0
      %1333 = vmatprep.mubr.f32.mxu0 0.0
      %1334 = vmatmul.mubr.f32.gmra.mrb[0].mxu0 %v452
      %v1335 = vpop.f32.mrb[0].mxu0
      %v1336 = vadd.f32 0.0, %v1335
      %v1337 = vpop.f32.mrb[0].mxu0
      %1338 = vmatprep.mubr.f32.mxu0 0.0
      %1339 = vmatmul.mubr.f32.gmra.mrb[0].mxu0 %v455
      %v1340 = vpop.f32.mrb[0].mxu0
      %v1341 = vadd.f32 0.0, %v1340
      %v1342 = vpop.f32.mrb[0].mxu0
      %1343 = vmatprep.mubr.f32.mxu0 0.0
      %1344 = vmatmul.mubr.f32.gmra.mrb[0].mxu0 %v458
      %v1345 = vpop.f32.mrb[0].mxu0
      %v1346 = vadd.f32 0.0, %v1345
      %v1347 = vpop.f32.mrb[0].mxu0
      %1348 = vmatprep.mubr.f32.mxu0 0.0
      %1349 = vmatmul.mubr.f32.gmra.mrb[0].mxu0 %v461
      %v1350 = vpop.f32.mrb[0].mxu0
      %v1351 = vadd.f32 0.0, %v1350
      %v1352 = vpop.f32.mrb[0].mxu0
      %1353 = vmatprep.mubr.f32.mxu0 0.0
      %1354 = vmatmul.mubr.f32.gmra.mrb[0].mxu0 %v464
      %v1355 = vpop.f32.mrb[0].mxu0
      %v1356 = vadd.f32 0.0, %v1355
      %v1357 = vpop.f32.mrb[0].mxu0
      %1358 = vmatprep.mubr.f32.mxu0 0.0
      %1359 = vmatmul.mubr.f32.gmra.mrb[0].mxu0 %v467
      %v1360 = vpop.f32.mrb[0].mxu0
      %v1361 = vadd.f32 0.0, %v1360
      %v1362 = vpop.f32.mrb[0].mxu0
      %1363 = vmatprep.mubr.f32.mxu0 0.0
      %1364 = vmatmul.mubr.f32.gmra.mrb[0].mxu0 %v470
      %v1365 = vpop.f32.mrb[0].mxu0
      %v1366 = vadd.f32 0.0, %v1365
      %v1367 = vpop.f32.mrb[0].mxu0
      %1368 = vmatprep.mubr.f32.mxu0 0.0
      %1369 = vmatmul.mubr.f32.gmra.mrb[0].mxu0 %v473
      %v1370 = vpop.f32.mrb[0].mxu0
      %v1371 = vadd.f32 0.0, %v1370
      %v1372 = vpop.f32.mrb[0].mxu0
      %1373 = vmatprep.mubr.f32.mxu0 0.0
      %1374 = vmatmul.mubr.f32.gmra.mrb[0].mxu0 %v476
      %v1375 = vpop.f32.mrb[0].mxu0
      %v1376 = vadd.f32 0.0, %v1375
      %v1377 = vpop.f32.mrb[0].mxu0
      %1378 = vmatprep.mubr.f32.mxu0 0.0
      %1379 = vmatmul.mubr.f32.gmra.mrb[0].mxu0 %v479
      %v1380 = vpop.f32.mrb[0].mxu0
      %v1381 = vadd.f32 0.0, %v1380
      %v1382 = vpop.f32.mrb[0].mxu0
      %1383 = vmatprep.mubr.f32.mxu0 0.0
      %1384 = vmatmul.mubr.f32.gmra.mrb[0].mxu0 %v482
      %v1385 = vpop.f32.mrb[0].mxu0
      %v1386 = vadd.f32 0.0, %v1385
      %v1387 = vpop.f32.mrb[0].mxu0
      %1388 = vmatprep.mubr.f32.mxu0 0.0
      %1389 = vmatmul.mubr.f32.gmra.mrb[0].mxu0 %v485
      %v1390 = vpop.f32.mrb[0].mxu0
      %v1391 = vadd.f32 0.0, %v1390
      %v1392 = vpop.f32.mrb[0].mxu0
      %1393 = vmatprep.mubr.f32.mxu0 0.0
      %1394 = vmatmul.mubr.f32.gmra.mrb[0].mxu0 %v488
      %v1395 = vpop.f32.mrb[0].mxu0
      %v1396 = vadd.f32 0.0, %v1395
      %v1397 = vpop.f32.mrb[0].mxu0
      %1398 = vmatprep.mubr.f32.mxu0 0.0
      %1399 = vmatmul.mubr.f32.gmra.mrb[0].mxu0 %v491
      %v1400 = vpop.f32.mrb[0].mxu0
      %v1401 = vadd.f32 0.0, %v1400
      %v1402 = vpop.f32.mrb[0].mxu0
      %1403 = vdwg.mxu0
      %1404 = vset.pattern.permute.xlu0 3
      %1405 = vperm.xlu0 %1404, %v404
      %v1406 = vpop.permute.xlu0 %1405
      %1408 = vset.pattern.permute.xlu0 3
      %1409 = vperm.xlu0 %1408, %v405
      %v1410 = vpop.permute.xlu0 %1409
      %1412 = vset.pattern.permute.xlu0 3
      %1413 = vperm.xlu0 %1412, %v406
      %v1414 = vpop.permute.xlu0 %1413
      %1416 = vset.pattern.permute.xlu0 3
      %1417 = vperm.xlu0 %1416, %v407
      %v1418 = vpop.permute.xlu0 %1417
      %1420 = vset.pattern.permute.xlu0 3
      %1421 = vperm.xlu0 %1420, %v408
      %v1422 = vpop.permute.xlu0 %1421
      %1424 = vset.pattern.permute.xlu0 3
      %1425 = vperm.xlu0 %1424, %v409
      %v1426 = vpop.permute.xlu0 %1425
      %1428 = vset.pattern.permute.xlu0 3
      %1429 = vperm.xlu0 %1428, %v410
      %v1430 = vpop.permute.xlu0 %1429
      %1432 = vset.pattern.permute.xlu0 3
      %1433 = vperm.xlu0 %1432, %v411
      %v1434 = vpop.permute.xlu0 %1433
      %1436 = vset.pattern.permute.xlu0 3
      %1437 = vperm.xlu0 %1436, %v412
      %v1438 = vpop.permute.xlu0 %1437
      %1440 = vset.pattern.permute.xlu0 3
      %1441 = vperm.xlu0 %1440, %v413
      %v1442 = vpop.permute.xlu0 %1441
      %1444 = vset.pattern.permute.xlu0 3
      %1445 = vperm.xlu0 %1444, %v414
      %v1446 = vpop.permute.xlu0 %1445
      %1448 = vset.pattern.permute.xlu0 3
      %1449 = vperm.xlu0 %1448, %v415
      %v1450 = vpop.permute.xlu0 %1449
      %1452 = vset.pattern.permute.xlu0 3
      %1453 = vperm.xlu0 %1452, %v416
      %v1454 = vpop.permute.xlu0 %1453
      %1456 = vset.pattern.permute.xlu0 3
      %1457 = vperm.xlu0 %1456, %v417
      %v1458 = vpop.permute.xlu0 %1457
      %1460 = vset.pattern.permute.xlu0 3
      %1461 = vperm.xlu0 %1460, %v418
      %v1462 = vpop.permute.xlu0 %1461
      %1464 = vset.pattern.permute.xlu0 3
      %1465 = vperm.xlu0 %1464, %v419
      %v1466 = vpop.permute.xlu0 %1465
      %v1468 = vmul.f32 %v1406, %v1326
      %v1469 = vmul.f32 %v1410, %v1331
      %v1470 = vmul.f32 %v1414, %v1336
      %v1471 = vmul.f32 %v1418, %v1341
      %v1472 = vmul.f32 %v1422, %v1346
      %v1473 = vmul.f32 %v1426, %v1351
      %v1474 = vmul.f32 %v1430, %v1356
      %v1475 = vmul.f32 %v1434, %v1361
      %v1476 = vmul.f32 %v1438, %v1366
      %v1477 = vmul.f32 %v1442, %v1371
      %v1478 = vmul.f32 %v1446, %v1376
      %v1479 = vmul.f32 %v1450, %v1381
      %v1480 = vmul.f32 %v1454, %v1386
      %v1481 = vmul.f32 %v1458, %v1391
      %v1482 = vmul.f32 %v1462, %v1396
      %v1483 = vmul.f32 %v1466, %v1401
      %v1484 = vadd.f32 %v1234, %v1468
      %v1485 = vadd.f32 %v1235, %v1469
      %v1486 = vadd.f32 %v1236, %v1470
      %v1487 = vadd.f32 %v1237, %v1471
      %v1488 = vadd.f32 %v1238, %v1472
      %v1489 = vadd.f32 %v1239, %v1473
      %v1490 = vadd.f32 %v1240, %v1474
      %v1491 = vadd.f32 %v1241, %v1475
      %v1492 = vadd.f32 %v1242, %v1476
      %v1493 = vadd.f32 %v1243, %v1477
      %v1494 = vadd.f32 %v1244, %v1478
      %v1495 = vadd.f32 %v1245, %v1479
      %v1496 = vadd.f32 %v1246, %v1480
      %v1497 = vadd.f32 %v1247, %v1481
      %v1498 = vadd.f32 %v1248, %v1482
      %v1499 = vadd.f32 %v1249, %v1483
      %s1500 = scalar_lea.vmem %s376, 64
      %v1501 = vld [vmem:[%s1500] sm:$0xf]
      %v1502 = vld [vmem:[%s1500 + $0x4] sm:$0xf]
      %v1503 = vld [vmem:[%s1500 + $0x8] sm:$0xf]
      %v1504 = vld [vmem:[%s1500 + $0xc] sm:$0xf]
      %v1505 = vunpack.c.l.bf16 %v1501
      %v1506 = vunpack.c.l.bf16 %v1502
      %v1507 = vunpack.c.l.bf16 %v1503
      %v1508 = vunpack.c.l.bf16 %v1504
      %1509 = vmatprep.subr.mxu0 0.0
      %1510 = vmatpush1.msra.mxu0 %v1505
      %1511 = vmatprep.subr.mxu0 0.0
      %1512 = vmatpush1.msra.mxu0 %v1506
      %1513 = vmatprep.subr.mxu0 0.0
      %1514 = vmatpush1.msra.mxu0 %v1507
      %1515 = vmatprep.subr.mxu0 0.0
      %1516 = vmatpush1.msra.mxu0 %v1508
      %1517 = vmatprep.subr.mxu0 0.0
      %1518 = vmatpush1.msra.mxu0 0.0
      %1519 = vmatprep.subr.mxu0 0.0
      %1520 = vmatpush1.msra.mxu0 0.0
      %1521 = vmatprep.subr.mxu0 0.0
      %1522 = vmatpush1.msra.mxu0 0.0
      %1523 = vmatprep.subr.mxu0 0.0
      %1524 = vmatpush1.msra.mxu0 0.0
      %1525 = vmatprep.subr.mxu0 0.0
      %1526 = vmatpush1.msra.mxu0 0.0
      %1527 = vmatprep.subr.mxu0 0.0
      %1528 = vmatpush1.msra.mxu0 0.0
      %1529 = vmatprep.subr.mxu0 0.0
      %1530 = vmatpush1.msra.mxu0 0.0
      %1531 = vmatprep.subr.mxu0 0.0
      %1532 = vmatpush1.msra.mxu0 0.0
      %1533 = vmatprep.subr.mxu0 0.0
      %1534 = vmatpush1.msra.mxu0 0.0
      %1535 = vmatprep.subr.mxu0 0.0
      %1536 = vmatpush1.msra.mxu0 0.0
      %1537 = vmatprep.subr.mxu0 0.0
      %1538 = vmatpush1.msra.mxu0 0.0
      %1539 = vmatprep.subr.mxu0 0.0
      %1540 = vmatpush1.msra.mxu0 0.0
      %1541 = vmatprep.subr.mxu0 0.0
      %1542 = vmatpush1.msra.mxu0 0.0
      %1543 = vmatprep.subr.mxu0 0.0
      %1544 = vmatpush1.msra.mxu0 0.0
      %1545 = vmatprep.subr.mxu0 0.0
      %1546 = vmatpush1.msra.mxu0 0.0
      %1547 = vmatprep.subr.mxu0 0.0
      %1548 = vmatpush1.msra.mxu0 0.0
      %1549 = vmatprep.subr.mxu0 0.0
      %1550 = vmatpush1.msra.mxu0 0.0
      %1551 = vmatprep.subr.mxu0 0.0
      %1552 = vmatpush1.msra.mxu0 0.0
      %1553 = vmatprep.subr.mxu0 0.0
      %1554 = vmatpush1.msra.mxu0 0.0
      %1555 = vmatprep.subr.mxu0 0.0
      %1556 = vmatpush1.msra.mxu0 0.0
      %1557 = vmatprep.subr.mxu0 0.0
      %1558 = vmatpush1.msra.mxu0 0.0
      %1559 = vmatprep.subr.mxu0 0.0
      %1560 = vmatpush1.msra.mxu0 0.0
      %1561 = vmatprep.subr.mxu0 0.0
      %1562 = vmatpush1.msra.mxu0 0.0
      %1563 = vmatprep.subr.mxu0 0.0
      %1564 = vmatpush1.msra.mxu0 0.0
      %1565 = vmatprep.subr.mxu0 0.0
      %1566 = vmatpush1.msra.mxu0 0.0
      %1567 = vmatprep.subr.mxu0 0.0
      %1568 = vmatpush1.msra.mxu0 0.0
      %1569 = vmatprep.subr.mxu0 0.0
      %1570 = vmatpush1.msra.mxu0 0.0
      %1571 = vmatprep.subr.mxu0 0.0
      %1572 = vmatpush1.msra.mxu0 0.0
      %1573 = vmatprep.mubr.f32.mxu0 0.0
      %1574 = vmatmul.mubr.f32.gmra.mrb[0].mxu0 %v446
      %v1575 = vpop.f32.mrb[0].mxu0
      %v1576 = vadd.f32 0.0, %v1575
      %v1577 = vpop.f32.mrb[0].mxu0
      %1578 = vmatprep.mubr.f32.mxu0 0.0
      %1579 = vmatmul.mubr.f32.gmra.mrb[0].mxu0 %v449
      %v1580 = vpop.f32.mrb[0].mxu0
      %v1581 = vadd.f32 0.0, %v1580
      %v1582 = vpop.f32.mrb[0].mxu0
      %1583 = vmatprep.mubr.f32.mxu0 0.0
      %1584 = vmatmul.mubr.f32.gmra.mrb[0].mxu0 %v452
      %v1585 = vpop.f32.mrb[0].mxu0
      %v1586 = vadd.f32 0.0, %v1585
      %v1587 = vpop.f32.mrb[0].mxu0
      %1588 = vmatprep.mubr.f32.mxu0 0.0
      %1589 = vmatmul.mubr.f32.gmra.mrb[0].mxu0 %v455
      %v1590 = vpop.f32.mrb[0].mxu0
      %v1591 = vadd.f32 0.0, %v1590
      %v1592 = vpop.f32.mrb[0].mxu0
      %1593 = vmatprep.mubr.f32.mxu0 0.0
      %1594 = vmatmul.mubr.f32.gmra.mrb[0].mxu0 %v458
      %v1595 = vpop.f32.mrb[0].mxu0
      %v1596 = vadd.f32 0.0, %v1595
      %v1597 = vpop.f32.mrb[0].mxu0
      %1598 = vmatprep.mubr.f32.mxu0 0.0
      %1599 = vmatmul.mubr.f32.gmra.mrb[0].mxu0 %v461
      %v1600 = vpop.f32.mrb[0].mxu0
      %v1601 = vadd.f32 0.0, %v1600
      %v1602 = vpop.f32.mrb[0].mxu0
      %1603 = vmatprep.mubr.f32.mxu0 0.0
      %1604 = vmatmul.mubr.f32.gmra.mrb[0].mxu0 %v464
      %v1605 = vpop.f32.mrb[0].mxu0
      %v1606 = vadd.f32 0.0, %v1605
      %v1607 = vpop.f32.mrb[0].mxu0
      %1608 = vmatprep.mubr.f32.mxu0 0.0
      %1609 = vmatmul.mubr.f32.gmra.mrb[0].mxu0 %v467
      %v1610 = vpop.f32.mrb[0].mxu0
      %v1611 = vadd.f32 0.0, %v1610
      %v1612 = vpop.f32.mrb[0].mxu0
      %1613 = vmatprep.mubr.f32.mxu0 0.0
      %1614 = vmatmul.mubr.f32.gmra.mrb[0].mxu0 %v470
      %v1615 = vpop.f32.mrb[0].mxu0
      %v1616 = vadd.f32 0.0, %v1615
      %v1617 = vpop.f32.mrb[0].mxu0
      %1618 = vmatprep.mubr.f32.mxu0 0.0
      %1619 = vmatmul.mubr.f32.gmra.mrb[0].mxu0 %v473
      %v1620 = vpop.f32.mrb[0].mxu0
      %v1621 = vadd.f32 0.0, %v1620
      %v1622 = vpop.f32.mrb[0].mxu0
      %1623 = vmatprep.mubr.f32.mxu0 0.0
      %1624 = vmatmul.mubr.f32.gmra.mrb[0].mxu0 %v476
      %v1625 = vpop.f32.mrb[0].mxu0
      %v1626 = vadd.f32 0.0, %v1625
      %v1627 = vpop.f32.mrb[0].mxu0
      %1628 = vmatprep.mubr.f32.mxu0 0.0
      %1629 = vmatmul.mubr.f32.gmra.mrb[0].mxu0 %v479
      %v1630 = vpop.f32.mrb[0].mxu0
      %v1631 = vadd.f32 0.0, %v1630
      %v1632 = vpop.f32.mrb[0].mxu0
      %1633 = vmatprep.mubr.f32.mxu0 0.0
      %1634 = vmatmul.mubr.f32.gmra.mrb[0].mxu0 %v482
      %v1635 = vpop.f32.mrb[0].mxu0
      %v1636 = vadd.f32 0.0, %v1635
      %v1637 = vpop.f32.mrb[0].mxu0
      %1638 = vmatprep.mubr.f32.mxu0 0.0
      %1639 = vmatmul.mubr.f32.gmra.mrb[0].mxu0 %v485
      %v1640 = vpop.f32.mrb[0].mxu0
      %v1641 = vadd.f32 0.0, %v1640
      %v1642 = vpop.f32.mrb[0].mxu0
      %1643 = vmatprep.mubr.f32.mxu0 0.0
      %1644 = vmatmul.mubr.f32.gmra.mrb[0].mxu0 %v488
      %v1645 = vpop.f32.mrb[0].mxu0
      %v1646 = vadd.f32 0.0, %v1645
      %v1647 = vpop.f32.mrb[0].mxu0
      %1648 = vmatprep.mubr.f32.mxu0 0.0
      %1649 = vmatmul.mubr.f32.gmra.mrb[0].mxu0 %v491
      %v1650 = vpop.f32.mrb[0].mxu0
      %v1651 = vadd.f32 0.0, %v1650
      %v1652 = vpop.f32.mrb[0].mxu0
      %1653 = vdwg.mxu0
      %1654 = vset.pattern.permute.xlu0 4
      %1655 = vperm.xlu0 %1654, %v404
      %v1656 = vpop.permute.xlu0 %1655
      %1658 = vset.pattern.permute.xlu0 4
      %1659 = vperm.xlu0 %1658, %v405
      %v1660 = vpop.permute.xlu0 %1659
      %1662 = vset.pattern.permute.xlu0 4
      %1663 = vperm.xlu0 %1662, %v406
      %v1664 = vpop.permute.xlu0 %1663
      %1666 = vset.pattern.permute.xlu0 4
      %1667 = vperm.xlu0 %1666, %v407
      %v1668 = vpop.permute.xlu0 %1667
      %1670 = vset.pattern.permute.xlu0 4
      %1671 = vperm.xlu0 %1670, %v408
      %v1672 = vpop.permute.xlu0 %1671
      %1674 = vset.pattern.permute.xlu0 4
      %1675 = vperm.xlu0 %1674, %v409
      %v1676 = vpop.permute.xlu0 %1675
      %1678 = vset.pattern.permute.xlu0 4
      %1679 = vperm.xlu0 %1678, %v410
      %v1680 = vpop.permute.xlu0 %1679
      %1682 = vset.pattern.permute.xlu0 4
      %1683 = vperm.xlu0 %1682, %v411
      %v1684 = vpop.permute.xlu0 %1683
      %1686 = vset.pattern.permute.xlu0 4
      %1687 = vperm.xlu0 %1686, %v412
      %v1688 = vpop.permute.xlu0 %1687
      %1690 = vset.pattern.permute.xlu0 4
      %1691 = vperm.xlu0 %1690, %v413
      %v1692 = vpop.permute.xlu0 %1691
      %1694 = vset.pattern.permute.xlu0 4
      %1695 = vperm.xlu0 %1694, %v414
      %v1696 = vpop.permute.xlu0 %1695
      %1698 = vset.pattern.permute.xlu0 4
      %1699 = vperm.xlu0 %1698, %v415
      %v1700 = vpop.permute.xlu0 %1699
      %1702 = vset.pattern.permute.xlu0 4
      %1703 = vperm.xlu0 %1702, %v416
      %v1704 = vpop.permute.xlu0 %1703
      %1706 = vset.pattern.permute.xlu0 4
      %1707 = vperm.xlu0 %1706, %v417
      %v1708 = vpop.permute.xlu0 %1707
      %1710 = vset.pattern.permute.xlu0 4
      %1711 = vperm.xlu0 %1710, %v418
      %v1712 = vpop.permute.xlu0 %1711
      %1714 = vset.pattern.permute.xlu0 4
      %1715 = vperm.xlu0 %1714, %v419
      %v1716 = vpop.permute.xlu0 %1715
      %v1718 = vmul.f32 %v1656, %v1576
      %v1719 = vmul.f32 %v1660, %v1581
      %v1720 = vmul.f32 %v1664, %v1586
      %v1721 = vmul.f32 %v1668, %v1591
      %v1722 = vmul.f32 %v1672, %v1596
      %v1723 = vmul.f32 %v1676, %v1601
      %v1724 = vmul.f32 %v1680, %v1606
      %v1725 = vmul.f32 %v1684, %v1611
      %v1726 = vmul.f32 %v1688, %v1616
      %v1727 = vmul.f32 %v1692, %v1621
      %v1728 = vmul.f32 %v1696, %v1626
      %v1729 = vmul.f32 %v1700, %v1631
      %v1730 = vmul.f32 %v1704, %v1636
      %v1731 = vmul.f32 %v1708, %v1641
      %v1732 = vmul.f32 %v1712, %v1646
      %v1733 = vmul.f32 %v1716, %v1651
      %v1734 = vadd.f32 %v1484, %v1718
      %v1735 = vadd.f32 %v1485, %v1719
      %v1736 = vadd.f32 %v1486, %v1720
      %v1737 = vadd.f32 %v1487, %v1721
      %v1738 = vadd.f32 %v1488, %v1722
      %v1739 = vadd.f32 %v1489, %v1723
      %v1740 = vadd.f32 %v1490, %v1724
      %v1741 = vadd.f32 %v1491, %v1725
      %v1742 = vadd.f32 %v1492, %v1726
      %v1743 = vadd.f32 %v1493, %v1727
      %v1744 = vadd.f32 %v1494, %v1728
      %v1745 = vadd.f32 %v1495, %v1729
      %v1746 = vadd.f32 %v1496, %v1730
      %v1747 = vadd.f32 %v1497, %v1731
      %v1748 = vadd.f32 %v1498, %v1732
      %v1749 = vadd.f32 %v1499, %v1733
      %s1750 = scalar_lea.vmem %s376, 80
      %v1751 = vld [vmem:[%s1750] sm:$0xf]
      %v1752 = vld [vmem:[%s1750 + $0x4] sm:$0xf]
      %v1753 = vld [vmem:[%s1750 + $0x8] sm:$0xf]
      %v1754 = vld [vmem:[%s1750 + $0xc] sm:$0xf]
      %v1755 = vunpack.c.l.bf16 %v1751
      %v1756 = vunpack.c.l.bf16 %v1752
      %v1757 = vunpack.c.l.bf16 %v1753
      %v1758 = vunpack.c.l.bf16 %v1754
      %1759 = vmatprep.subr.mxu0 0.0
      %1760 = vmatpush1.msra.mxu0 %v1755
      %1761 = vmatprep.subr.mxu0 0.0
      %1762 = vmatpush1.msra.mxu0 %v1756
      %1763 = vmatprep.subr.mxu0 0.0
      %1764 = vmatpush1.msra.mxu0 %v1757
      %1765 = vmatprep.subr.mxu0 0.0
      %1766 = vmatpush1.msra.mxu0 %v1758
      %1767 = vmatprep.subr.mxu0 0.0
      %1768 = vmatpush1.msra.mxu0 0.0
      %1769 = vmatprep.subr.mxu0 0.0
      %1770 = vmatpush1.msra.mxu0 0.0
      %1771 = vmatprep.subr.mxu0 0.0
      %1772 = vmatpush1.msra.mxu0 0.0
      %1773 = vmatprep.subr.mxu0 0.0
      %1774 = vmatpush1.msra.mxu0 0.0
      %1775 = vmatprep.subr.mxu0 0.0
      %1776 = vmatpush1.msra.mxu0 0.0
      %1777 = vmatprep.subr.mxu0 0.0
      %1778 = vmatpush1.msra.mxu0 0.0
      %1779 = vmatprep.subr.mxu0 0.0
      %1780 = vmatpush1.msra.mxu0 0.0
      %1781 = vmatprep.subr.mxu0 0.0
      %1782 = vmatpush1.msra.mxu0 0.0
      %1783 = vmatprep.subr.mxu0 0.0
      %1784 = vmatpush1.msra.mxu0 0.0
      %1785 = vmatprep.subr.mxu0 0.0
      %1786 = vmatpush1.msra.mxu0 0.0
      %1787 = vmatprep.subr.mxu0 0.0
      %1788 = vmatpush1.msra.mxu0 0.0
      %1789 = vmatprep.subr.mxu0 0.0
      %1790 = vmatpush1.msra.mxu0 0.0
      %1791 = vmatprep.subr.mxu0 0.0
      %1792 = vmatpush1.msra.mxu0 0.0
      %1793 = vmatprep.subr.mxu0 0.0
      %1794 = vmatpush1.msra.mxu0 0.0
      %1795 = vmatprep.subr.mxu0 0.0
      %1796 = vmatpush1.msra.mxu0 0.0
      %1797 = vmatprep.subr.mxu0 0.0
      %1798 = vmatpush1.msra.mxu0 0.0
      %1799 = vmatprep.subr.mxu0 0.0
      %1800 = vmatpush1.msra.mxu0 0.0
      %1801 = vmatprep.subr.mxu0 0.0
      %1802 = vmatpush1.msra.mxu0 0.0
      %1803 = vmatprep.subr.mxu0 0.0
      %1804 = vmatpush1.msra.mxu0 0.0
      %1805 = vmatprep.subr.mxu0 0.0
      %1806 = vmatpush1.msra.mxu0 0.0
      %1807 = vmatprep.subr.mxu0 0.0
      %1808 = vmatpush1.msra.mxu0 0.0
      %1809 = vmatprep.subr.mxu0 0.0
      %1810 = vmatpush1.msra.mxu0 0.0
      %1811 = vmatprep.subr.mxu0 0.0
      %1812 = vmatpush1.msra.mxu0 0.0
      %1813 = vmatprep.subr.mxu0 0.0
      %1814 = vmatpush1.msra.mxu0 0.0
      %1815 = vmatprep.subr.mxu0 0.0
      %1816 = vmatpush1.msra.mxu0 0.0
      %1817 = vmatprep.subr.mxu0 0.0
      %1818 = vmatpush1.msra.mxu0 0.0
      %1819 = vmatprep.subr.mxu0 0.0
      %1820 = vmatpush1.msra.mxu0 0.0
      %1821 = vmatprep.subr.mxu0 0.0
      %1822 = vmatpush1.msra.mxu0 0.0
      %1823 = vmatprep.mubr.f32.mxu0 0.0
      %1824 = vmatmul.mubr.f32.gmra.mrb[0].mxu0 %v446
      %v1825 = vpop.f32.mrb[0].mxu0
      %v1826 = vadd.f32 0.0, %v1825
      %v1827 = vpop.f32.mrb[0].mxu0
      %1828 = vmatprep.mubr.f32.mxu0 0.0
      %1829 = vmatmul.mubr.f32.gmra.mrb[0].mxu0 %v449
      %v1830 = vpop.f32.mrb[0].mxu0
      %v1831 = vadd.f32 0.0, %v1830
      %v1832 = vpop.f32.mrb[0].mxu0
      %1833 = vmatprep.mubr.f32.mxu0 0.0
      %1834 = vmatmul.mubr.f32.gmra.mrb[0].mxu0 %v452
      %v1835 = vpop.f32.mrb[0].mxu0
      %v1836 = vadd.f32 0.0, %v1835
      %v1837 = vpop.f32.mrb[0].mxu0
      %1838 = vmatprep.mubr.f32.mxu0 0.0
      %1839 = vmatmul.mubr.f32.gmra.mrb[0].mxu0 %v455
      %v1840 = vpop.f32.mrb[0].mxu0
      %v1841 = vadd.f32 0.0, %v1840
      %v1842 = vpop.f32.mrb[0].mxu0
      %1843 = vmatprep.mubr.f32.mxu0 0.0
      %1844 = vmatmul.mubr.f32.gmra.mrb[0].mxu0 %v458
      %v1845 = vpop.f32.mrb[0].mxu0
      %v1846 = vadd.f32 0.0, %v1845
      %v1847 = vpop.f32.mrb[0].mxu0
      %1848 = vmatprep.mubr.f32.mxu0 0.0
      %1849 = vmatmul.mubr.f32.gmra.mrb[0].mxu0 %v461
      %v1850 = vpop.f32.mrb[0].mxu0
      %v1851 = vadd.f32 0.0, %v1850
      %v1852 = vpop.f32.mrb[0].mxu0
      %1853 = vmatprep.mubr.f32.mxu0 0.0
      %1854 = vmatmul.mubr.f32.gmra.mrb[0].mxu0 %v464
      %v1855 = vpop.f32.mrb[0].mxu0
      %v1856 = vadd.f32 0.0, %v1855
      %v1857 = vpop.f32.mrb[0].mxu0
      %1858 = vmatprep.mubr.f32.mxu0 0.0
      %1859 = vmatmul.mubr.f32.gmra.mrb[0].mxu0 %v467
      %v1860 = vpop.f32.mrb[0].mxu0
      %v1861 = vadd.f32 0.0, %v1860
      %v1862 = vpop.f32.mrb[0].mxu0
      %1863 = vmatprep.mubr.f32.mxu0 0.0
      %1864 = vmatmul.mubr.f32.gmra.mrb[0].mxu0 %v470
      %v1865 = vpop.f32.mrb[0].mxu0
      %v1866 = vadd.f32 0.0, %v1865
      %v1867 = vpop.f32.mrb[0].mxu0
      %1868 = vmatprep.mubr.f32.mxu0 0.0
      %1869 = vmatmul.mubr.f32.gmra.mrb[0].mxu0 %v473
      %v1870 = vpop.f32.mrb[0].mxu0
      %v1871 = vadd.f32 0.0, %v1870
      %v1872 = vpop.f32.mrb[0].mxu0
      %1873 = vmatprep.mubr.f32.mxu0 0.0
      %1874 = vmatmul.mubr.f32.gmra.mrb[0].mxu0 %v476
      %v1875 = vpop.f32.mrb[0].mxu0
      %v1876 = vadd.f32 0.0, %v1875
      %v1877 = vpop.f32.mrb[0].mxu0
      %1878 = vmatprep.mubr.f32.mxu0 0.0
      %1879 = vmatmul.mubr.f32.gmra.mrb[0].mxu0 %v479
      %v1880 = vpop.f32.mrb[0].mxu0
      %v1881 = vadd.f32 0.0, %v1880
      %v1882 = vpop.f32.mrb[0].mxu0
      %1883 = vmatprep.mubr.f32.mxu0 0.0
      %1884 = vmatmul.mubr.f32.gmra.mrb[0].mxu0 %v482
      %v1885 = vpop.f32.mrb[0].mxu0
      %v1886 = vadd.f32 0.0, %v1885
      %v1887 = vpop.f32.mrb[0].mxu0
      %1888 = vmatprep.mubr.f32.mxu0 0.0
      %1889 = vmatmul.mubr.f32.gmra.mrb[0].mxu0 %v485
      %v1890 = vpop.f32.mrb[0].mxu0
      %v1891 = vadd.f32 0.0, %v1890
      %v1892 = vpop.f32.mrb[0].mxu0
      %1893 = vmatprep.mubr.f32.mxu0 0.0
      %1894 = vmatmul.mubr.f32.gmra.mrb[0].mxu0 %v488
      %v1895 = vpop.f32.mrb[0].mxu0
      %v1896 = vadd.f32 0.0, %v1895
      %v1897 = vpop.f32.mrb[0].mxu0
      %1898 = vmatprep.mubr.f32.mxu0 0.0
      %1899 = vmatmul.mubr.f32.gmra.mrb[0].mxu0 %v491
      %v1900 = vpop.f32.mrb[0].mxu0
      %v1901 = vadd.f32 0.0, %v1900
      %v1902 = vpop.f32.mrb[0].mxu0
      %1903 = vdwg.mxu0
      %1904 = vset.pattern.permute.xlu0 5
      %1905 = vperm.xlu0 %1904, %v404
      %v1906 = vpop.permute.xlu0 %1905
      %1908 = vset.pattern.permute.xlu0 5
      %1909 = vperm.xlu0 %1908, %v405
      %v1910 = vpop.permute.xlu0 %1909
      %1912 = vset.pattern.permute.xlu0 5
      %1913 = vperm.xlu0 %1912, %v406
      %v1914 = vpop.permute.xlu0 %1913
      %1916 = vset.pattern.permute.xlu0 5
      %1917 = vperm.xlu0 %1916, %v407
      %v1918 = vpop.permute.xlu0 %1917
      %1920 = vset.pattern.permute.xlu0 5
      %1921 = vperm.xlu0 %1920, %v408
      %v1922 = vpop.permute.xlu0 %1921
      %1924 = vset.pattern.permute.xlu0 5
      %1925 = vperm.xlu0 %1924, %v409
      %v1926 = vpop.permute.xlu0 %1925
      %1928 = vset.pattern.permute.xlu0 5
      %1929 = vperm.xlu0 %1928, %v410
      %v1930 = vpop.permute.xlu0 %1929
      %1932 = vset.pattern.permute.xlu0 5
      %1933 = vperm.xlu0 %1932, %v411
      %v1934 = vpop.permute.xlu0 %1933
      %1936 = vset.pattern.permute.xlu0 5
      %1937 = vperm.xlu0 %1936, %v412
      %v1938 = vpop.permute.xlu0 %1937
      %1940 = vset.pattern.permute.xlu0 5
      %1941 = vperm.xlu0 %1940, %v413
      %v1942 = vpop.permute.xlu0 %1941
      %1944 = vset.pattern.permute.xlu0 5
      %1945 = vperm.xlu0 %1944, %v414
      %v1946 = vpop.permute.xlu0 %1945
      %1948 = vset.pattern.permute.xlu0 5
      %1949 = vperm.xlu0 %1948, %v415
      %v1950 = vpop.permute.xlu0 %1949
      %1952 = vset.pattern.permute.xlu0 5
      %1953 = vperm.xlu0 %1952, %v416
      %v1954 = vpop.permute.xlu0 %1953
      %1956 = vset.pattern.permute.xlu0 5
      %1957 = vperm.xlu0 %1956, %v417
      %v1958 = vpop.permute.xlu0 %1957
      %1960 = vset.pattern.permute.xlu0 5
      %1961 = vperm.xlu0 %1960, %v418
      %v1962 = vpop.permute.xlu0 %1961
      %1964 = vset.pattern.permute.xlu0 5
      %1965 = vperm.xlu0 %1964, %v419
      %v1966 = vpop.permute.xlu0 %1965
      %v1968 = vmul.f32 %v1906, %v1826
      %v1969 = vmul.f32 %v1910, %v1831
      %v1970 = vmul.f32 %v1914, %v1836
      %v1971 = vmul.f32 %v1918, %v1841
      %v1972 = vmul.f32 %v1922, %v1846
      %v1973 = vmul.f32 %v1926, %v1851
      %v1974 = vmul.f32 %v1930, %v1856
      %v1975 = vmul.f32 %v1934, %v1861
      %v1976 = vmul.f32 %v1938, %v1866
      %v1977 = vmul.f32 %v1942, %v1871
      %v1978 = vmul.f32 %v1946, %v1876
      %v1979 = vmul.f32 %v1950, %v1881
      %v1980 = vmul.f32 %v1954, %v1886
      %v1981 = vmul.f32 %v1958, %v1891
      %v1982 = vmul.f32 %v1962, %v1896
      %v1983 = vmul.f32 %v1966, %v1901
      %v1984 = vadd.f32 %v1734, %v1968
      %v1985 = vadd.f32 %v1735, %v1969
      %v1986 = vadd.f32 %v1736, %v1970
      %v1987 = vadd.f32 %v1737, %v1971
      %v1988 = vadd.f32 %v1738, %v1972
      %v1989 = vadd.f32 %v1739, %v1973
      %v1990 = vadd.f32 %v1740, %v1974
      %v1991 = vadd.f32 %v1741, %v1975
      %v1992 = vadd.f32 %v1742, %v1976
      %v1993 = vadd.f32 %v1743, %v1977
      %v1994 = vadd.f32 %v1744, %v1978
      %v1995 = vadd.f32 %v1745, %v1979
      %v1996 = vadd.f32 %v1746, %v1980
      %v1997 = vadd.f32 %v1747, %v1981
      %v1998 = vadd.f32 %v1748, %v1982
      %v1999 = vadd.f32 %v1749, %v1983
      %s2000 = scalar_lea.vmem %s376, 96
      %v2001 = vld [vmem:[%s2000] sm:$0xf]
      %v2002 = vld [vmem:[%s2000 + $0x4] sm:$0xf]
      %v2003 = vld [vmem:[%s2000 + $0x8] sm:$0xf]
      %v2004 = vld [vmem:[%s2000 + $0xc] sm:$0xf]
      %v2005 = vunpack.c.l.bf16 %v2001
      %v2006 = vunpack.c.l.bf16 %v2002
      %v2007 = vunpack.c.l.bf16 %v2003
      %v2008 = vunpack.c.l.bf16 %v2004
      %2009 = vmatprep.subr.mxu0 0.0
      %2010 = vmatpush1.msra.mxu0 %v2005
      %2011 = vmatprep.subr.mxu0 0.0
      %2012 = vmatpush1.msra.mxu0 %v2006
      %2013 = vmatprep.subr.mxu0 0.0
      %2014 = vmatpush1.msra.mxu0 %v2007
      %2015 = vmatprep.subr.mxu0 0.0
      %2016 = vmatpush1.msra.mxu0 %v2008
      %2017 = vmatprep.subr.mxu0 0.0
      %2018 = vmatpush1.msra.mxu0 0.0
      %2019 = vmatprep.subr.mxu0 0.0
      %2020 = vmatpush1.msra.mxu0 0.0
      %2021 = vmatprep.subr.mxu0 0.0
      %2022 = vmatpush1.msra.mxu0 0.0
      %2023 = vmatprep.subr.mxu0 0.0
      %2024 = vmatpush1.msra.mxu0 0.0
      %2025 = vmatprep.subr.mxu0 0.0
      %2026 = vmatpush1.msra.mxu0 0.0
      %2027 = vmatprep.subr.mxu0 0.0
      %2028 = vmatpush1.msra.mxu0 0.0
      %2029 = vmatprep.subr.mxu0 0.0
      %2030 = vmatpush1.msra.mxu0 0.0
      %2031 = vmatprep.subr.mxu0 0.0
      %2032 = vmatpush1.msra.mxu0 0.0
      %2033 = vmatprep.subr.mxu0 0.0
      %2034 = vmatpush1.msra.mxu0 0.0
      %2035 = vmatprep.subr.mxu0 0.0
      %2036 = vmatpush1.msra.mxu0 0.0
      %2037 = vmatprep.subr.mxu0 0.0
      %2038 = vmatpush1.msra.mxu0 0.0
      %2039 = vmatprep.subr.mxu0 0.0
      %2040 = vmatpush1.msra.mxu0 0.0
      %2041 = vmatprep.subr.mxu0 0.0
      %2042 = vmatpush1.msra.mxu0 0.0
      %2043 = vmatprep.subr.mxu0 0.0
      %2044 = vmatpush1.msra.mxu0 0.0
      %2045 = vmatprep.subr.mxu0 0.0
      %2046 = vmatpush1.msra.mxu0 0.0
      %2047 = vmatprep.subr.mxu0 0.0
      %2048 = vmatpush1.msra.mxu0 0.0
      %2049 = vmatprep.subr.mxu0 0.0
      %2050 = vmatpush1.msra.mxu0 0.0
      %2051 = vmatprep.subr.mxu0 0.0
      %2052 = vmatpush1.msra.mxu0 0.0
      %2053 = vmatprep.subr.mxu0 0.0
      %2054 = vmatpush1.msra.mxu0 0.0
      %2055 = vmatprep.subr.mxu0 0.0
      %2056 = vmatpush1.msra.mxu0 0.0
      %2057 = vmatprep.subr.mxu0 0.0
      %2058 = vmatpush1.msra.mxu0 0.0
      %2059 = vmatprep.subr.mxu0 0.0
      %2060 = vmatpush1.msra.mxu0 0.0
      %2061 = vmatprep.subr.mxu0 0.0
      %2062 = vmatpush1.msra.mxu0 0.0
      %2063 = vmatprep.subr.mxu0 0.0
      %2064 = vmatpush1.msra.mxu0 0.0
      %2065 = vmatprep.subr.mxu0 0.0
      %2066 = vmatpush1.msra.mxu0 0.0
      %2067 = vmatprep.subr.mxu0 0.0
      %2068 = vmatpush1.msra.mxu0 0.0
      %2069 = vmatprep.subr.mxu0 0.0
      %2070 = vmatpush1.msra.mxu0 0.0
      %2071 = vmatprep.subr.mxu0 0.0
      %2072 = vmatpush1.msra.mxu0 0.0
      %2073 = vmatprep.mubr.f32.mxu0 0.0
      %2074 = vmatmul.mubr.f32.gmra.mrb[0].mxu0 %v446
      %v2075 = vpop.f32.mrb[0].mxu0
      %v2076 = vadd.f32 0.0, %v2075
      %v2077 = vpop.f32.mrb[0].mxu0
      %2078 = vmatprep.mubr.f32.mxu0 0.0
      %2079 = vmatmul.mubr.f32.gmra.mrb[0].mxu0 %v449
      %v2080 = vpop.f32.mrb[0].mxu0
      %v2081 = vadd.f32 0.0, %v2080
      %v2082 = vpop.f32.mrb[0].mxu0
      %2083 = vmatprep.mubr.f32.mxu0 0.0
      %2084 = vmatmul.mubr.f32.gmra.mrb[0].mxu0 %v452
      %v2085 = vpop.f32.mrb[0].mxu0
      %v2086 = vadd.f32 0.0, %v2085
      %v2087 = vpop.f32.mrb[0].mxu0
      %2088 = vmatprep.mubr.f32.mxu0 0.0
      %2089 = vmatmul.mubr.f32.gmra.mrb[0].mxu0 %v455
      %v2090 = vpop.f32.mrb[0].mxu0
      %v2091 = vadd.f32 0.0, %v2090
      %v2092 = vpop.f32.mrb[0].mxu0
      %2093 = vmatprep.mubr.f32.mxu0 0.0
      %2094 = vmatmul.mubr.f32.gmra.mrb[0].mxu0 %v458
      %v2095 = vpop.f32.mrb[0].mxu0
      %v2096 = vadd.f32 0.0, %v2095
      %v2097 = vpop.f32.mrb[0].mxu0
      %2098 = vmatprep.mubr.f32.mxu0 0.0
      %2099 = vmatmul.mubr.f32.gmra.mrb[0].mxu0 %v461
      %v2100 = vpop.f32.mrb[0].mxu0
      %v2101 = vadd.f32 0.0, %v2100
      %v2102 = vpop.f32.mrb[0].mxu0
      %2103 = vmatprep.mubr.f32.mxu0 0.0
      %2104 = vmatmul.mubr.f32.gmra.mrb[0].mxu0 %v464
      %v2105 = vpop.f32.mrb[0].mxu0
      %v2106 = vadd.f32 0.0, %v2105
      %v2107 = vpop.f32.mrb[0].mxu0
      %2108 = vmatprep.mubr.f32.mxu0 0.0
      %2109 = vmatmul.mubr.f32.gmra.mrb[0].mxu0 %v467
      %v2110 = vpop.f32.mrb[0].mxu0
      %v2111 = vadd.f32 0.0, %v2110
      %v2112 = vpop.f32.mrb[0].mxu0
      %2113 = vmatprep.mubr.f32.mxu0 0.0
      %2114 = vmatmul.mubr.f32.gmra.mrb[0].mxu0 %v470
      %v2115 = vpop.f32.mrb[0].mxu0
      %v2116 = vadd.f32 0.0, %v2115
      %v2117 = vpop.f32.mrb[0].mxu0
      %2118 = vmatprep.mubr.f32.mxu0 0.0
      %2119 = vmatmul.mubr.f32.gmra.mrb[0].mxu0 %v473
      %v2120 = vpop.f32.mrb[0].mxu0
      %v2121 = vadd.f32 0.0, %v2120
      %v2122 = vpop.f32.mrb[0].mxu0
      %2123 = vmatprep.mubr.f32.mxu0 0.0
      %2124 = vmatmul.mubr.f32.gmra.mrb[0].mxu0 %v476
      %v2125 = vpop.f32.mrb[0].mxu0
      %v2126 = vadd.f32 0.0, %v2125
      %v2127 = vpop.f32.mrb[0].mxu0
      %2128 = vmatprep.mubr.f32.mxu0 0.0
      %2129 = vmatmul.mubr.f32.gmra.mrb[0].mxu0 %v479
      %v2130 = vpop.f32.mrb[0].mxu0
      %v2131 = vadd.f32 0.0, %v2130
      %v2132 = vpop.f32.mrb[0].mxu0
      %2133 = vmatprep.mubr.f32.mxu0 0.0
      %2134 = vmatmul.mubr.f32.gmra.mrb[0].mxu0 %v482
      %v2135 = vpop.f32.mrb[0].mxu0
      %v2136 = vadd.f32 0.0, %v2135
      %v2137 = vpop.f32.mrb[0].mxu0
      %2138 = vmatprep.mubr.f32.mxu0 0.0
      %2139 = vmatmul.mubr.f32.gmra.mrb[0].mxu0 %v485
      %v2140 = vpop.f32.mrb[0].mxu0
      %v2141 = vadd.f32 0.0, %v2140
      %v2142 = vpop.f32.mrb[0].mxu0
      %2143 = vmatprep.mubr.f32.mxu0 0.0
      %2144 = vmatmul.mubr.f32.gmra.mrb[0].mxu0 %v488
      %v2145 = vpop.f32.mrb[0].mxu0
      %v2146 = vadd.f32 0.0, %v2145
      %v2147 = vpop.f32.mrb[0].mxu0
      %2148 = vmatprep.mubr.f32.mxu0 0.0
      %2149 = vmatmul.mubr.f32.gmra.mrb[0].mxu0 %v491
      %v2150 = vpop.f32.mrb[0].mxu0
      %v2151 = vadd.f32 0.0, %v2150
      %v2152 = vpop.f32.mrb[0].mxu0
      %2153 = vdwg.mxu0
      %2154 = vset.pattern.permute.xlu0 6
      %2155 = vperm.xlu0 %2154, %v404
      %v2156 = vpop.permute.xlu0 %2155
      %2158 = vset.pattern.permute.xlu0 6
      %2159 = vperm.xlu0 %2158, %v405
      %v2160 = vpop.permute.xlu0 %2159
      %2162 = vset.pattern.permute.xlu0 6
      %2163 = vperm.xlu0 %2162, %v406
      %v2164 = vpop.permute.xlu0 %2163
      %2166 = vset.pattern.permute.xlu0 6
      %2167 = vperm.xlu0 %2166, %v407
      %v2168 = vpop.permute.xlu0 %2167
      %2170 = vset.pattern.permute.xlu0 6
      %2171 = vperm.xlu0 %2170, %v408
      %v2172 = vpop.permute.xlu0 %2171
      %2174 = vset.pattern.permute.xlu0 6
      %2175 = vperm.xlu0 %2174, %v409
      %v2176 = vpop.permute.xlu0 %2175
      %2178 = vset.pattern.permute.xlu0 6
      %2179 = vperm.xlu0 %2178, %v410
      %v2180 = vpop.permute.xlu0 %2179
      %2182 = vset.pattern.permute.xlu0 6
      %2183 = vperm.xlu0 %2182, %v411
      %v2184 = vpop.permute.xlu0 %2183
      %2186 = vset.pattern.permute.xlu0 6
      %2187 = vperm.xlu0 %2186, %v412
      %v2188 = vpop.permute.xlu0 %2187
      %2190 = vset.pattern.permute.xlu0 6
      %2191 = vperm.xlu0 %2190, %v413
      %v2192 = vpop.permute.xlu0 %2191
      %2194 = vset.pattern.permute.xlu0 6
      %2195 = vperm.xlu0 %2194, %v414
      %v2196 = vpop.permute.xlu0 %2195
      %2198 = vset.pattern.permute.xlu0 6
      %2199 = vperm.xlu0 %2198, %v415
      %v2200 = vpop.permute.xlu0 %2199
      %2202 = vset.pattern.permute.xlu0 6
      %2203 = vperm.xlu0 %2202, %v416
      %v2204 = vpop.permute.xlu0 %2203
      %2206 = vset.pattern.permute.xlu0 6
      %2207 = vperm.xlu0 %2206, %v417
      %v2208 = vpop.permute.xlu0 %2207
      %2210 = vset.pattern.permute.xlu0 6
      %2211 = vperm.xlu0 %2210, %v418
      %v2212 = vpop.permute.xlu0 %2211
      %2214 = vset.pattern.permute.xlu0 6
      %2215 = vperm.xlu0 %2214, %v419
      %v2216 = vpop.permute.xlu0 %2215
      %v2218 = vmul.f32 %v2156, %v2076
      %v2219 = vmul.f32 %v2160, %v2081
      %v2220 = vmul.f32 %v2164, %v2086
      %v2221 = vmul.f32 %v2168, %v2091
      %v2222 = vmul.f32 %v2172, %v2096
      %v2223 = vmul.f32 %v2176, %v2101
      %v2224 = vmul.f32 %v2180, %v2106
      %v2225 = vmul.f32 %v2184, %v2111
      %v2226 = vmul.f32 %v2188, %v2116
      %v2227 = vmul.f32 %v2192, %v2121
      %v2228 = vmul.f32 %v2196, %v2126
      %v2229 = vmul.f32 %v2200, %v2131
      %v2230 = vmul.f32 %v2204, %v2136
      %v2231 = vmul.f32 %v2208, %v2141
      %v2232 = vmul.f32 %v2212, %v2146
      %v2233 = vmul.f32 %v2216, %v2151
      %v2234 = vadd.f32 %v1984, %v2218
      %v2235 = vadd.f32 %v1985, %v2219
      %v2236 = vadd.f32 %v1986, %v2220
      %v2237 = vadd.f32 %v1987, %v2221
      %v2238 = vadd.f32 %v1988, %v2222
      %v2239 = vadd.f32 %v1989, %v2223
      %v2240 = vadd.f32 %v1990, %v2224
      %v2241 = vadd.f32 %v1991, %v2225
      %v2242 = vadd.f32 %v1992, %v2226
      %v2243 = vadd.f32 %v1993, %v2227
      %v2244 = vadd.f32 %v1994, %v2228
      %v2245 = vadd.f32 %v1995, %v2229
      %v2246 = vadd.f32 %v1996, %v2230
      %v2247 = vadd.f32 %v1997, %v2231
      %v2248 = vadd.f32 %v1998, %v2232
      %v2249 = vadd.f32 %v1999, %v2233
      %s2250 = scalar_lea.vmem %s376, 112
      %v2251 = vld [vmem:[%s2250] sm:$0xf]
      %v2252 = vld [vmem:[%s2250 + $0x4] sm:$0xf]
      %v2253 = vld [vmem:[%s2250 + $0x8] sm:$0xf]
      %v2254 = vld [vmem:[%s2250 + $0xc] sm:$0xf]
      %v2255 = vunpack.c.l.bf16 %v2251
      %v2256 = vunpack.c.l.bf16 %v2252
      %v2257 = vunpack.c.l.bf16 %v2253
      %v2258 = vunpack.c.l.bf16 %v2254
      %2259 = vmatprep.subr.mxu0 0.0
      %2260 = vmatpush1.msra.mxu0 %v2255
      %2261 = vmatprep.subr.mxu0 0.0
      %2262 = vmatpush1.msra.mxu0 %v2256
      %2263 = vmatprep.subr.mxu0 0.0
      %2264 = vmatpush1.msra.mxu0 %v2257
      %2265 = vmatprep.subr.mxu0 0.0
      %2266 = vmatpush1.msra.mxu0 %v2258
      %2267 = vmatprep.subr.mxu0 0.0
      %2268 = vmatpush1.msra.mxu0 0.0
      %2269 = vmatprep.subr.mxu0 0.0
      %2270 = vmatpush1.msra.mxu0 0.0
      %2271 = vmatprep.subr.mxu0 0.0
      %2272 = vmatpush1.msra.mxu0 0.0
      %2273 = vmatprep.subr.mxu0 0.0
      %2274 = vmatpush1.msra.mxu0 0.0
      %2275 = vmatprep.subr.mxu0 0.0
      %2276 = vmatpush1.msra.mxu0 0.0
      %2277 = vmatprep.subr.mxu0 0.0
      %2278 = vmatpush1.msra.mxu0 0.0
      %2279 = vmatprep.subr.mxu0 0.0
      %2280 = vmatpush1.msra.mxu0 0.0
      %2281 = vmatprep.subr.mxu0 0.0
      %2282 = vmatpush1.msra.mxu0 0.0
      %2283 = vmatprep.subr.mxu0 0.0
      %2284 = vmatpush1.msra.mxu0 0.0
      %2285 = vmatprep.subr.mxu0 0.0
      %2286 = vmatpush1.msra.mxu0 0.0
      %2287 = vmatprep.subr.mxu0 0.0
      %2288 = vmatpush1.msra.mxu0 0.0
      %2289 = vmatprep.subr.mxu0 0.0
      %2290 = vmatpush1.msra.mxu0 0.0
      %2291 = vmatprep.subr.mxu0 0.0
      %2292 = vmatpush1.msra.mxu0 0.0
      %2293 = vmatprep.subr.mxu0 0.0
      %2294 = vmatpush1.msra.mxu0 0.0
      %2295 = vmatprep.subr.mxu0 0.0
      %2296 = vmatpush1.msra.mxu0 0.0
      %2297 = vmatprep.subr.mxu0 0.0
      %2298 = vmatpush1.msra.mxu0 0.0
      %2299 = vmatprep.subr.mxu0 0.0
      %2300 = vmatpush1.msra.mxu0 0.0
      %2301 = vmatprep.subr.mxu0 0.0
      %2302 = vmatpush1.msra.mxu0 0.0
      %2303 = vmatprep.subr.mxu0 0.0
      %2304 = vmatpush1.msra.mxu0 0.0
      %2305 = vmatprep.subr.mxu0 0.0
      %2306 = vmatpush1.msra.mxu0 0.0
      %2307 = vmatprep.subr.mxu0 0.0
      %2308 = vmatpush1.msra.mxu0 0.0
      %2309 = vmatprep.subr.mxu0 0.0
      %2310 = vmatpush1.msra.mxu0 0.0
      %2311 = vmatprep.subr.mxu0 0.0
      %2312 = vmatpush1.msra.mxu0 0.0
      %2313 = vmatprep.subr.mxu0 0.0
      %2314 = vmatpush1.msra.mxu0 0.0
      %2315 = vmatprep.subr.mxu0 0.0
      %2316 = vmatpush1.msra.mxu0 0.0
      %2317 = vmatprep.subr.mxu0 0.0
      %2318 = vmatpush1.msra.mxu0 0.0
      %2319 = vmatprep.subr.mxu0 0.0
      %2320 = vmatpush1.msra.mxu0 0.0
      %2321 = vmatprep.subr.mxu0 0.0
      %2322 = vmatpush1.msra.mxu0 0.0
      %2323 = vmatprep.mubr.f32.mxu0 0.0
      %2324 = vmatmul.mubr.f32.gmra.mrb[0].mxu0 %v446
      %v2325 = vpop.f32.mrb[0].mxu0
      %v2326 = vadd.f32 0.0, %v2325
      %v2327 = vpop.f32.mrb[0].mxu0
      %2328 = vmatprep.mubr.f32.mxu0 0.0
      %2329 = vmatmul.mubr.f32.gmra.mrb[0].mxu0 %v449
      %v2330 = vpop.f32.mrb[0].mxu0
      %v2331 = vadd.f32 0.0, %v2330
      %v2332 = vpop.f32.mrb[0].mxu0
      %2333 = vmatprep.mubr.f32.mxu0 0.0
      %2334 = vmatmul.mubr.f32.gmra.mrb[0].mxu0 %v452
      %v2335 = vpop.f32.mrb[0].mxu0
      %v2336 = vadd.f32 0.0, %v2335
      %v2337 = vpop.f32.mrb[0].mxu0
      %2338 = vmatprep.mubr.f32.mxu0 0.0
      %2339 = vmatmul.mubr.f32.gmra.mrb[0].mxu0 %v455
      %v2340 = vpop.f32.mrb[0].mxu0
      %v2341 = vadd.f32 0.0, %v2340
      %v2342 = vpop.f32.mrb[0].mxu0
      %2343 = vmatprep.mubr.f32.mxu0 0.0
      %2344 = vmatmul.mubr.f32.gmra.mrb[0].mxu0 %v458
      %v2345 = vpop.f32.mrb[0].mxu0
      %v2346 = vadd.f32 0.0, %v2345
      %v2347 = vpop.f32.mrb[0].mxu0
      %2348 = vmatprep.mubr.f32.mxu0 0.0
      %2349 = vmatmul.mubr.f32.gmra.mrb[0].mxu0 %v461
      %v2350 = vpop.f32.mrb[0].mxu0
      %v2351 = vadd.f32 0.0, %v2350
      %v2352 = vpop.f32.mrb[0].mxu0
      %2353 = vmatprep.mubr.f32.mxu0 0.0
      %2354 = vmatmul.mubr.f32.gmra.mrb[0].mxu0 %v464
      %v2355 = vpop.f32.mrb[0].mxu0
      %v2356 = vadd.f32 0.0, %v2355
      %v2357 = vpop.f32.mrb[0].mxu0
      %2358 = vmatprep.mubr.f32.mxu0 0.0
      %2359 = vmatmul.mubr.f32.gmra.mrb[0].mxu0 %v467
      %v2360 = vpop.f32.mrb[0].mxu0
      %v2361 = vadd.f32 0.0, %v2360
      %v2362 = vpop.f32.mrb[0].mxu0
      %2363 = vmatprep.mubr.f32.mxu0 0.0
      %2364 = vmatmul.mubr.f32.gmra.mrb[0].mxu0 %v470
      %v2365 = vpop.f32.mrb[0].mxu0
      %v2366 = vadd.f32 0.0, %v2365
      %v2367 = vpop.f32.mrb[0].mxu0
      %2368 = vmatprep.mubr.f32.mxu0 0.0
      %2369 = vmatmul.mubr.f32.gmra.mrb[0].mxu0 %v473
      %v2370 = vpop.f32.mrb[0].mxu0
      %v2371 = vadd.f32 0.0, %v2370
      %v2372 = vpop.f32.mrb[0].mxu0
      %2373 = vmatprep.mubr.f32.mxu0 0.0
      %2374 = vmatmul.mubr.f32.gmra.mrb[0].mxu0 %v476
      %v2375 = vpop.f32.mrb[0].mxu0
      %v2376 = vadd.f32 0.0, %v2375
      %v2377 = vpop.f32.mrb[0].mxu0
      %2378 = vmatprep.mubr.f32.mxu0 0.0
      %2379 = vmatmul.mubr.f32.gmra.mrb[0].mxu0 %v479
      %v2380 = vpop.f32.mrb[0].mxu0
      %v2381 = vadd.f32 0.0, %v2380
      %v2382 = vpop.f32.mrb[0].mxu0
      %2383 = vmatprep.mubr.f32.mxu0 0.0
      %2384 = vmatmul.mubr.f32.gmra.mrb[0].mxu0 %v482
      %v2385 = vpop.f32.mrb[0].mxu0
      %v2386 = vadd.f32 0.0, %v2385
      %v2387 = vpop.f32.mrb[0].mxu0
      %2388 = vmatprep.mubr.f32.mxu0 0.0
      %2389 = vmatmul.mubr.f32.gmra.mrb[0].mxu0 %v485
      %v2390 = vpop.f32.mrb[0].mxu0
      %v2391 = vadd.f32 0.0, %v2390
      %v2392 = vpop.f32.mrb[0].mxu0
      %2393 = vmatprep.mubr.f32.mxu0 0.0
      %2394 = vmatmul.mubr.f32.gmra.mrb[0].mxu0 %v488
      %v2395 = vpop.f32.mrb[0].mxu0
      %v2396 = vadd.f32 0.0, %v2395
      %v2397 = vpop.f32.mrb[0].mxu0
      %2398 = vmatprep.mubr.f32.mxu0 0.0
      %2399 = vmatmul.mubr.f32.gmra.mrb[0].mxu0 %v491
      %v2400 = vpop.f32.mrb[0].mxu0
      %v2401 = vadd.f32 0.0, %v2400
      %v2402 = vpop.f32.mrb[0].mxu0
      %2403 = vdwg.mxu0
      %2404 = vset.pattern.permute.xlu0 7
      %2405 = vperm.xlu0 %2404, %v404
      %v2406 = vpop.permute.xlu0 %2405
      %2408 = vset.pattern.permute.xlu0 7
      %2409 = vperm.xlu0 %2408, %v405
      %v2410 = vpop.permute.xlu0 %2409
      %2412 = vset.pattern.permute.xlu0 7
      %2413 = vperm.xlu0 %2412, %v406
      %v2414 = vpop.permute.xlu0 %2413
      %2416 = vset.pattern.permute.xlu0 7
      %2417 = vperm.xlu0 %2416, %v407
      %v2418 = vpop.permute.xlu0 %2417
      %2420 = vset.pattern.permute.xlu0 7
      %2421 = vperm.xlu0 %2420, %v408
      %v2422 = vpop.permute.xlu0 %2421
      %2424 = vset.pattern.permute.xlu0 7
      %2425 = vperm.xlu0 %2424, %v409
      %v2426 = vpop.permute.xlu0 %2425
      %2428 = vset.pattern.permute.xlu0 7
      %2429 = vperm.xlu0 %2428, %v410
      %v2430 = vpop.permute.xlu0 %2429
      %2432 = vset.pattern.permute.xlu0 7
      %2433 = vperm.xlu0 %2432, %v411
      %v2434 = vpop.permute.xlu0 %2433
      %2436 = vset.pattern.permute.xlu0 7
      %2437 = vperm.xlu0 %2436, %v412
      %v2438 = vpop.permute.xlu0 %2437
      %2440 = vset.pattern.permute.xlu0 7
      %2441 = vperm.xlu0 %2440, %v413
      %v2442 = vpop.permute.xlu0 %2441
      %2444 = vset.pattern.permute.xlu0 7
      %2445 = vperm.xlu0 %2444, %v414
      %v2446 = vpop.permute.xlu0 %2445
      %2448 = vset.pattern.permute.xlu0 7
      %2449 = vperm.xlu0 %2448, %v415
      %v2450 = vpop.permute.xlu0 %2449
      %2452 = vset.pattern.permute.xlu0 7
      %2453 = vperm.xlu0 %2452, %v416
      %v2454 = vpop.permute.xlu0 %2453
      %2456 = vset.pattern.permute.xlu0 7
      %2457 = vperm.xlu0 %2456, %v417
      %v2458 = vpop.permute.xlu0 %2457
      %2460 = vset.pattern.permute.xlu0 7
      %2461 = vperm.xlu0 %2460, %v418
      %v2462 = vpop.permute.xlu0 %2461
      %2464 = vset.pattern.permute.xlu0 7
      %2465 = vperm.xlu0 %2464, %v419
      %v2466 = vpop.permute.xlu0 %2465
      %v2468 = vmul.f32 %v2406, %v2326
      %v2469 = vmul.f32 %v2410, %v2331
      %v2470 = vmul.f32 %v2414, %v2336
      %v2471 = vmul.f32 %v2418, %v2341
      %v2472 = vmul.f32 %v2422, %v2346
      %v2473 = vmul.f32 %v2426, %v2351
      %v2474 = vmul.f32 %v2430, %v2356
      %v2475 = vmul.f32 %v2434, %v2361
      %v2476 = vmul.f32 %v2438, %v2366
      %v2477 = vmul.f32 %v2442, %v2371
      %v2478 = vmul.f32 %v2446, %v2376
      %v2479 = vmul.f32 %v2450, %v2381
      %v2480 = vmul.f32 %v2454, %v2386
      %v2481 = vmul.f32 %v2458, %v2391
      %v2482 = vmul.f32 %v2462, %v2396
      %v2483 = vmul.f32 %v2466, %v2401
      %v2484 = vadd.f32 %v2234, %v2468
      %v2485 = vadd.f32 %v2235, %v2469
      %v2486 = vadd.f32 %v2236, %v2470
      %v2487 = vadd.f32 %v2237, %v2471
      %v2488 = vadd.f32 %v2238, %v2472
      %v2489 = vadd.f32 %v2239, %v2473
      %v2490 = vadd.f32 %v2240, %v2474
      %v2491 = vadd.f32 %v2241, %v2475
      %v2492 = vadd.f32 %v2242, %v2476
      %v2493 = vadd.f32 %v2243, %v2477
      %v2494 = vadd.f32 %v2244, %v2478
      %v2495 = vadd.f32 %v2245, %v2479
      %v2496 = vadd.f32 %v2246, %v2480
      %v2497 = vadd.f32 %v2247, %v2481
      %v2498 = vadd.f32 %v2248, %v2482
      %v2499 = vadd.f32 %v2249, %v2483
      %s2500 = scalar_lea.vmem %s376, 128
      %v2501 = vld [vmem:[%s2500] sm:$0xf]
      %v2502 = vld [vmem:[%s2500 + $0x4] sm:$0xf]
      %v2503 = vld [vmem:[%s2500 + $0x8] sm:$0xf]
      %v2504 = vld [vmem:[%s2500 + $0xc] sm:$0xf]
      %v2505 = vunpack.c.l.bf16 %v2501
      %v2506 = vunpack.c.l.bf16 %v2502
      %v2507 = vunpack.c.l.bf16 %v2503
      %v2508 = vunpack.c.l.bf16 %v2504
      %2509 = vmatprep.subr.mxu0 0.0
      %2510 = vmatpush1.msra.mxu0 %v2505
      %2511 = vmatprep.subr.mxu0 0.0
      %2512 = vmatpush1.msra.mxu0 %v2506
      %2513 = vmatprep.subr.mxu0 0.0
      %2514 = vmatpush1.msra.mxu0 %v2507
      %2515 = vmatprep.subr.mxu0 0.0
      %2516 = vmatpush1.msra.mxu0 %v2508
      %2517 = vmatprep.subr.mxu0 0.0
      %2518 = vmatpush1.msra.mxu0 0.0
      %2519 = vmatprep.subr.mxu0 0.0
      %2520 = vmatpush1.msra.mxu0 0.0
      %2521 = vmatprep.subr.mxu0 0.0
      %2522 = vmatpush1.msra.mxu0 0.0
      %2523 = vmatprep.subr.mxu0 0.0
      %2524 = vmatpush1.msra.mxu0 0.0
      %2525 = vmatprep.subr.mxu0 0.0
      %2526 = vmatpush1.msra.mxu0 0.0
      %2527 = vmatprep.subr.mxu0 0.0
      %2528 = vmatpush1.msra.mxu0 0.0
      %2529 = vmatprep.subr.mxu0 0.0
      %2530 = vmatpush1.msra.mxu0 0.0
      %2531 = vmatprep.subr.mxu0 0.0
      %2532 = vmatpush1.msra.mxu0 0.0
      %2533 = vmatprep.subr.mxu0 0.0
      %2534 = vmatpush1.msra.mxu0 0.0
      %2535 = vmatprep.subr.mxu0 0.0
      %2536 = vmatpush1.msra.mxu0 0.0
      %2537 = vmatprep.subr.mxu0 0.0
      %2538 = vmatpush1.msra.mxu0 0.0
      %2539 = vmatprep.subr.mxu0 0.0
      %2540 = vmatpush1.msra.mxu0 0.0
      %2541 = vmatprep.subr.mxu0 0.0
      %2542 = vmatpush1.msra.mxu0 0.0
      %2543 = vmatprep.subr.mxu0 0.0
      %2544 = vmatpush1.msra.mxu0 0.0
      %2545 = vmatprep.subr.mxu0 0.0
      %2546 = vmatpush1.msra.mxu0 0.0
      %2547 = vmatprep.subr.mxu0 0.0
      %2548 = vmatpush1.msra.mxu0 0.0
      %2549 = vmatprep.subr.mxu0 0.0
      %2550 = vmatpush1.msra.mxu0 0.0
      %2551 = vmatprep.subr.mxu0 0.0
      %2552 = vmatpush1.msra.mxu0 0.0
      %2553 = vmatprep.subr.mxu0 0.0
      %2554 = vmatpush1.msra.mxu0 0.0
      %2555 = vmatprep.subr.mxu0 0.0
      %2556 = vmatpush1.msra.mxu0 0.0
      %2557 = vmatprep.subr.mxu0 0.0
      %2558 = vmatpush1.msra.mxu0 0.0
      %2559 = vmatprep.subr.mxu0 0.0
      %2560 = vmatpush1.msra.mxu0 0.0
      %2561 = vmatprep.subr.mxu0 0.0
      %2562 = vmatpush1.msra.mxu0 0.0
      %2563 = vmatprep.subr.mxu0 0.0
      %2564 = vmatpush1.msra.mxu0 0.0
      %2565 = vmatprep.subr.mxu0 0.0
      %2566 = vmatpush1.msra.mxu0 0.0
      %2567 = vmatprep.subr.mxu0 0.0
      %2568 = vmatpush1.msra.mxu0 0.0
      %2569 = vmatprep.subr.mxu0 0.0
      %2570 = vmatpush1.msra.mxu0 0.0
      %2571 = vmatprep.subr.mxu0 0.0
      %2572 = vmatpush1.msra.mxu0 0.0
      %2573 = vmatprep.mubr.f32.mxu0 0.0
      %2574 = vmatmul.mubr.f32.gmra.mrb[0].mxu0 %v446
      %v2575 = vpop.f32.mrb[0].mxu0
      %v2576 = vadd.f32 0.0, %v2575
      %v2577 = vpop.f32.mrb[0].mxu0
      %2578 = vmatprep.mubr.f32.mxu0 0.0
      %2579 = vmatmul.mubr.f32.gmra.mrb[0].mxu0 %v449
      %v2580 = vpop.f32.mrb[0].mxu0
      %v2581 = vadd.f32 0.0, %v2580
      %v2582 = vpop.f32.mrb[0].mxu0
      %2583 = vmatprep.mubr.f32.mxu0 0.0
      %2584 = vmatmul.mubr.f32.gmra.mrb[0].mxu0 %v452
      %v2585 = vpop.f32.mrb[0].mxu0
      %v2586 = vadd.f32 0.0, %v2585
      %v2587 = vpop.f32.mrb[0].mxu0
      %2588 = vmatprep.mubr.f32.mxu0 0.0
      %2589 = vmatmul.mubr.f32.gmra.mrb[0].mxu0 %v455
      %v2590 = vpop.f32.mrb[0].mxu0
      %v2591 = vadd.f32 0.0, %v2590
      %v2592 = vpop.f32.mrb[0].mxu0
      %2593 = vmatprep.mubr.f32.mxu0 0.0
      %2594 = vmatmul.mubr.f32.gmra.mrb[0].mxu0 %v458
      %v2595 = vpop.f32.mrb[0].mxu0
      %v2596 = vadd.f32 0.0, %v2595
      %v2597 = vpop.f32.mrb[0].mxu0
      %2598 = vmatprep.mubr.f32.mxu0 0.0
      %2599 = vmatmul.mubr.f32.gmra.mrb[0].mxu0 %v461
      %v2600 = vpop.f32.mrb[0].mxu0
      %v2601 = vadd.f32 0.0, %v2600
      %v2602 = vpop.f32.mrb[0].mxu0
      %2603 = vmatprep.mubr.f32.mxu0 0.0
      %2604 = vmatmul.mubr.f32.gmra.mrb[0].mxu0 %v464
      %v2605 = vpop.f32.mrb[0].mxu0
      %v2606 = vadd.f32 0.0, %v2605
      %v2607 = vpop.f32.mrb[0].mxu0
      %2608 = vmatprep.mubr.f32.mxu0 0.0
      %2609 = vmatmul.mubr.f32.gmra.mrb[0].mxu0 %v467
      %v2610 = vpop.f32.mrb[0].mxu0
      %v2611 = vadd.f32 0.0, %v2610
      %v2612 = vpop.f32.mrb[0].mxu0
      %2613 = vmatprep.mubr.f32.mxu0 0.0
      %2614 = vmatmul.mubr.f32.gmra.mrb[0].mxu0 %v470
      %v2615 = vpop.f32.mrb[0].mxu0
      %v2616 = vadd.f32 0.0, %v2615
      %v2617 = vpop.f32.mrb[0].mxu0
      %2618 = vmatprep.mubr.f32.mxu0 0.0
      %2619 = vmatmul.mubr.f32.gmra.mrb[0].mxu0 %v473
      %v2620 = vpop.f32.mrb[0].mxu0
      %v2621 = vadd.f32 0.0, %v2620
      %v2622 = vpop.f32.mrb[0].mxu0
      %2623 = vmatprep.mubr.f32.mxu0 0.0
      %2624 = vmatmul.mubr.f32.gmra.mrb[0].mxu0 %v476
      %v2625 = vpop.f32.mrb[0].mxu0
      %v2626 = vadd.f32 0.0, %v2625
      %v2627 = vpop.f32.mrb[0].mxu0
      %2628 = vmatprep.mubr.f32.mxu0 0.0
      %2629 = vmatmul.mubr.f32.gmra.mrb[0].mxu0 %v479
      %v2630 = vpop.f32.mrb[0].mxu0
      %v2631 = vadd.f32 0.0, %v2630
      %v2632 = vpop.f32.mrb[0].mxu0
      %2633 = vmatprep.mubr.f32.mxu0 0.0
      %2634 = vmatmul.mubr.f32.gmra.mrb[0].mxu0 %v482
      %v2635 = vpop.f32.mrb[0].mxu0
      %v2636 = vadd.f32 0.0, %v2635
      %v2637 = vpop.f32.mrb[0].mxu0
      %2638 = vmatprep.mubr.f32.mxu0 0.0
      %2639 = vmatmul.mubr.f32.gmra.mrb[0].mxu0 %v485
      %v2640 = vpop.f32.mrb[0].mxu0
      %v2641 = vadd.f32 0.0, %v2640
      %v2642 = vpop.f32.mrb[0].mxu0
      %2643 = vmatprep.mubr.f32.mxu0 0.0
      %2644 = vmatmul.mubr.f32.gmra.mrb[0].mxu0 %v488
      %v2645 = vpop.f32.mrb[0].mxu0
      %v2646 = vadd.f32 0.0, %v2645
      %v2647 = vpop.f32.mrb[0].mxu0
      %2648 = vmatprep.mubr.f32.mxu0 0.0
      %2649 = vmatmul.mubr.f32.gmra.mrb[0].mxu0 %v491
      %v2650 = vpop.f32.mrb[0].mxu0
      %v2651 = vadd.f32 0.0, %v2650
      %v2652 = vpop.f32.mrb[0].mxu0
      %2653 = vdwg.mxu0
      %2654 = vset.pattern.permute.xlu0 8
      %2655 = vperm.xlu0 %2654, %v404
      %v2656 = vpop.permute.xlu0 %2655
      %2658 = vset.pattern.permute.xlu0 8
      %2659 = vperm.xlu0 %2658, %v405
      %v2660 = vpop.permute.xlu0 %2659
      %2662 = vset.pattern.permute.xlu0 8
      %2663 = vperm.xlu0 %2662, %v406
      %v2664 = vpop.permute.xlu0 %2663
      %2666 = vset.pattern.permute.xlu0 8
      %2667 = vperm.xlu0 %2666, %v407
      %v2668 = vpop.permute.xlu0 %2667
      %2670 = vset.pattern.permute.xlu0 8
      %2671 = vperm.xlu0 %2670, %v408
      %v2672 = vpop.permute.xlu0 %2671
      %2674 = vset.pattern.permute.xlu0 8
      %2675 = vperm.xlu0 %2674, %v409
      %v2676 = vpop.permute.xlu0 %2675
      %2678 = vset.pattern.permute.xlu0 8
      %2679 = vperm.xlu0 %2678, %v410
      %v2680 = vpop.permute.xlu0 %2679
      %2682 = vset.pattern.permute.xlu0 8
      %2683 = vperm.xlu0 %2682, %v411
      %v2684 = vpop.permute.xlu0 %2683
      %2686 = vset.pattern.permute.xlu0 8
      %2687 = vperm.xlu0 %2686, %v412
      %v2688 = vpop.permute.xlu0 %2687
      %2690 = vset.pattern.permute.xlu0 8
      %2691 = vperm.xlu0 %2690, %v413
      %v2692 = vpop.permute.xlu0 %2691
      %2694 = vset.pattern.permute.xlu0 8
      %2695 = vperm.xlu0 %2694, %v414
      %v2696 = vpop.permute.xlu0 %2695
      %2698 = vset.pattern.permute.xlu0 8
      %2699 = vperm.xlu0 %2698, %v415
      %v2700 = vpop.permute.xlu0 %2699
      %2702 = vset.pattern.permute.xlu0 8
      %2703 = vperm.xlu0 %2702, %v416
      %v2704 = vpop.permute.xlu0 %2703
      %2706 = vset.pattern.permute.xlu0 8
      %2707 = vperm.xlu0 %2706, %v417
      %v2708 = vpop.permute.xlu0 %2707
      %2710 = vset.pattern.permute.xlu0 8
      %2711 = vperm.xlu0 %2710, %v418
      %v2712 = vpop.permute.xlu0 %2711
      %2714 = vset.pattern.permute.xlu0 8
      %2715 = vperm.xlu0 %2714, %v419
      %v2716 = vpop.permute.xlu0 %2715
      %v2718 = vmul.f32 %v2656, %v2576
      %v2719 = vmul.f32 %v2660, %v2581
      %v2720 = vmul.f32 %v2664, %v2586
      %v2721 = vmul.f32 %v2668, %v2591
      %v2722 = vmul.f32 %v2672, %v2596
      %v2723 = vmul.f32 %v2676, %v2601
      %v2724 = vmul.f32 %v2680, %v2606
      %v2725 = vmul.f32 %v2684, %v2611
      %v2726 = vmul.f32 %v2688, %v2616
      %v2727 = vmul.f32 %v2692, %v2621
      %v2728 = vmul.f32 %v2696, %v2626
      %v2729 = vmul.f32 %v2700, %v2631
      %v2730 = vmul.f32 %v2704, %v2636
      %v2731 = vmul.f32 %v2708, %v2641
      %v2732 = vmul.f32 %v2712, %v2646
      %v2733 = vmul.f32 %v2716, %v2651
      %v2734 = vadd.f32 %v2484, %v2718
      %v2735 = vadd.f32 %v2485, %v2719
      %v2736 = vadd.f32 %v2486, %v2720
      %v2737 = vadd.f32 %v2487, %v2721
      %v2738 = vadd.f32 %v2488, %v2722
      %v2739 = vadd.f32 %v2489, %v2723
      %v2740 = vadd.f32 %v2490, %v2724
      %v2741 = vadd.f32 %v2491, %v2725
      %v2742 = vadd.f32 %v2492, %v2726
      %v2743 = vadd.f32 %v2493, %v2727
      %v2744 = vadd.f32 %v2494, %v2728
      %v2745 = vadd.f32 %v2495, %v2729
      %v2746 = vadd.f32 %v2496, %v2730
      %v2747 = vadd.f32 %v2497, %v2731
      %v2748 = vadd.f32 %v2498, %v2732
      %v2749 = vadd.f32 %v2499, %v2733
      %s2750 = scalar_lea.vmem %s376, 144
      %v2751 = vld [vmem:[%s2750] sm:$0xf]
      %v2752 = vld [vmem:[%s2750 + $0x4] sm:$0xf]
      %v2753 = vld [vmem:[%s2750 + $0x8] sm:$0xf]
      %v2754 = vld [vmem:[%s2750 + $0xc] sm:$0xf]
      %v2755 = vunpack.c.l.bf16 %v2751
      %v2756 = vunpack.c.l.bf16 %v2752
      %v2757 = vunpack.c.l.bf16 %v2753
      %v2758 = vunpack.c.l.bf16 %v2754
      %2759 = vmatprep.subr.mxu0 0.0
      %2760 = vmatpush1.msra.mxu0 %v2755
      %2761 = vmatprep.subr.mxu0 0.0
      %2762 = vmatpush1.msra.mxu0 %v2756
      %2763 = vmatprep.subr.mxu0 0.0
      %2764 = vmatpush1.msra.mxu0 %v2757
      %2765 = vmatprep.subr.mxu0 0.0
      %2766 = vmatpush1.msra.mxu0 %v2758
      %2767 = vmatprep.subr.mxu0 0.0
      %2768 = vmatpush1.msra.mxu0 0.0
      %2769 = vmatprep.subr.mxu0 0.0
      %2770 = vmatpush1.msra.mxu0 0.0
      %2771 = vmatprep.subr.mxu0 0.0
      %2772 = vmatpush1.msra.mxu0 0.0
      %2773 = vmatprep.subr.mxu0 0.0
      %2774 = vmatpush1.msra.mxu0 0.0
      %2775 = vmatprep.subr.mxu0 0.0
      %2776 = vmatpush1.msra.mxu0 0.0
      %2777 = vmatprep.subr.mxu0 0.0
      %2778 = vmatpush1.msra.mxu0 0.0
      %2779 = vmatprep.subr.mxu0 0.0
      %2780 = vmatpush1.msra.mxu0 0.0
      %2781 = vmatprep.subr.mxu0 0.0
      %2782 = vmatpush1.msra.mxu0 0.0
      %2783 = vmatprep.subr.mxu0 0.0
      %2784 = vmatpush1.msra.mxu0 0.0
      %2785 = vmatprep.subr.mxu0 0.0
      %2786 = vmatpush1.msra.mxu0 0.0
      %2787 = vmatprep.subr.mxu0 0.0
      %2788 = vmatpush1.msra.mxu0 0.0
      %2789 = vmatprep.subr.mxu0 0.0
      %2790 = vmatpush1.msra.mxu0 0.0
      %2791 = vmatprep.subr.mxu0 0.0
      %2792 = vmatpush1.msra.mxu0 0.0
      %2793 = vmatprep.subr.mxu0 0.0
      %2794 = vmatpush1.msra.mxu0 0.0
      %2795 = vmatprep.subr.mxu0 0.0
      %2796 = vmatpush1.msra.mxu0 0.0
      %2797 = vmatprep.subr.mxu0 0.0
      %2798 = vmatpush1.msra.mxu0 0.0
      %2799 = vmatprep.subr.mxu0 0.0
      %2800 = vmatpush1.msra.mxu0 0.0
      %2801 = vmatprep.subr.mxu0 0.0
      %2802 = vmatpush1.msra.mxu0 0.0
      %2803 = vmatprep.subr.mxu0 0.0
      %2804 = vmatpush1.msra.mxu0 0.0
      %2805 = vmatprep.subr.mxu0 0.0
      %2806 = vmatpush1.msra.mxu0 0.0
      %2807 = vmatprep.subr.mxu0 0.0
      %2808 = vmatpush1.msra.mxu0 0.0
      %2809 = vmatprep.subr.mxu0 0.0
      %2810 = vmatpush1.msra.mxu0 0.0
      %2811 = vmatprep.subr.mxu0 0.0
      %2812 = vmatpush1.msra.mxu0 0.0
      %2813 = vmatprep.subr.mxu0 0.0
      %2814 = vmatpush1.msra.mxu0 0.0
      %2815 = vmatprep.subr.mxu0 0.0
      %2816 = vmatpush1.msra.mxu0 0.0
      %2817 = vmatprep.subr.mxu0 0.0
      %2818 = vmatpush1.msra.mxu0 0.0
      %2819 = vmatprep.subr.mxu0 0.0
      %2820 = vmatpush1.msra.mxu0 0.0
      %2821 = vmatprep.subr.mxu0 0.0
      %2822 = vmatpush1.msra.mxu0 0.0
      %2823 = vmatprep.mubr.f32.mxu0 0.0
      %2824 = vmatmul.mubr.f32.gmra.mrb[0].mxu0 %v446
      %v2825 = vpop.f32.mrb[0].mxu0
      %v2826 = vadd.f32 0.0, %v2825
      %v2827 = vpop.f32.mrb[0].mxu0
      %2828 = vmatprep.mubr.f32.mxu0 0.0
      %2829 = vmatmul.mubr.f32.gmra.mrb[0].mxu0 %v449
      %v2830 = vpop.f32.mrb[0].mxu0
      %v2831 = vadd.f32 0.0, %v2830
      %v2832 = vpop.f32.mrb[0].mxu0
      %2833 = vmatprep.mubr.f32.mxu0 0.0
      %2834 = vmatmul.mubr.f32.gmra.mrb[0].mxu0 %v452
      %v2835 = vpop.f32.mrb[0].mxu0
      %v2836 = vadd.f32 0.0, %v2835
      %v2837 = vpop.f32.mrb[0].mxu0
      %2838 = vmatprep.mubr.f32.mxu0 0.0
      %2839 = vmatmul.mubr.f32.gmra.mrb[0].mxu0 %v455
      %v2840 = vpop.f32.mrb[0].mxu0
      %v2841 = vadd.f32 0.0, %v2840
      %v2842 = vpop.f32.mrb[0].mxu0
      %2843 = vmatprep.mubr.f32.mxu0 0.0
      %2844 = vmatmul.mubr.f32.gmra.mrb[0].mxu0 %v458
      %v2845 = vpop.f32.mrb[0].mxu0
      %v2846 = vadd.f32 0.0, %v2845
      %v2847 = vpop.f32.mrb[0].mxu0
      %2848 = vmatprep.mubr.f32.mxu0 0.0
      %2849 = vmatmul.mubr.f32.gmra.mrb[0].mxu0 %v461
      %v2850 = vpop.f32.mrb[0].mxu0
      %v2851 = vadd.f32 0.0, %v2850
      %v2852 = vpop.f32.mrb[0].mxu0
      %2853 = vmatprep.mubr.f32.mxu0 0.0
      %2854 = vmatmul.mubr.f32.gmra.mrb[0].mxu0 %v464
      %v2855 = vpop.f32.mrb[0].mxu0
      %v2856 = vadd.f32 0.0, %v2855
      %v2857 = vpop.f32.mrb[0].mxu0
      %2858 = vmatprep.mubr.f32.mxu0 0.0
      %2859 = vmatmul.mubr.f32.gmra.mrb[0].mxu0 %v467
      %v2860 = vpop.f32.mrb[0].mxu0
      %v2861 = vadd.f32 0.0, %v2860
      %v2862 = vpop.f32.mrb[0].mxu0
      %2863 = vmatprep.mubr.f32.mxu0 0.0
      %2864 = vmatmul.mubr.f32.gmra.mrb[0].mxu0 %v470
      %v2865 = vpop.f32.mrb[0].mxu0
      %v2866 = vadd.f32 0.0, %v2865
      %v2867 = vpop.f32.mrb[0].mxu0
      %2868 = vmatprep.mubr.f32.mxu0 0.0
      %2869 = vmatmul.mubr.f32.gmra.mrb[0].mxu0 %v473
      %v2870 = vpop.f32.mrb[0].mxu0
      %v2871 = vadd.f32 0.0, %v2870
      %v2872 = vpop.f32.mrb[0].mxu0
      %2873 = vmatprep.mubr.f32.mxu0 0.0
      %2874 = vmatmul.mubr.f32.gmra.mrb[0].mxu0 %v476
      %v2875 = vpop.f32.mrb[0].mxu0
      %v2876 = vadd.f32 0.0, %v2875
      %v2877 = vpop.f32.mrb[0].mxu0
      %2878 = vmatprep.mubr.f32.mxu0 0.0
      %2879 = vmatmul.mubr.f32.gmra.mrb[0].mxu0 %v479
      %v2880 = vpop.f32.mrb[0].mxu0
      %v2881 = vadd.f32 0.0, %v2880
      %v2882 = vpop.f32.mrb[0].mxu0
      %2883 = vmatprep.mubr.f32.mxu0 0.0
      %2884 = vmatmul.mubr.f32.gmra.mrb[0].mxu0 %v482
      %v2885 = vpop.f32.mrb[0].mxu0
      %v2886 = vadd.f32 0.0, %v2885
      %v2887 = vpop.f32.mrb[0].mxu0
      %2888 = vmatprep.mubr.f32.mxu0 0.0
      %2889 = vmatmul.mubr.f32.gmra.mrb[0].mxu0 %v485
      %v2890 = vpop.f32.mrb[0].mxu0
      %v2891 = vadd.f32 0.0, %v2890
      %v2892 = vpop.f32.mrb[0].mxu0
      %2893 = vmatprep.mubr.f32.mxu0 0.0
      %2894 = vmatmul.mubr.f32.gmra.mrb[0].mxu0 %v488
      %v2895 = vpop.f32.mrb[0].mxu0
      %v2896 = vadd.f32 0.0, %v2895
      %v2897 = vpop.f32.mrb[0].mxu0
      %2898 = vmatprep.mubr.f32.mxu0 0.0
      %2899 = vmatmul.mubr.f32.gmra.mrb[0].mxu0 %v491
      %v2900 = vpop.f32.mrb[0].mxu0
      %v2901 = vadd.f32 0.0, %v2900
      %v2902 = vpop.f32.mrb[0].mxu0
      %2903 = vdwg.mxu0
      %2904 = vset.pattern.permute.xlu0 9
      %2905 = vperm.xlu0 %2904, %v404
      %v2906 = vpop.permute.xlu0 %2905
      %2908 = vset.pattern.permute.xlu0 9
      %2909 = vperm.xlu0 %2908, %v405
      %v2910 = vpop.permute.xlu0 %2909
      %2912 = vset.pattern.permute.xlu0 9
      %2913 = vperm.xlu0 %2912, %v406
      %v2914 = vpop.permute.xlu0 %2913
      %2916 = vset.pattern.permute.xlu0 9
      %2917 = vperm.xlu0 %2916, %v407
      %v2918 = vpop.permute.xlu0 %2917
      %2920 = vset.pattern.permute.xlu0 9
      %2921 = vperm.xlu0 %2920, %v408
      %v2922 = vpop.permute.xlu0 %2921
      %2924 = vset.pattern.permute.xlu0 9
      %2925 = vperm.xlu0 %2924, %v409
      %v2926 = vpop.permute.xlu0 %2925
      %2928 = vset.pattern.permute.xlu0 9
      %2929 = vperm.xlu0 %2928, %v410
      %v2930 = vpop.permute.xlu0 %2929
      %2932 = vset.pattern.permute.xlu0 9
      %2933 = vperm.xlu0 %2932, %v411
      %v2934 = vpop.permute.xlu0 %2933
      %2936 = vset.pattern.permute.xlu0 9
      %2937 = vperm.xlu0 %2936, %v412
      %v2938 = vpop.permute.xlu0 %2937
      %2940 = vset.pattern.permute.xlu0 9
      %2941 = vperm.xlu0 %2940, %v413
      %v2942 = vpop.permute.xlu0 %2941
      %2944 = vset.pattern.permute.xlu0 9
      %2945 = vperm.xlu0 %2944, %v414
      %v2946 = vpop.permute.xlu0 %2945
      %2948 = vset.pattern.permute.xlu0 9
      %2949 = vperm.xlu0 %2948, %v415
      %v2950 = vpop.permute.xlu0 %2949
      %2952 = vset.pattern.permute.xlu0 9
      %2953 = vperm.xlu0 %2952, %v416
      %v2954 = vpop.permute.xlu0 %2953
      %2956 = vset.pattern.permute.xlu0 9
      %2957 = vperm.xlu0 %2956, %v417
      %v2958 = vpop.permute.xlu0 %2957
      %2960 = vset.pattern.permute.xlu0 9
      %2961 = vperm.xlu0 %2960, %v418
      %v2962 = vpop.permute.xlu0 %2961
      %2964 = vset.pattern.permute.xlu0 9
      %2965 = vperm.xlu0 %2964, %v419
      %v2966 = vpop.permute.xlu0 %2965
      %v2968 = vmul.f32 %v2906, %v2826
      %v2969 = vmul.f32 %v2910, %v2831
      %v2970 = vmul.f32 %v2914, %v2836
      %v2971 = vmul.f32 %v2918, %v2841
      %v2972 = vmul.f32 %v2922, %v2846
      %v2973 = vmul.f32 %v2926, %v2851
      %v2974 = vmul.f32 %v2930, %v2856
      %v2975 = vmul.f32 %v2934, %v2861
      %v2976 = vmul.f32 %v2938, %v2866
      %v2977 = vmul.f32 %v2942, %v2871
      %v2978 = vmul.f32 %v2946, %v2876
      %v2979 = vmul.f32 %v2950, %v2881
      %v2980 = vmul.f32 %v2954, %v2886
      %v2981 = vmul.f32 %v2958, %v2891
      %v2982 = vmul.f32 %v2962, %v2896
      %v2983 = vmul.f32 %v2966, %v2901
      %v2984 = vadd.f32 %v2734, %v2968
      %v2985 = vadd.f32 %v2735, %v2969
      %v2986 = vadd.f32 %v2736, %v2970
      %v2987 = vadd.f32 %v2737, %v2971
      %v2988 = vadd.f32 %v2738, %v2972
      %v2989 = vadd.f32 %v2739, %v2973
      %v2990 = vadd.f32 %v2740, %v2974
      %v2991 = vadd.f32 %v2741, %v2975
      %v2992 = vadd.f32 %v2742, %v2976
      %v2993 = vadd.f32 %v2743, %v2977
      %v2994 = vadd.f32 %v2744, %v2978
      %v2995 = vadd.f32 %v2745, %v2979
      %v2996 = vadd.f32 %v2746, %v2980
      %v2997 = vadd.f32 %v2747, %v2981
      %v2998 = vadd.f32 %v2748, %v2982
      %v2999 = vadd.f32 %v2749, %v2983
      %s3000 = scalar_lea.vmem %s376, 160
      %v3001 = vld [vmem:[%s3000] sm:$0xf]
      %v3002 = vld [vmem:[%s3000 + $0x4] sm:$0xf]
      %v3003 = vld [vmem:[%s3000 + $0x8] sm:$0xf]
      %v3004 = vld [vmem:[%s3000 + $0xc] sm:$0xf]
      %v3005 = vunpack.c.l.bf16 %v3001
      %v3006 = vunpack.c.l.bf16 %v3002
      %v3007 = vunpack.c.l.bf16 %v3003
      %v3008 = vunpack.c.l.bf16 %v3004
      %3009 = vmatprep.subr.mxu0 0.0
      %3010 = vmatpush1.msra.mxu0 %v3005
      %3011 = vmatprep.subr.mxu0 0.0
      %3012 = vmatpush1.msra.mxu0 %v3006
      %3013 = vmatprep.subr.mxu0 0.0
      %3014 = vmatpush1.msra.mxu0 %v3007
      %3015 = vmatprep.subr.mxu0 0.0
      %3016 = vmatpush1.msra.mxu0 %v3008
      %3017 = vmatprep.subr.mxu0 0.0
      %3018 = vmatpush1.msra.mxu0 0.0
      %3019 = vmatprep.subr.mxu0 0.0
      %3020 = vmatpush1.msra.mxu0 0.0
      %3021 = vmatprep.subr.mxu0 0.0
      %3022 = vmatpush1.msra.mxu0 0.0
      %3023 = vmatprep.subr.mxu0 0.0
      %3024 = vmatpush1.msra.mxu0 0.0
      %3025 = vmatprep.subr.mxu0 0.0
      %3026 = vmatpush1.msra.mxu0 0.0
      %3027 = vmatprep.subr.mxu0 0.0
      %3028 = vmatpush1.msra.mxu0 0.0
      %3029 = vmatprep.subr.mxu0 0.0
      %3030 = vmatpush1.msra.mxu0 0.0
      %3031 = vmatprep.subr.mxu0 0.0
      %3032 = vmatpush1.msra.mxu0 0.0
      %3033 = vmatprep.subr.mxu0 0.0
      %3034 = vmatpush1.msra.mxu0 0.0
      %3035 = vmatprep.subr.mxu0 0.0
      %3036 = vmatpush1.msra.mxu0 0.0
      %3037 = vmatprep.subr.mxu0 0.0
      %3038 = vmatpush1.msra.mxu0 0.0
      %3039 = vmatprep.subr.mxu0 0.0
      %3040 = vmatpush1.msra.mxu0 0.0
      %3041 = vmatprep.subr.mxu0 0.0
      %3042 = vmatpush1.msra.mxu0 0.0
      %3043 = vmatprep.subr.mxu0 0.0
      %3044 = vmatpush1.msra.mxu0 0.0
      %3045 = vmatprep.subr.mxu0 0.0
      %3046 = vmatpush1.msra.mxu0 0.0
      %3047 = vmatprep.subr.mxu0 0.0
      %3048 = vmatpush1.msra.mxu0 0.0
      %3049 = vmatprep.subr.mxu0 0.0
      %3050 = vmatpush1.msra.mxu0 0.0
      %3051 = vmatprep.subr.mxu0 0.0
      %3052 = vmatpush1.msra.mxu0 0.0
      %3053 = vmatprep.subr.mxu0 0.0
      %3054 = vmatpush1.msra.mxu0 0.0
      %3055 = vmatprep.subr.mxu0 0.0
      %3056 = vmatpush1.msra.mxu0 0.0
      %3057 = vmatprep.subr.mxu0 0.0
      %3058 = vmatpush1.msra.mxu0 0.0
      %3059 = vmatprep.subr.mxu0 0.0
      %3060 = vmatpush1.msra.mxu0 0.0
      %3061 = vmatprep.subr.mxu0 0.0
      %3062 = vmatpush1.msra.mxu0 0.0
      %3063 = vmatprep.subr.mxu0 0.0
      %3064 = vmatpush1.msra.mxu0 0.0
      %3065 = vmatprep.subr.mxu0 0.0
      %3066 = vmatpush1.msra.mxu0 0.0
      %3067 = vmatprep.subr.mxu0 0.0
      %3068 = vmatpush1.msra.mxu0 0.0
      %3069 = vmatprep.subr.mxu0 0.0
      %3070 = vmatpush1.msra.mxu0 0.0
      %3071 = vmatprep.subr.mxu0 0.0
      %3072 = vmatpush1.msra.mxu0 0.0
      %3073 = vmatprep.mubr.f32.mxu0 0.0
      %3074 = vmatmul.mubr.f32.gmra.mrb[0].mxu0 %v446
      %v3075 = vpop.f32.mrb[0].mxu0
      %v3076 = vadd.f32 0.0, %v3075
      %v3077 = vpop.f32.mrb[0].mxu0
      %3078 = vmatprep.mubr.f32.mxu0 0.0
      %3079 = vmatmul.mubr.f32.gmra.mrb[0].mxu0 %v449
      %v3080 = vpop.f32.mrb[0].mxu0
      %v3081 = vadd.f32 0.0, %v3080
      %v3082 = vpop.f32.mrb[0].mxu0
      %3083 = vmatprep.mubr.f32.mxu0 0.0
      %3084 = vmatmul.mubr.f32.gmra.mrb[0].mxu0 %v452
      %v3085 = vpop.f32.mrb[0].mxu0
      %v3086 = vadd.f32 0.0, %v3085
      %v3087 = vpop.f32.mrb[0].mxu0
      %3088 = vmatprep.mubr.f32.mxu0 0.0
      %3089 = vmatmul.mubr.f32.gmra.mrb[0].mxu0 %v455
      %v3090 = vpop.f32.mrb[0].mxu0
      %v3091 = vadd.f32 0.0, %v3090
      %v3092 = vpop.f32.mrb[0].mxu0
      %3093 = vmatprep.mubr.f32.mxu0 0.0
      %3094 = vmatmul.mubr.f32.gmra.mrb[0].mxu0 %v458
      %v3095 = vpop.f32.mrb[0].mxu0
      %v3096 = vadd.f32 0.0, %v3095
      %v3097 = vpop.f32.mrb[0].mxu0
      %3098 = vmatprep.mubr.f32.mxu0 0.0
      %3099 = vmatmul.mubr.f32.gmra.mrb[0].mxu0 %v461
      %v3100 = vpop.f32.mrb[0].mxu0
      %v3101 = vadd.f32 0.0, %v3100
      %v3102 = vpop.f32.mrb[0].mxu0
      %3103 = vmatprep.mubr.f32.mxu0 0.0
      %3104 = vmatmul.mubr.f32.gmra.mrb[0].mxu0 %v464
      %v3105 = vpop.f32.mrb[0].mxu0
      %v3106 = vadd.f32 0.0, %v3105
      %v3107 = vpop.f32.mrb[0].mxu0
      %3108 = vmatprep.mubr.f32.mxu0 0.0
      %3109 = vmatmul.mubr.f32.gmra.mrb[0].mxu0 %v467
      %v3110 = vpop.f32.mrb[0].mxu0
      %v3111 = vadd.f32 0.0, %v3110
      %v3112 = vpop.f32.mrb[0].mxu0
      %3113 = vmatprep.mubr.f32.mxu0 0.0
      %3114 = vmatmul.mubr.f32.gmra.mrb[0].mxu0 %v470
      %v3115 = vpop.f32.mrb[0].mxu0
      %v3116 = vadd.f32 0.0, %v3115
      %v3117 = vpop.f32.mrb[0].mxu0
      %3118 = vmatprep.mubr.f32.mxu0 0.0
      %3119 = vmatmul.mubr.f32.gmra.mrb[0].mxu0 %v473
      %v3120 = vpop.f32.mrb[0].mxu0
      %v3121 = vadd.f32 0.0, %v3120
      %v3122 = vpop.f32.mrb[0].mxu0
      %3123 = vmatprep.mubr.f32.mxu0 0.0
      %3124 = vmatmul.mubr.f32.gmra.mrb[0].mxu0 %v476
      %v3125 = vpop.f32.mrb[0].mxu0
      %v3126 = vadd.f32 0.0, %v3125
      %v3127 = vpop.f32.mrb[0].mxu0
      %3128 = vmatprep.mubr.f32.mxu0 0.0
      %3129 = vmatmul.mubr.f32.gmra.mrb[0].mxu0 %v479
      %v3130 = vpop.f32.mrb[0].mxu0
      %v3131 = vadd.f32 0.0, %v3130
      %v3132 = vpop.f32.mrb[0].mxu0
      %3133 = vmatprep.mubr.f32.mxu0 0.0
      %3134 = vmatmul.mubr.f32.gmra.mrb[0].mxu0 %v482
      %v3135 = vpop.f32.mrb[0].mxu0
      %v3136 = vadd.f32 0.0, %v3135
      %v3137 = vpop.f32.mrb[0].mxu0
      %3138 = vmatprep.mubr.f32.mxu0 0.0
      %3139 = vmatmul.mubr.f32.gmra.mrb[0].mxu0 %v485
      %v3140 = vpop.f32.mrb[0].mxu0
      %v3141 = vadd.f32 0.0, %v3140
      %v3142 = vpop.f32.mrb[0].mxu0
      %3143 = vmatprep.mubr.f32.mxu0 0.0
      %3144 = vmatmul.mubr.f32.gmra.mrb[0].mxu0 %v488
      %v3145 = vpop.f32.mrb[0].mxu0
      %v3146 = vadd.f32 0.0, %v3145
      %v3147 = vpop.f32.mrb[0].mxu0
      %3148 = vmatprep.mubr.f32.mxu0 0.0
      %3149 = vmatmul.mubr.f32.gmra.mrb[0].mxu0 %v491
      %v3150 = vpop.f32.mrb[0].mxu0
      %v3151 = vadd.f32 0.0, %v3150
      %v3152 = vpop.f32.mrb[0].mxu0
      %3153 = vdwg.mxu0
      %3154 = vset.pattern.permute.xlu0 10
      %3155 = vperm.xlu0 %3154, %v404
      %v3156 = vpop.permute.xlu0 %3155
      %3158 = vset.pattern.permute.xlu0 10
      %3159 = vperm.xlu0 %3158, %v405
      %v3160 = vpop.permute.xlu0 %3159
      %3162 = vset.pattern.permute.xlu0 10
      %3163 = vperm.xlu0 %3162, %v406
      %v3164 = vpop.permute.xlu0 %3163
      %3166 = vset.pattern.permute.xlu0 10
      %3167 = vperm.xlu0 %3166, %v407
      %v3168 = vpop.permute.xlu0 %3167
      %3170 = vset.pattern.permute.xlu0 10
      %3171 = vperm.xlu0 %3170, %v408
      %v3172 = vpop.permute.xlu0 %3171
      %3174 = vset.pattern.permute.xlu0 10
      %3175 = vperm.xlu0 %3174, %v409
      %v3176 = vpop.permute.xlu0 %3175
      %3178 = vset.pattern.permute.xlu0 10
      %3179 = vperm.xlu0 %3178, %v410
      %v3180 = vpop.permute.xlu0 %3179
      %3182 = vset.pattern.permute.xlu0 10
      %3183 = vperm.xlu0 %3182, %v411
      %v3184 = vpop.permute.xlu0 %3183
      %3186 = vset.pattern.permute.xlu0 10
      %3187 = vperm.xlu0 %3186, %v412
      %v3188 = vpop.permute.xlu0 %3187
      %3190 = vset.pattern.permute.xlu0 10
      %3191 = vperm.xlu0 %3190, %v413
      %v3192 = vpop.permute.xlu0 %3191
      %3194 = vset.pattern.permute.xlu0 10
      %3195 = vperm.xlu0 %3194, %v414
      %v3196 = vpop.permute.xlu0 %3195
      %3198 = vset.pattern.permute.xlu0 10
      %3199 = vperm.xlu0 %3198, %v415
      %v3200 = vpop.permute.xlu0 %3199
      %3202 = vset.pattern.permute.xlu0 10
      %3203 = vperm.xlu0 %3202, %v416
      %v3204 = vpop.permute.xlu0 %3203
      %3206 = vset.pattern.permute.xlu0 10
      %3207 = vperm.xlu0 %3206, %v417
      %v3208 = vpop.permute.xlu0 %3207
      %3210 = vset.pattern.permute.xlu0 10
      %3211 = vperm.xlu0 %3210, %v418
      %v3212 = vpop.permute.xlu0 %3211
      %3214 = vset.pattern.permute.xlu0 10
      %3215 = vperm.xlu0 %3214, %v419
      %v3216 = vpop.permute.xlu0 %3215
      %v3218 = vmul.f32 %v3156, %v3076
      %v3219 = vmul.f32 %v3160, %v3081
      %v3220 = vmul.f32 %v3164, %v3086
      %v3221 = vmul.f32 %v3168, %v3091
      %v3222 = vmul.f32 %v3172, %v3096
      %v3223 = vmul.f32 %v3176, %v3101
      %v3224 = vmul.f32 %v3180, %v3106
      %v3225 = vmul.f32 %v3184, %v3111
      %v3226 = vmul.f32 %v3188, %v3116
      %v3227 = vmul.f32 %v3192, %v3121
      %v3228 = vmul.f32 %v3196, %v3126
      %v3229 = vmul.f32 %v3200, %v3131
      %v3230 = vmul.f32 %v3204, %v3136
      %v3231 = vmul.f32 %v3208, %v3141
      %v3232 = vmul.f32 %v3212, %v3146
      %v3233 = vmul.f32 %v3216, %v3151
      %v3234 = vadd.f32 %v2984, %v3218
      %v3235 = vadd.f32 %v2985, %v3219
      %v3236 = vadd.f32 %v2986, %v3220
      %v3237 = vadd.f32 %v2987, %v3221
      %v3238 = vadd.f32 %v2988, %v3222
      %v3239 = vadd.f32 %v2989, %v3223
      %v3240 = vadd.f32 %v2990, %v3224
      %v3241 = vadd.f32 %v2991, %v3225
      %v3242 = vadd.f32 %v2992, %v3226
      %v3243 = vadd.f32 %v2993, %v3227
      %v3244 = vadd.f32 %v2994, %v3228
      %v3245 = vadd.f32 %v2995, %v3229
      %v3246 = vadd.f32 %v2996, %v3230
      %v3247 = vadd.f32 %v2997, %v3231
      %v3248 = vadd.f32 %v2998, %v3232
      %v3249 = vadd.f32 %v2999, %v3233
      %s3250 = scalar_lea.vmem %s376, 176
      %v3251 = vld [vmem:[%s3250] sm:$0xf]
      %v3252 = vld [vmem:[%s3250 + $0x4] sm:$0xf]
      %v3253 = vld [vmem:[%s3250 + $0x8] sm:$0xf]
      %v3254 = vld [vmem:[%s3250 + $0xc] sm:$0xf]
      %v3255 = vunpack.c.l.bf16 %v3251
      %v3256 = vunpack.c.l.bf16 %v3252
      %v3257 = vunpack.c.l.bf16 %v3253
      %v3258 = vunpack.c.l.bf16 %v3254
      %3259 = vmatprep.subr.mxu0 0.0
      %3260 = vmatpush1.msra.mxu0 %v3255
      %3261 = vmatprep.subr.mxu0 0.0
      %3262 = vmatpush1.msra.mxu0 %v3256
      %3263 = vmatprep.subr.mxu0 0.0
      %3264 = vmatpush1.msra.mxu0 %v3257
      %3265 = vmatprep.subr.mxu0 0.0
      %3266 = vmatpush1.msra.mxu0 %v3258
      %3267 = vmatprep.subr.mxu0 0.0
      %3268 = vmatpush1.msra.mxu0 0.0
      %3269 = vmatprep.subr.mxu0 0.0
      %3270 = vmatpush1.msra.mxu0 0.0
      %3271 = vmatprep.subr.mxu0 0.0
      %3272 = vmatpush1.msra.mxu0 0.0
      %3273 = vmatprep.subr.mxu0 0.0
      %3274 = vmatpush1.msra.mxu0 0.0
      %3275 = vmatprep.subr.mxu0 0.0
      %3276 = vmatpush1.msra.mxu0 0.0
      %3277 = vmatprep.subr.mxu0 0.0
      %3278 = vmatpush1.msra.mxu0 0.0
      %3279 = vmatprep.subr.mxu0 0.0
      %3280 = vmatpush1.msra.mxu0 0.0
      %3281 = vmatprep.subr.mxu0 0.0
      %3282 = vmatpush1.msra.mxu0 0.0
      %3283 = vmatprep.subr.mxu0 0.0
      %3284 = vmatpush1.msra.mxu0 0.0
      %3285 = vmatprep.subr.mxu0 0.0
      %3286 = vmatpush1.msra.mxu0 0.0
      %3287 = vmatprep.subr.mxu0 0.0
      %3288 = vmatpush1.msra.mxu0 0.0
      %3289 = vmatprep.subr.mxu0 0.0
      %3290 = vmatpush1.msra.mxu0 0.0
      %3291 = vmatprep.subr.mxu0 0.0
      %3292 = vmatpush1.msra.mxu0 0.0
      %3293 = vmatprep.subr.mxu0 0.0
      %3294 = vmatpush1.msra.mxu0 0.0
      %3295 = vmatprep.subr.mxu0 0.0
      %3296 = vmatpush1.msra.mxu0 0.0
      %3297 = vmatprep.subr.mxu0 0.0
      %3298 = vmatpush1.msra.mxu0 0.0
      %3299 = vmatprep.subr.mxu0 0.0
      %3300 = vmatpush1.msra.mxu0 0.0
      %3301 = vmatprep.subr.mxu0 0.0
      %3302 = vmatpush1.msra.mxu0 0.0
      %3303 = vmatprep.subr.mxu0 0.0
      %3304 = vmatpush1.msra.mxu0 0.0
      %3305 = vmatprep.subr.mxu0 0.0
      %3306 = vmatpush1.msra.mxu0 0.0
      %3307 = vmatprep.subr.mxu0 0.0
      %3308 = vmatpush1.msra.mxu0 0.0
      %3309 = vmatprep.subr.mxu0 0.0
      %3310 = vmatpush1.msra.mxu0 0.0
      %3311 = vmatprep.subr.mxu0 0.0
      %3312 = vmatpush1.msra.mxu0 0.0
      %3313 = vmatprep.subr.mxu0 0.0
      %3314 = vmatpush1.msra.mxu0 0.0
      %3315 = vmatprep.subr.mxu0 0.0
      %3316 = vmatpush1.msra.mxu0 0.0
      %3317 = vmatprep.subr.mxu0 0.0
      %3318 = vmatpush1.msra.mxu0 0.0
      %3319 = vmatprep.subr.mxu0 0.0
      %3320 = vmatpush1.msra.mxu0 0.0
      %3321 = vmatprep.subr.mxu0 0.0
      %3322 = vmatpush1.msra.mxu0 0.0
      %3323 = vmatprep.mubr.f32.mxu0 0.0
      %3324 = vmatmul.mubr.f32.gmra.mrb[0].mxu0 %v446
      %v3325 = vpop.f32.mrb[0].mxu0
      %v3326 = vadd.f32 0.0, %v3325
      %v3327 = vpop.f32.mrb[0].mxu0
      %3328 = vmatprep.mubr.f32.mxu0 0.0
      %3329 = vmatmul.mubr.f32.gmra.mrb[0].mxu0 %v449
      %v3330 = vpop.f32.mrb[0].mxu0
      %v3331 = vadd.f32 0.0, %v3330
      %v3332 = vpop.f32.mrb[0].mxu0
      %3333 = vmatprep.mubr.f32.mxu0 0.0
      %3334 = vmatmul.mubr.f32.gmra.mrb[0].mxu0 %v452
      %v3335 = vpop.f32.mrb[0].mxu0
      %v3336 = vadd.f32 0.0, %v3335
      %v3337 = vpop.f32.mrb[0].mxu0
      %3338 = vmatprep.mubr.f32.mxu0 0.0
      %3339 = vmatmul.mubr.f32.gmra.mrb[0].mxu0 %v455
      %v3340 = vpop.f32.mrb[0].mxu0
      %v3341 = vadd.f32 0.0, %v3340
      %v3342 = vpop.f32.mrb[0].mxu0
      %3343 = vmatprep.mubr.f32.mxu0 0.0
      %3344 = vmatmul.mubr.f32.gmra.mrb[0].mxu0 %v458
      %v3345 = vpop.f32.mrb[0].mxu0
      %v3346 = vadd.f32 0.0, %v3345
      %v3347 = vpop.f32.mrb[0].mxu0
      %3348 = vmatprep.mubr.f32.mxu0 0.0
      %3349 = vmatmul.mubr.f32.gmra.mrb[0].mxu0 %v461
      %v3350 = vpop.f32.mrb[0].mxu0
      %v3351 = vadd.f32 0.0, %v3350
      %v3352 = vpop.f32.mrb[0].mxu0
      %3353 = vmatprep.mubr.f32.mxu0 0.0
      %3354 = vmatmul.mubr.f32.gmra.mrb[0].mxu0 %v464
      %v3355 = vpop.f32.mrb[0].mxu0
      %v3356 = vadd.f32 0.0, %v3355
      %v3357 = vpop.f32.mrb[0].mxu0
      %3358 = vmatprep.mubr.f32.mxu0 0.0
      %3359 = vmatmul.mubr.f32.gmra.mrb[0].mxu0 %v467
      %v3360 = vpop.f32.mrb[0].mxu0
      %v3361 = vadd.f32 0.0, %v3360
      %v3362 = vpop.f32.mrb[0].mxu0
      %3363 = vmatprep.mubr.f32.mxu0 0.0
      %3364 = vmatmul.mubr.f32.gmra.mrb[0].mxu0 %v470
      %v3365 = vpop.f32.mrb[0].mxu0
      %v3366 = vadd.f32 0.0, %v3365
      %v3367 = vpop.f32.mrb[0].mxu0
      %3368 = vmatprep.mubr.f32.mxu0 0.0
      %3369 = vmatmul.mubr.f32.gmra.mrb[0].mxu0 %v473
      %v3370 = vpop.f32.mrb[0].mxu0
      %v3371 = vadd.f32 0.0, %v3370
      %v3372 = vpop.f32.mrb[0].mxu0
      %3373 = vmatprep.mubr.f32.mxu0 0.0
      %3374 = vmatmul.mubr.f32.gmra.mrb[0].mxu0 %v476
      %v3375 = vpop.f32.mrb[0].mxu0
      %v3376 = vadd.f32 0.0, %v3375
      %v3377 = vpop.f32.mrb[0].mxu0
      %3378 = vmatprep.mubr.f32.mxu0 0.0
      %3379 = vmatmul.mubr.f32.gmra.mrb[0].mxu0 %v479
      %v3380 = vpop.f32.mrb[0].mxu0
      %v3381 = vadd.f32 0.0, %v3380
      %v3382 = vpop.f32.mrb[0].mxu0
      %3383 = vmatprep.mubr.f32.mxu0 0.0
      %3384 = vmatmul.mubr.f32.gmra.mrb[0].mxu0 %v482
      %v3385 = vpop.f32.mrb[0].mxu0
      %v3386 = vadd.f32 0.0, %v3385
      %v3387 = vpop.f32.mrb[0].mxu0
      %3388 = vmatprep.mubr.f32.mxu0 0.0
      %3389 = vmatmul.mubr.f32.gmra.mrb[0].mxu0 %v485
      %v3390 = vpop.f32.mrb[0].mxu0
      %v3391 = vadd.f32 0.0, %v3390
      %v3392 = vpop.f32.mrb[0].mxu0
      %3393 = vmatprep.mubr.f32.mxu0 0.0
      %3394 = vmatmul.mubr.f32.gmra.mrb[0].mxu0 %v488
      %v3395 = vpop.f32.mrb[0].mxu0
      %v3396 = vadd.f32 0.0, %v3395
      %v3397 = vpop.f32.mrb[0].mxu0
      %3398 = vmatprep.mubr.f32.mxu0 0.0
      %3399 = vmatmul.mubr.f32.gmra.mrb[0].mxu0 %v491
      %v3400 = vpop.f32.mrb[0].mxu0
      %v3401 = vadd.f32 0.0, %v3400
      %v3402 = vpop.f32.mrb[0].mxu0
      %3403 = vdwg.mxu0
      %3404 = vset.pattern.permute.xlu0 11
      %3405 = vperm.xlu0 %3404, %v404
      %v3406 = vpop.permute.xlu0 %3405
      %3408 = vset.pattern.permute.xlu0 11
      %3409 = vperm.xlu0 %3408, %v405
      %v3410 = vpop.permute.xlu0 %3409
      %3412 = vset.pattern.permute.xlu0 11
      %3413 = vperm.xlu0 %3412, %v406
      %v3414 = vpop.permute.xlu0 %3413
      %3416 = vset.pattern.permute.xlu0 11
      %3417 = vperm.xlu0 %3416, %v407
      %v3418 = vpop.permute.xlu0 %3417
      %3420 = vset.pattern.permute.xlu0 11
      %3421 = vperm.xlu0 %3420, %v408
      %v3422 = vpop.permute.xlu0 %3421
      %3424 = vset.pattern.permute.xlu0 11
      %3425 = vperm.xlu0 %3424, %v409
      %v3426 = vpop.permute.xlu0 %3425
      %3428 = vset.pattern.permute.xlu0 11
      %3429 = vperm.xlu0 %3428, %v410
      %v3430 = vpop.permute.xlu0 %3429
      %3432 = vset.pattern.permute.xlu0 11
      %3433 = vperm.xlu0 %3432, %v411
      %v3434 = vpop.permute.xlu0 %3433
      %3436 = vset.pattern.permute.xlu0 11
      %3437 = vperm.xlu0 %3436, %v412
      %v3438 = vpop.permute.xlu0 %3437
      %3440 = vset.pattern.permute.xlu0 11
      %3441 = vperm.xlu0 %3440, %v413
      %v3442 = vpop.permute.xlu0 %3441
      %3444 = vset.pattern.permute.xlu0 11
      %3445 = vperm.xlu0 %3444, %v414
      %v3446 = vpop.permute.xlu0 %3445
      %3448 = vset.pattern.permute.xlu0 11
      %3449 = vperm.xlu0 %3448, %v415
      %v3450 = vpop.permute.xlu0 %3449
      %3452 = vset.pattern.permute.xlu0 11
      %3453 = vperm.xlu0 %3452, %v416
      %v3454 = vpop.permute.xlu0 %3453
      %3456 = vset.pattern.permute.xlu0 11
      %3457 = vperm.xlu0 %3456, %v417
      %v3458 = vpop.permute.xlu0 %3457
      %3460 = vset.pattern.permute.xlu0 11
      %3461 = vperm.xlu0 %3460, %v418
      %v3462 = vpop.permute.xlu0 %3461
      %3464 = vset.pattern.permute.xlu0 11
      %3465 = vperm.xlu0 %3464, %v419
      %v3466 = vpop.permute.xlu0 %3465
      %v3468 = vmul.f32 %v3406, %v3326
      %v3469 = vmul.f32 %v3410, %v3331
      %v3470 = vmul.f32 %v3414, %v3336
      %v3471 = vmul.f32 %v3418, %v3341
      %v3472 = vmul.f32 %v3422, %v3346
      %v3473 = vmul.f32 %v3426, %v3351
      %v3474 = vmul.f32 %v3430, %v3356
      %v3475 = vmul.f32 %v3434, %v3361
      %v3476 = vmul.f32 %v3438, %v3366
      %v3477 = vmul.f32 %v3442, %v3371
      %v3478 = vmul.f32 %v3446, %v3376
      %v3479 = vmul.f32 %v3450, %v3381
      %v3480 = vmul.f32 %v3454, %v3386
      %v3481 = vmul.f32 %v3458, %v3391
      %v3482 = vmul.f32 %v3462, %v3396
      %v3483 = vmul.f32 %v3466, %v3401
      %v3484 = vadd.f32 %v3234, %v3468
      %v3485 = vadd.f32 %v3235, %v3469
      %v3486 = vadd.f32 %v3236, %v3470
      %v3487 = vadd.f32 %v3237, %v3471
      %v3488 = vadd.f32 %v3238, %v3472
      %v3489 = vadd.f32 %v3239, %v3473
      %v3490 = vadd.f32 %v3240, %v3474
      %v3491 = vadd.f32 %v3241, %v3475
      %v3492 = vadd.f32 %v3242, %v3476
      %v3493 = vadd.f32 %v3243, %v3477
      %v3494 = vadd.f32 %v3244, %v3478
      %v3495 = vadd.f32 %v3245, %v3479
      %v3496 = vadd.f32 %v3246, %v3480
      %v3497 = vadd.f32 %v3247, %v3481
      %v3498 = vadd.f32 %v3248, %v3482
      %v3499 = vadd.f32 %v3249, %v3483
      %s3500 = scalar_lea.vmem %s376, 192
      %v3501 = vld [vmem:[%s3500] sm:$0xf]
      %v3502 = vld [vmem:[%s3500 + $0x4] sm:$0xf]
      %v3503 = vld [vmem:[%s3500 + $0x8] sm:$0xf]
      %v3504 = vld [vmem:[%s3500 + $0xc] sm:$0xf]
      %v3505 = vunpack.c.l.bf16 %v3501
      %v3506 = vunpack.c.l.bf16 %v3502
      %v3507 = vunpack.c.l.bf16 %v3503
      %v3508 = vunpack.c.l.bf16 %v3504
      %3509 = vmatprep.subr.mxu0 0.0
      %3510 = vmatpush1.msra.mxu0 %v3505
      %3511 = vmatprep.subr.mxu0 0.0
      %3512 = vmatpush1.msra.mxu0 %v3506
      %3513 = vmatprep.subr.mxu0 0.0
      %3514 = vmatpush1.msra.mxu0 %v3507
      %3515 = vmatprep.subr.mxu0 0.0
      %3516 = vmatpush1.msra.mxu0 %v3508
      %3517 = vmatprep.subr.mxu0 0.0
      %3518 = vmatpush1.msra.mxu0 0.0
      %3519 = vmatprep.subr.mxu0 0.0
      %3520 = vmatpush1.msra.mxu0 0.0
      %3521 = vmatprep.subr.mxu0 0.0
      %3522 = vmatpush1.msra.mxu0 0.0
      %3523 = vmatprep.subr.mxu0 0.0
      %3524 = vmatpush1.msra.mxu0 0.0
      %3525 = vmatprep.subr.mxu0 0.0
      %3526 = vmatpush1.msra.mxu0 0.0
      %3527 = vmatprep.subr.mxu0 0.0
      %3528 = vmatpush1.msra.mxu0 0.0
      %3529 = vmatprep.subr.mxu0 0.0
      %3530 = vmatpush1.msra.mxu0 0.0
      %3531 = vmatprep.subr.mxu0 0.0
      %3532 = vmatpush1.msra.mxu0 0.0
      %3533 = vmatprep.subr.mxu0 0.0
      %3534 = vmatpush1.msra.mxu0 0.0
      %3535 = vmatprep.subr.mxu0 0.0
      %3536 = vmatpush1.msra.mxu0 0.0
      %3537 = vmatprep.subr.mxu0 0.0
      %3538 = vmatpush1.msra.mxu0 0.0
      %3539 = vmatprep.subr.mxu0 0.0
      %3540 = vmatpush1.msra.mxu0 0.0
      %3541 = vmatprep.subr.mxu0 0.0
      %3542 = vmatpush1.msra.mxu0 0.0
      %3543 = vmatprep.subr.mxu0 0.0
      %3544 = vmatpush1.msra.mxu0 0.0
      %3545 = vmatprep.subr.mxu0 0.0
      %3546 = vmatpush1.msra.mxu0 0.0
      %3547 = vmatprep.subr.mxu0 0.0
      %3548 = vmatpush1.msra.mxu0 0.0
      %3549 = vmatprep.subr.mxu0 0.0
      %3550 = vmatpush1.msra.mxu0 0.0
      %3551 = vmatprep.subr.mxu0 0.0
      %3552 = vmatpush1.msra.mxu0 0.0
      %3553 = vmatprep.subr.mxu0 0.0
      %3554 = vmatpush1.msra.mxu0 0.0
      %3555 = vmatprep.subr.mxu0 0.0
      %3556 = vmatpush1.msra.mxu0 0.0
      %3557 = vmatprep.subr.mxu0 0.0
      %3558 = vmatpush1.msra.mxu0 0.0
      %3559 = vmatprep.subr.mxu0 0.0
      %3560 = vmatpush1.msra.mxu0 0.0
      %3561 = vmatprep.subr.mxu0 0.0
      %3562 = vmatpush1.msra.mxu0 0.0
      %3563 = vmatprep.subr.mxu0 0.0
      %3564 = vmatpush1.msra.mxu0 0.0
      %3565 = vmatprep.subr.mxu0 0.0
      %3566 = vmatpush1.msra.mxu0 0.0
      %3567 = vmatprep.subr.mxu0 0.0
      %3568 = vmatpush1.msra.mxu0 0.0
      %3569 = vmatprep.subr.mxu0 0.0
      %3570 = vmatpush1.msra.mxu0 0.0
      %3571 = vmatprep.subr.mxu0 0.0
      %3572 = vmatpush1.msra.mxu0 0.0
      %3573 = vmatprep.mubr.f32.mxu0 0.0
      %3574 = vmatmul.mubr.f32.gmra.mrb[0].mxu0 %v446
      %v3575 = vpop.f32.mrb[0].mxu0
      %v3576 = vadd.f32 0.0, %v3575
      %v3577 = vpop.f32.mrb[0].mxu0
      %3578 = vmatprep.mubr.f32.mxu0 0.0
      %3579 = vmatmul.mubr.f32.gmra.mrb[0].mxu0 %v449
      %v3580 = vpop.f32.mrb[0].mxu0
      %v3581 = vadd.f32 0.0, %v3580
      %v3582 = vpop.f32.mrb[0].mxu0
      %3583 = vmatprep.mubr.f32.mxu0 0.0
      %3584 = vmatmul.mubr.f32.gmra.mrb[0].mxu0 %v452
      %v3585 = vpop.f32.mrb[0].mxu0
      %v3586 = vadd.f32 0.0, %v3585
      %v3587 = vpop.f32.mrb[0].mxu0
      %3588 = vmatprep.mubr.f32.mxu0 0.0
      %3589 = vmatmul.mubr.f32.gmra.mrb[0].mxu0 %v455
      %v3590 = vpop.f32.mrb[0].mxu0
      %v3591 = vadd.f32 0.0, %v3590
      %v3592 = vpop.f32.mrb[0].mxu0
      %3593 = vmatprep.mubr.f32.mxu0 0.0
      %3594 = vmatmul.mubr.f32.gmra.mrb[0].mxu0 %v458
      %v3595 = vpop.f32.mrb[0].mxu0
      %v3596 = vadd.f32 0.0, %v3595
      %v3597 = vpop.f32.mrb[0].mxu0
      %3598 = vmatprep.mubr.f32.mxu0 0.0
      %3599 = vmatmul.mubr.f32.gmra.mrb[0].mxu0 %v461
      %v3600 = vpop.f32.mrb[0].mxu0
      %v3601 = vadd.f32 0.0, %v3600
      %v3602 = vpop.f32.mrb[0].mxu0
      %3603 = vmatprep.mubr.f32.mxu0 0.0
      %3604 = vmatmul.mubr.f32.gmra.mrb[0].mxu0 %v464
      %v3605 = vpop.f32.mrb[0].mxu0
      %v3606 = vadd.f32 0.0, %v3605
      %v3607 = vpop.f32.mrb[0].mxu0
      %3608 = vmatprep.mubr.f32.mxu0 0.0
      %3609 = vmatmul.mubr.f32.gmra.mrb[0].mxu0 %v467
      %v3610 = vpop.f32.mrb[0].mxu0
      %v3611 = vadd.f32 0.0, %v3610
      %v3612 = vpop.f32.mrb[0].mxu0
      %3613 = vmatprep.mubr.f32.mxu0 0.0
      %3614 = vmatmul.mubr.f32.gmra.mrb[0].mxu0 %v470
      %v3615 = vpop.f32.mrb[0].mxu0
      %v3616 = vadd.f32 0.0, %v3615
      %v3617 = vpop.f32.mrb[0].mxu0
      %3618 = vmatprep.mubr.f32.mxu0 0.0
      %3619 = vmatmul.mubr.f32.gmra.mrb[0].mxu0 %v473
      %v3620 = vpop.f32.mrb[0].mxu0
      %v3621 = vadd.f32 0.0, %v3620
      %v3622 = vpop.f32.mrb[0].mxu0
      %3623 = vmatprep.mubr.f32.mxu0 0.0
      %3624 = vmatmul.mubr.f32.gmra.mrb[0].mxu0 %v476
      %v3625 = vpop.f32.mrb[0].mxu0
      %v3626 = vadd.f32 0.0, %v3625
      %v3627 = vpop.f32.mrb[0].mxu0
      %3628 = vmatprep.mubr.f32.mxu0 0.0
      %3629 = vmatmul.mubr.f32.gmra.mrb[0].mxu0 %v479
      %v3630 = vpop.f32.mrb[0].mxu0
      %v3631 = vadd.f32 0.0, %v3630
      %v3632 = vpop.f32.mrb[0].mxu0
      %3633 = vmatprep.mubr.f32.mxu0 0.0
      %3634 = vmatmul.mubr.f32.gmra.mrb[0].mxu0 %v482
      %v3635 = vpop.f32.mrb[0].mxu0
      %v3636 = vadd.f32 0.0, %v3635
      %v3637 = vpop.f32.mrb[0].mxu0
      %3638 = vmatprep.mubr.f32.mxu0 0.0
      %3639 = vmatmul.mubr.f32.gmra.mrb[0].mxu0 %v485
      %v3640 = vpop.f32.mrb[0].mxu0
      %v3641 = vadd.f32 0.0, %v3640
      %v3642 = vpop.f32.mrb[0].mxu0
      %3643 = vmatprep.mubr.f32.mxu0 0.0
      %3644 = vmatmul.mubr.f32.gmra.mrb[0].mxu0 %v488
      %v3645 = vpop.f32.mrb[0].mxu0
      %v3646 = vadd.f32 0.0, %v3645
      %v3647 = vpop.f32.mrb[0].mxu0
      %3648 = vmatprep.mubr.f32.mxu0 0.0
      %3649 = vmatmul.mubr.f32.gmra.mrb[0].mxu0 %v491
      %v3650 = vpop.f32.mrb[0].mxu0
      %v3651 = vadd.f32 0.0, %v3650
      %v3652 = vpop.f32.mrb[0].mxu0
      %3653 = vdwg.mxu0
      %3654 = vset.pattern.permute.xlu0 12
      %3655 = vperm.xlu0 %3654, %v404
      %v3656 = vpop.permute.xlu0 %3655
      %3658 = vset.pattern.permute.xlu0 12
      %3659 = vperm.xlu0 %3658, %v405
      %v3660 = vpop.permute.xlu0 %3659
      %3662 = vset.pattern.permute.xlu0 12
      %3663 = vperm.xlu0 %3662, %v406
      %v3664 = vpop.permute.xlu0 %3663
      %3666 = vset.pattern.permute.xlu0 12
      %3667 = vperm.xlu0 %3666, %v407
      %v3668 = vpop.permute.xlu0 %3667
      %3670 = vset.pattern.permute.xlu0 12
      %3671 = vperm.xlu0 %3670, %v408
      %v3672 = vpop.permute.xlu0 %3671
      %3674 = vset.pattern.permute.xlu0 12
      %3675 = vperm.xlu0 %3674, %v409
      %v3676 = vpop.permute.xlu0 %3675
      %3678 = vset.pattern.permute.xlu0 12
      %3679 = vperm.xlu0 %3678, %v410
      %v3680 = vpop.permute.xlu0 %3679
      %3682 = vset.pattern.permute.xlu0 12
      %3683 = vperm.xlu0 %3682, %v411
      %v3684 = vpop.permute.xlu0 %3683
      %3686 = vset.pattern.permute.xlu0 12
      %3687 = vperm.xlu0 %3686, %v412
      %v3688 = vpop.permute.xlu0 %3687
      %3690 = vset.pattern.permute.xlu0 12
      %3691 = vperm.xlu0 %3690, %v413
      %v3692 = vpop.permute.xlu0 %3691
      %3694 = vset.pattern.permute.xlu0 12
      %3695 = vperm.xlu0 %3694, %v414
      %v3696 = vpop.permute.xlu0 %3695
      %3698 = vset.pattern.permute.xlu0 12
      %3699 = vperm.xlu0 %3698, %v415
      %v3700 = vpop.permute.xlu0 %3699
      %3702 = vset.pattern.permute.xlu0 12
      %3703 = vperm.xlu0 %3702, %v416
      %v3704 = vpop.permute.xlu0 %3703
      %3706 = vset.pattern.permute.xlu0 12
      %3707 = vperm.xlu0 %3706, %v417
      %v3708 = vpop.permute.xlu0 %3707
      %3710 = vset.pattern.permute.xlu0 12
      %3711 = vperm.xlu0 %3710, %v418
      %v3712 = vpop.permute.xlu0 %3711
      %3714 = vset.pattern.permute.xlu0 12
      %3715 = vperm.xlu0 %3714, %v419
      %v3716 = vpop.permute.xlu0 %3715
      %v3718 = vmul.f32 %v3656, %v3576
      %v3719 = vmul.f32 %v3660, %v3581
      %v3720 = vmul.f32 %v3664, %v3586
      %v3721 = vmul.f32 %v3668, %v3591
      %v3722 = vmul.f32 %v3672, %v3596
      %v3723 = vmul.f32 %v3676, %v3601
      %v3724 = vmul.f32 %v3680, %v3606
      %v3725 = vmul.f32 %v3684, %v3611
      %v3726 = vmul.f32 %v3688, %v3616
      %v3727 = vmul.f32 %v3692, %v3621
      %v3728 = vmul.f32 %v3696, %v3626
      %v3729 = vmul.f32 %v3700, %v3631
      %v3730 = vmul.f32 %v3704, %v3636
      %v3731 = vmul.f32 %v3708, %v3641
      %v3732 = vmul.f32 %v3712, %v3646
      %v3733 = vmul.f32 %v3716, %v3651
      %v3734 = vadd.f32 %v3484, %v3718
      %v3735 = vadd.f32 %v3485, %v3719
      %v3736 = vadd.f32 %v3486, %v3720
      %v3737 = vadd.f32 %v3487, %v3721
      %v3738 = vadd.f32 %v3488, %v3722
      %v3739 = vadd.f32 %v3489, %v3723
      %v3740 = vadd.f32 %v3490, %v3724
      %v3741 = vadd.f32 %v3491, %v3725
      %v3742 = vadd.f32 %v3492, %v3726
      %v3743 = vadd.f32 %v3493, %v3727
      %v3744 = vadd.f32 %v3494, %v3728
      %v3745 = vadd.f32 %v3495, %v3729
      %v3746 = vadd.f32 %v3496, %v3730
      %v3747 = vadd.f32 %v3497, %v3731
      %v3748 = vadd.f32 %v3498, %v3732
      %v3749 = vadd.f32 %v3499, %v3733
      %s3750 = scalar_lea.vmem %s376, 208
      %v3751 = vld [vmem:[%s3750] sm:$0xf]
      %v3752 = vld [vmem:[%s3750 + $0x4] sm:$0xf]
      %v3753 = vld [vmem:[%s3750 + $0x8] sm:$0xf]
      %v3754 = vld [vmem:[%s3750 + $0xc] sm:$0xf]
      %v3755 = vunpack.c.l.bf16 %v3751
      %v3756 = vunpack.c.l.bf16 %v3752
      %v3757 = vunpack.c.l.bf16 %v3753
      %v3758 = vunpack.c.l.bf16 %v3754
      %3759 = vmatprep.subr.mxu0 0.0
      %3760 = vmatpush1.msra.mxu0 %v3755
      %3761 = vmatprep.subr.mxu0 0.0
      %3762 = vmatpush1.msra.mxu0 %v3756
      %3763 = vmatprep.subr.mxu0 0.0
      %3764 = vmatpush1.msra.mxu0 %v3757
      %3765 = vmatprep.subr.mxu0 0.0
      %3766 = vmatpush1.msra.mxu0 %v3758
      %3767 = vmatprep.subr.mxu0 0.0
      %3768 = vmatpush1.msra.mxu0 0.0
      %3769 = vmatprep.subr.mxu0 0.0
      %3770 = vmatpush1.msra.mxu0 0.0
      %3771 = vmatprep.subr.mxu0 0.0
      %3772 = vmatpush1.msra.mxu0 0.0
      %3773 = vmatprep.subr.mxu0 0.0
      %3774 = vmatpush1.msra.mxu0 0.0
      %3775 = vmatprep.subr.mxu0 0.0
      %3776 = vmatpush1.msra.mxu0 0.0
      %3777 = vmatprep.subr.mxu0 0.0
      %3778 = vmatpush1.msra.mxu0 0.0
      %3779 = vmatprep.subr.mxu0 0.0
      %3780 = vmatpush1.msra.mxu0 0.0
      %3781 = vmatprep.subr.mxu0 0.0
      %3782 = vmatpush1.msra.mxu0 0.0
      %3783 = vmatprep.subr.mxu0 0.0
      %3784 = vmatpush1.msra.mxu0 0.0
      %3785 = vmatprep.subr.mxu0 0.0
      %3786 = vmatpush1.msra.mxu0 0.0
      %3787 = vmatprep.subr.mxu0 0.0
      %3788 = vmatpush1.msra.mxu0 0.0
      %3789 = vmatprep.subr.mxu0 0.0
      %3790 = vmatpush1.msra.mxu0 0.0
      %3791 = vmatprep.subr.mxu0 0.0
      %3792 = vmatpush1.msra.mxu0 0.0
      %3793 = vmatprep.subr.mxu0 0.0
      %3794 = vmatpush1.msra.mxu0 0.0
      %3795 = vmatprep.subr.mxu0 0.0
      %3796 = vmatpush1.msra.mxu0 0.0
      %3797 = vmatprep.subr.mxu0 0.0
      %3798 = vmatpush1.msra.mxu0 0.0
      %3799 = vmatprep.subr.mxu0 0.0
      %3800 = vmatpush1.msra.mxu0 0.0
      %3801 = vmatprep.subr.mxu0 0.0
      %3802 = vmatpush1.msra.mxu0 0.0
      %3803 = vmatprep.subr.mxu0 0.0
      %3804 = vmatpush1.msra.mxu0 0.0
      %3805 = vmatprep.subr.mxu0 0.0
      %3806 = vmatpush1.msra.mxu0 0.0
      %3807 = vmatprep.subr.mxu0 0.0
      %3808 = vmatpush1.msra.mxu0 0.0
      %3809 = vmatprep.subr.mxu0 0.0
      %3810 = vmatpush1.msra.mxu0 0.0
      %3811 = vmatprep.subr.mxu0 0.0
      %3812 = vmatpush1.msra.mxu0 0.0
      %3813 = vmatprep.subr.mxu0 0.0
      %3814 = vmatpush1.msra.mxu0 0.0
      %3815 = vmatprep.subr.mxu0 0.0
      %3816 = vmatpush1.msra.mxu0 0.0
      %3817 = vmatprep.subr.mxu0 0.0
      %3818 = vmatpush1.msra.mxu0 0.0
      %3819 = vmatprep.subr.mxu0 0.0
      %3820 = vmatpush1.msra.mxu0 0.0
      %3821 = vmatprep.subr.mxu0 0.0
      %3822 = vmatpush1.msra.mxu0 0.0
      %3823 = vmatprep.mubr.f32.mxu0 0.0
      %3824 = vmatmul.mubr.f32.gmra.mrb[0].mxu0 %v446
      %v3825 = vpop.f32.mrb[0].mxu0
      %v3826 = vadd.f32 0.0, %v3825
      %v3827 = vpop.f32.mrb[0].mxu0
      %3828 = vmatprep.mubr.f32.mxu0 0.0
      %3829 = vmatmul.mubr.f32.gmra.mrb[0].mxu0 %v449
      %v3830 = vpop.f32.mrb[0].mxu0
      %v3831 = vadd.f32 0.0, %v3830
      %v3832 = vpop.f32.mrb[0].mxu0
      %3833 = vmatprep.mubr.f32.mxu0 0.0
      %3834 = vmatmul.mubr.f32.gmra.mrb[0].mxu0 %v452
      %v3835 = vpop.f32.mrb[0].mxu0
      %v3836 = vadd.f32 0.0, %v3835
      %v3837 = vpop.f32.mrb[0].mxu0
      %3838 = vmatprep.mubr.f32.mxu0 0.0
      %3839 = vmatmul.mubr.f32.gmra.mrb[0].mxu0 %v455
      %v3840 = vpop.f32.mrb[0].mxu0
      %v3841 = vadd.f32 0.0, %v3840
      %v3842 = vpop.f32.mrb[0].mxu0
      %3843 = vmatprep.mubr.f32.mxu0 0.0
      %3844 = vmatmul.mubr.f32.gmra.mrb[0].mxu0 %v458
      %v3845 = vpop.f32.mrb[0].mxu0
      %v3846 = vadd.f32 0.0, %v3845
      %v3847 = vpop.f32.mrb[0].mxu0
      %3848 = vmatprep.mubr.f32.mxu0 0.0
      %3849 = vmatmul.mubr.f32.gmra.mrb[0].mxu0 %v461
      %v3850 = vpop.f32.mrb[0].mxu0
      %v3851 = vadd.f32 0.0, %v3850
      %v3852 = vpop.f32.mrb[0].mxu0
      %3853 = vmatprep.mubr.f32.mxu0 0.0
      %3854 = vmatmul.mubr.f32.gmra.mrb[0].mxu0 %v464
      %v3855 = vpop.f32.mrb[0].mxu0
      %v3856 = vadd.f32 0.0, %v3855
      %v3857 = vpop.f32.mrb[0].mxu0
      %3858 = vmatprep.mubr.f32.mxu0 0.0
      %3859 = vmatmul.mubr.f32.gmra.mrb[0].mxu0 %v467
      %v3860 = vpop.f32.mrb[0].mxu0
      %v3861 = vadd.f32 0.0, %v3860
      %v3862 = vpop.f32.mrb[0].mxu0
      %3863 = vmatprep.mubr.f32.mxu0 0.0
      %3864 = vmatmul.mubr.f32.gmra.mrb[0].mxu0 %v470
      %v3865 = vpop.f32.mrb[0].mxu0
      %v3866 = vadd.f32 0.0, %v3865
      %v3867 = vpop.f32.mrb[0].mxu0
      %3868 = vmatprep.mubr.f32.mxu0 0.0
      %3869 = vmatmul.mubr.f32.gmra.mrb[0].mxu0 %v473
      %v3870 = vpop.f32.mrb[0].mxu0
      %v3871 = vadd.f32 0.0, %v3870
      %v3872 = vpop.f32.mrb[0].mxu0
      %3873 = vmatprep.mubr.f32.mxu0 0.0
      %3874 = vmatmul.mubr.f32.gmra.mrb[0].mxu0 %v476
      %v3875 = vpop.f32.mrb[0].mxu0
      %v3876 = vadd.f32 0.0, %v3875
      %v3877 = vpop.f32.mrb[0].mxu0
      %3878 = vmatprep.mubr.f32.mxu0 0.0
      %3879 = vmatmul.mubr.f32.gmra.mrb[0].mxu0 %v479
      %v3880 = vpop.f32.mrb[0].mxu0
      %v3881 = vadd.f32 0.0, %v3880
      %v3882 = vpop.f32.mrb[0].mxu0
      %3883 = vmatprep.mubr.f32.mxu0 0.0
      %3884 = vmatmul.mubr.f32.gmra.mrb[0].mxu0 %v482
      %v3885 = vpop.f32.mrb[0].mxu0
      %v3886 = vadd.f32 0.0, %v3885
      %v3887 = vpop.f32.mrb[0].mxu0
      %3888 = vmatprep.mubr.f32.mxu0 0.0
      %3889 = vmatmul.mubr.f32.gmra.mrb[0].mxu0 %v485
      %v3890 = vpop.f32.mrb[0].mxu0
      %v3891 = vadd.f32 0.0, %v3890
      %v3892 = vpop.f32.mrb[0].mxu0
      %3893 = vmatprep.mubr.f32.mxu0 0.0
      %3894 = vmatmul.mubr.f32.gmra.mrb[0].mxu0 %v488
      %v3895 = vpop.f32.mrb[0].mxu0
      %v3896 = vadd.f32 0.0, %v3895
      %v3897 = vpop.f32.mrb[0].mxu0
      %3898 = vmatprep.mubr.f32.mxu0 0.0
      %3899 = vmatmul.mubr.f32.gmra.mrb[0].mxu0 %v491
      %v3900 = vpop.f32.mrb[0].mxu0
      %v3901 = vadd.f32 0.0, %v3900
      %v3902 = vpop.f32.mrb[0].mxu0
      %3903 = vdwg.mxu0
      %3904 = vset.pattern.permute.xlu0 13
      %3905 = vperm.xlu0 %3904, %v404
      %v3906 = vpop.permute.xlu0 %3905
      %3908 = vset.pattern.permute.xlu0 13
      %3909 = vperm.xlu0 %3908, %v405
      %v3910 = vpop.permute.xlu0 %3909
      %3912 = vset.pattern.permute.xlu0 13
      %3913 = vperm.xlu0 %3912, %v406
      %v3914 = vpop.permute.xlu0 %3913
      %3916 = vset.pattern.permute.xlu0 13
      %3917 = vperm.xlu0 %3916, %v407
      %v3918 = vpop.permute.xlu0 %3917
      %3920 = vset.pattern.permute.xlu0 13
      %3921 = vperm.xlu0 %3920, %v408
      %v3922 = vpop.permute.xlu0 %3921
      %3924 = vset.pattern.permute.xlu0 13
      %3925 = vperm.xlu0 %3924, %v409
      %v3926 = vpop.permute.xlu0 %3925
      %3928 = vset.pattern.permute.xlu0 13
      %3929 = vperm.xlu0 %3928, %v410
      %v3930 = vpop.permute.xlu0 %3929
      %3932 = vset.pattern.permute.xlu0 13
      %3933 = vperm.xlu0 %3932, %v411
      %v3934 = vpop.permute.xlu0 %3933
      %3936 = vset.pattern.permute.xlu0 13
      %3937 = vperm.xlu0 %3936, %v412
      %v3938 = vpop.permute.xlu0 %3937
      %3940 = vset.pattern.permute.xlu0 13
      %3941 = vperm.xlu0 %3940, %v413
      %v3942 = vpop.permute.xlu0 %3941
      %3944 = vset.pattern.permute.xlu0 13
      %3945 = vperm.xlu0 %3944, %v414
      %v3946 = vpop.permute.xlu0 %3945
      %3948 = vset.pattern.permute.xlu0 13
      %3949 = vperm.xlu0 %3948, %v415
      %v3950 = vpop.permute.xlu0 %3949
      %3952 = vset.pattern.permute.xlu0 13
      %3953 = vperm.xlu0 %3952, %v416
      %v3954 = vpop.permute.xlu0 %3953
      %3956 = vset.pattern.permute.xlu0 13
      %3957 = vperm.xlu0 %3956, %v417
      %v3958 = vpop.permute.xlu0 %3957
      %3960 = vset.pattern.permute.xlu0 13
      %3961 = vperm.xlu0 %3960, %v418
      %v3962 = vpop.permute.xlu0 %3961
      %3964 = vset.pattern.permute.xlu0 13
      %3965 = vperm.xlu0 %3964, %v419
      %v3966 = vpop.permute.xlu0 %3965
      %v3968 = vmul.f32 %v3906, %v3826
      %v3969 = vmul.f32 %v3910, %v3831
      %v3970 = vmul.f32 %v3914, %v3836
      %v3971 = vmul.f32 %v3918, %v3841
      %v3972 = vmul.f32 %v3922, %v3846
      %v3973 = vmul.f32 %v3926, %v3851
      %v3974 = vmul.f32 %v3930, %v3856
      %v3975 = vmul.f32 %v3934, %v3861
      %v3976 = vmul.f32 %v3938, %v3866
      %v3977 = vmul.f32 %v3942, %v3871
      %v3978 = vmul.f32 %v3946, %v3876
      %v3979 = vmul.f32 %v3950, %v3881
      %v3980 = vmul.f32 %v3954, %v3886
      %v3981 = vmul.f32 %v3958, %v3891
      %v3982 = vmul.f32 %v3962, %v3896
      %v3983 = vmul.f32 %v3966, %v3901
      %v3984 = vadd.f32 %v3734, %v3968
      %v3985 = vadd.f32 %v3735, %v3969
      %v3986 = vadd.f32 %v3736, %v3970
      %v3987 = vadd.f32 %v3737, %v3971
      %v3988 = vadd.f32 %v3738, %v3972
      %v3989 = vadd.f32 %v3739, %v3973
      %v3990 = vadd.f32 %v3740, %v3974
      %v3991 = vadd.f32 %v3741, %v3975
      %v3992 = vadd.f32 %v3742, %v3976
      %v3993 = vadd.f32 %v3743, %v3977
      %v3994 = vadd.f32 %v3744, %v3978
      %v3995 = vadd.f32 %v3745, %v3979
      %v3996 = vadd.f32 %v3746, %v3980
      %v3997 = vadd.f32 %v3747, %v3981
      %v3998 = vadd.f32 %v3748, %v3982
      %v3999 = vadd.f32 %v3749, %v3983
      %s4000 = scalar_lea.vmem %s376, 224
      %v4001 = vld [vmem:[%s4000] sm:$0xf]
      %v4002 = vld [vmem:[%s4000 + $0x4] sm:$0xf]
      %v4003 = vld [vmem:[%s4000 + $0x8] sm:$0xf]
      %v4004 = vld [vmem:[%s4000 + $0xc] sm:$0xf]
      %v4005 = vunpack.c.l.bf16 %v4001
      %v4006 = vunpack.c.l.bf16 %v4002
      %v4007 = vunpack.c.l.bf16 %v4003
      %v4008 = vunpack.c.l.bf16 %v4004
      %4009 = vmatprep.subr.mxu0 0.0
      %4010 = vmatpush1.msra.mxu0 %v4005
      %4011 = vmatprep.subr.mxu0 0.0
      %4012 = vmatpush1.msra.mxu0 %v4006
      %4013 = vmatprep.subr.mxu0 0.0
      %4014 = vmatpush1.msra.mxu0 %v4007
      %4015 = vmatprep.subr.mxu0 0.0
      %4016 = vmatpush1.msra.mxu0 %v4008
      %4017 = vmatprep.subr.mxu0 0.0
      %4018 = vmatpush1.msra.mxu0 0.0
      %4019 = vmatprep.subr.mxu0 0.0
      %4020 = vmatpush1.msra.mxu0 0.0
      %4021 = vmatprep.subr.mxu0 0.0
      %4022 = vmatpush1.msra.mxu0 0.0
      %4023 = vmatprep.subr.mxu0 0.0
      %4024 = vmatpush1.msra.mxu0 0.0
      %4025 = vmatprep.subr.mxu0 0.0
      %4026 = vmatpush1.msra.mxu0 0.0
      %4027 = vmatprep.subr.mxu0 0.0
      %4028 = vmatpush1.msra.mxu0 0.0
      %4029 = vmatprep.subr.mxu0 0.0
      %4030 = vmatpush1.msra.mxu0 0.0
      %4031 = vmatprep.subr.mxu0 0.0
      %4032 = vmatpush1.msra.mxu0 0.0
      %4033 = vmatprep.subr.mxu0 0.0
      %4034 = vmatpush1.msra.mxu0 0.0
      %4035 = vmatprep.subr.mxu0 0.0
      %4036 = vmatpush1.msra.mxu0 0.0
      %4037 = vmatprep.subr.mxu0 0.0
      %4038 = vmatpush1.msra.mxu0 0.0
      %4039 = vmatprep.subr.mxu0 0.0
      %4040 = vmatpush1.msra.mxu0 0.0
      %4041 = vmatprep.subr.mxu0 0.0
      %4042 = vmatpush1.msra.mxu0 0.0
      %4043 = vmatprep.subr.mxu0 0.0
      %4044 = vmatpush1.msra.mxu0 0.0
      %4045 = vmatprep.subr.mxu0 0.0
      %4046 = vmatpush1.msra.mxu0 0.0
      %4047 = vmatprep.subr.mxu0 0.0
      %4048 = vmatpush1.msra.mxu0 0.0
      %4049 = vmatprep.subr.mxu0 0.0
      %4050 = vmatpush1.msra.mxu0 0.0
      %4051 = vmatprep.subr.mxu0 0.0
      %4052 = vmatpush1.msra.mxu0 0.0
      %4053 = vmatprep.subr.mxu0 0.0
      %4054 = vmatpush1.msra.mxu0 0.0
      %4055 = vmatprep.subr.mxu0 0.0
      %4056 = vmatpush1.msra.mxu0 0.0
      %4057 = vmatprep.subr.mxu0 0.0
      %4058 = vmatpush1.msra.mxu0 0.0
      %4059 = vmatprep.subr.mxu0 0.0
      %4060 = vmatpush1.msra.mxu0 0.0
      %4061 = vmatprep.subr.mxu0 0.0
      %4062 = vmatpush1.msra.mxu0 0.0
      %4063 = vmatprep.subr.mxu0 0.0
      %4064 = vmatpush1.msra.mxu0 0.0
      %4065 = vmatprep.subr.mxu0 0.0
      %4066 = vmatpush1.msra.mxu0 0.0
      %4067 = vmatprep.subr.mxu0 0.0
      %4068 = vmatpush1.msra.mxu0 0.0
      %4069 = vmatprep.subr.mxu0 0.0
      %4070 = vmatpush1.msra.mxu0 0.0
      %4071 = vmatprep.subr.mxu0 0.0
      %4072 = vmatpush1.msra.mxu0 0.0
      %4073 = vmatprep.mubr.f32.mxu0 0.0
      %4074 = vmatmul.mubr.f32.gmra.mrb[0].mxu0 %v446
      %v4075 = vpop.f32.mrb[0].mxu0
      %v4076 = vadd.f32 0.0, %v4075
      %v4077 = vpop.f32.mrb[0].mxu0
      %4078 = vmatprep.mubr.f32.mxu0 0.0
      %4079 = vmatmul.mubr.f32.gmra.mrb[0].mxu0 %v449
      %v4080 = vpop.f32.mrb[0].mxu0
      %v4081 = vadd.f32 0.0, %v4080
      %v4082 = vpop.f32.mrb[0].mxu0
      %4083 = vmatprep.mubr.f32.mxu0 0.0
      %4084 = vmatmul.mubr.f32.gmra.mrb[0].mxu0 %v452
      %v4085 = vpop.f32.mrb[0].mxu0
      %v4086 = vadd.f32 0.0, %v4085
      %v4087 = vpop.f32.mrb[0].mxu0
      %4088 = vmatprep.mubr.f32.mxu0 0.0
      %4089 = vmatmul.mubr.f32.gmra.mrb[0].mxu0 %v455
      %v4090 = vpop.f32.mrb[0].mxu0
      %v4091 = vadd.f32 0.0, %v4090
      %v4092 = vpop.f32.mrb[0].mxu0
      %4093 = vmatprep.mubr.f32.mxu0 0.0
      %4094 = vmatmul.mubr.f32.gmra.mrb[0].mxu0 %v458
      %v4095 = vpop.f32.mrb[0].mxu0
      %v4096 = vadd.f32 0.0, %v4095
      %v4097 = vpop.f32.mrb[0].mxu0
      %4098 = vmatprep.mubr.f32.mxu0 0.0
      %4099 = vmatmul.mubr.f32.gmra.mrb[0].mxu0 %v461
      %v4100 = vpop.f32.mrb[0].mxu0
      %v4101 = vadd.f32 0.0, %v4100
      %v4102 = vpop.f32.mrb[0].mxu0
      %4103 = vmatprep.mubr.f32.mxu0 0.0
      %4104 = vmatmul.mubr.f32.gmra.mrb[0].mxu0 %v464
      %v4105 = vpop.f32.mrb[0].mxu0
      %v4106 = vadd.f32 0.0, %v4105
      %v4107 = vpop.f32.mrb[0].mxu0
      %4108 = vmatprep.mubr.f32.mxu0 0.0
      %4109 = vmatmul.mubr.f32.gmra.mrb[0].mxu0 %v467
      %v4110 = vpop.f32.mrb[0].mxu0
      %v4111 = vadd.f32 0.0, %v4110
      %v4112 = vpop.f32.mrb[0].mxu0
      %4113 = vmatprep.mubr.f32.mxu0 0.0
      %4114 = vmatmul.mubr.f32.gmra.mrb[0].mxu0 %v470
      %v4115 = vpop.f32.mrb[0].mxu0
      %v4116 = vadd.f32 0.0, %v4115
      %v4117 = vpop.f32.mrb[0].mxu0
      %4118 = vmatprep.mubr.f32.mxu0 0.0
      %4119 = vmatmul.mubr.f32.gmra.mrb[0].mxu0 %v473
      %v4120 = vpop.f32.mrb[0].mxu0
      %v4121 = vadd.f32 0.0, %v4120
      %v4122 = vpop.f32.mrb[0].mxu0
      %4123 = vmatprep.mubr.f32.mxu0 0.0
      %4124 = vmatmul.mubr.f32.gmra.mrb[0].mxu0 %v476
      %v4125 = vpop.f32.mrb[0].mxu0
      %v4126 = vadd.f32 0.0, %v4125
      %v4127 = vpop.f32.mrb[0].mxu0
      %4128 = vmatprep.mubr.f32.mxu0 0.0
      %4129 = vmatmul.mubr.f32.gmra.mrb[0].mxu0 %v479
      %v4130 = vpop.f32.mrb[0].mxu0
      %v4131 = vadd.f32 0.0, %v4130
      %v4132 = vpop.f32.mrb[0].mxu0
      %4133 = vmatprep.mubr.f32.mxu0 0.0
      %4134 = vmatmul.mubr.f32.gmra.mrb[0].mxu0 %v482
      %v4135 = vpop.f32.mrb[0].mxu0
      %v4136 = vadd.f32 0.0, %v4135
      %v4137 = vpop.f32.mrb[0].mxu0
      %4138 = vmatprep.mubr.f32.mxu0 0.0
      %4139 = vmatmul.mubr.f32.gmra.mrb[0].mxu0 %v485
      %v4140 = vpop.f32.mrb[0].mxu0
      %v4141 = vadd.f32 0.0, %v4140
      %v4142 = vpop.f32.mrb[0].mxu0
      %4143 = vmatprep.mubr.f32.mxu0 0.0
      %4144 = vmatmul.mubr.f32.gmra.mrb[0].mxu0 %v488
      %v4145 = vpop.f32.mrb[0].mxu0
      %v4146 = vadd.f32 0.0, %v4145
      %v4147 = vpop.f32.mrb[0].mxu0
      %4148 = vmatprep.mubr.f32.mxu0 0.0
      %4149 = vmatmul.mubr.f32.gmra.mrb[0].mxu0 %v491
      %v4150 = vpop.f32.mrb[0].mxu0
      %v4151 = vadd.f32 0.0, %v4150
      %v4152 = vpop.f32.mrb[0].mxu0
      %4153 = vdwg.mxu0
      %4154 = vset.pattern.permute.xlu0 14
      %4155 = vperm.xlu0 %4154, %v404
      %v4156 = vpop.permute.xlu0 %4155
      %4158 = vset.pattern.permute.xlu0 14
      %4159 = vperm.xlu0 %4158, %v405
      %v4160 = vpop.permute.xlu0 %4159
      %4162 = vset.pattern.permute.xlu0 14
      %4163 = vperm.xlu0 %4162, %v406
      %v4164 = vpop.permute.xlu0 %4163
      %4166 = vset.pattern.permute.xlu0 14
      %4167 = vperm.xlu0 %4166, %v407
      %v4168 = vpop.permute.xlu0 %4167
      %4170 = vset.pattern.permute.xlu0 14
      %4171 = vperm.xlu0 %4170, %v408
      %v4172 = vpop.permute.xlu0 %4171
      %4174 = vset.pattern.permute.xlu0 14
      %4175 = vperm.xlu0 %4174, %v409
      %v4176 = vpop.permute.xlu0 %4175
      %4178 = vset.pattern.permute.xlu0 14
      %4179 = vperm.xlu0 %4178, %v410
      %v4180 = vpop.permute.xlu0 %4179
      %4182 = vset.pattern.permute.xlu0 14
      %4183 = vperm.xlu0 %4182, %v411
      %v4184 = vpop.permute.xlu0 %4183
      %4186 = vset.pattern.permute.xlu0 14
      %4187 = vperm.xlu0 %4186, %v412
      %v4188 = vpop.permute.xlu0 %4187
      %4190 = vset.pattern.permute.xlu0 14
      %4191 = vperm.xlu0 %4190, %v413
      %v4192 = vpop.permute.xlu0 %4191
      %4194 = vset.pattern.permute.xlu0 14
      %4195 = vperm.xlu0 %4194, %v414
      %v4196 = vpop.permute.xlu0 %4195
      %4198 = vset.pattern.permute.xlu0 14
      %4199 = vperm.xlu0 %4198, %v415
      %v4200 = vpop.permute.xlu0 %4199
      %4202 = vset.pattern.permute.xlu0 14
      %4203 = vperm.xlu0 %4202, %v416
      %v4204 = vpop.permute.xlu0 %4203
      %4206 = vset.pattern.permute.xlu0 14
      %4207 = vperm.xlu0 %4206, %v417
      %v4208 = vpop.permute.xlu0 %4207
      %4210 = vset.pattern.permute.xlu0 14
      %4211 = vperm.xlu0 %4210, %v418
      %v4212 = vpop.permute.xlu0 %4211
      %4214 = vset.pattern.permute.xlu0 14
      %4215 = vperm.xlu0 %4214, %v419
      %v4216 = vpop.permute.xlu0 %4215
      %v4218 = vmul.f32 %v4156, %v4076
      %v4219 = vmul.f32 %v4160, %v4081
      %v4220 = vmul.f32 %v4164, %v4086
      %v4221 = vmul.f32 %v4168, %v4091
      %v4222 = vmul.f32 %v4172, %v4096
      %v4223 = vmul.f32 %v4176, %v4101
      %v4224 = vmul.f32 %v4180, %v4106
      %v4225 = vmul.f32 %v4184, %v4111
      %v4226 = vmul.f32 %v4188, %v4116
      %v4227 = vmul.f32 %v4192, %v4121
      %v4228 = vmul.f32 %v4196, %v4126
      %v4229 = vmul.f32 %v4200, %v4131
      %v4230 = vmul.f32 %v4204, %v4136
      %v4231 = vmul.f32 %v4208, %v4141
      %v4232 = vmul.f32 %v4212, %v4146
      %v4233 = vmul.f32 %v4216, %v4151
      %v4234 = vadd.f32 %v3984, %v4218
      %v4235 = vadd.f32 %v3985, %v4219
      %v4236 = vadd.f32 %v3986, %v4220
      %v4237 = vadd.f32 %v3987, %v4221
      %v4238 = vadd.f32 %v3988, %v4222
      %v4239 = vadd.f32 %v3989, %v4223
      %v4240 = vadd.f32 %v3990, %v4224
      %v4241 = vadd.f32 %v3991, %v4225
      %v4242 = vadd.f32 %v3992, %v4226
      %v4243 = vadd.f32 %v3993, %v4227
      %v4244 = vadd.f32 %v3994, %v4228
      %v4245 = vadd.f32 %v3995, %v4229
      %v4246 = vadd.f32 %v3996, %v4230
      %v4247 = vadd.f32 %v3997, %v4231
      %v4248 = vadd.f32 %v3998, %v4232
      %v4249 = vadd.f32 %v3999, %v4233
      %s4250 = scalar_lea.vmem %s376, 240
      %v4251 = vld [vmem:[%s4250] sm:$0xf]
      %v4252 = vld [vmem:[%s4250 + $0x4] sm:$0xf]
      %v4253 = vld [vmem:[%s4250 + $0x8] sm:$0xf]
      %v4254 = vld [vmem:[%s4250 + $0xc] sm:$0xf]
      %v4255 = vunpack.c.l.bf16 %v4251
      %v4256 = vunpack.c.l.bf16 %v4252
      %v4257 = vunpack.c.l.bf16 %v4253
      %v4258 = vunpack.c.l.bf16 %v4254
      %4259 = vmatprep.subr.mxu0 0.0
      %4260 = vmatpush1.msra.mxu0 %v4255
      %4261 = vmatprep.subr.mxu0 0.0
      %4262 = vmatpush1.msra.mxu0 %v4256
      %4263 = vmatprep.subr.mxu0 0.0
      %4264 = vmatpush1.msra.mxu0 %v4257
      %4265 = vmatprep.subr.mxu0 0.0
      %4266 = vmatpush1.msra.mxu0 %v4258
      %4267 = vmatprep.subr.mxu0 0.0
      %4268 = vmatpush1.msra.mxu0 0.0
      %4269 = vmatprep.subr.mxu0 0.0
      %4270 = vmatpush1.msra.mxu0 0.0
      %4271 = vmatprep.subr.mxu0 0.0
      %4272 = vmatpush1.msra.mxu0 0.0
      %4273 = vmatprep.subr.mxu0 0.0
      %4274 = vmatpush1.msra.mxu0 0.0
      %4275 = vmatprep.subr.mxu0 0.0
      %4276 = vmatpush1.msra.mxu0 0.0
      %4277 = vmatprep.subr.mxu0 0.0
      %4278 = vmatpush1.msra.mxu0 0.0
      %4279 = vmatprep.subr.mxu0 0.0
      %4280 = vmatpush1.msra.mxu0 0.0
      %4281 = vmatprep.subr.mxu0 0.0
      %4282 = vmatpush1.msra.mxu0 0.0
      %4283 = vmatprep.subr.mxu0 0.0
      %4284 = vmatpush1.msra.mxu0 0.0
      %4285 = vmatprep.subr.mxu0 0.0
      %4286 = vmatpush1.msra.mxu0 0.0
      %4287 = vmatprep.subr.mxu0 0.0
      %4288 = vmatpush1.msra.mxu0 0.0
      %4289 = vmatprep.subr.mxu0 0.0
      %4290 = vmatpush1.msra.mxu0 0.0
      %4291 = vmatprep.subr.mxu0 0.0
      %4292 = vmatpush1.msra.mxu0 0.0
      %4293 = vmatprep.subr.mxu0 0.0
      %4294 = vmatpush1.msra.mxu0 0.0
      %4295 = vmatprep.subr.mxu0 0.0
      %4296 = vmatpush1.msra.mxu0 0.0
      %4297 = vmatprep.subr.mxu0 0.0
      %4298 = vmatpush1.msra.mxu0 0.0
      %4299 = vmatprep.subr.mxu0 0.0
      %4300 = vmatpush1.msra.mxu0 0.0
      %4301 = vmatprep.subr.mxu0 0.0
      %4302 = vmatpush1.msra.mxu0 0.0
      %4303 = vmatprep.subr.mxu0 0.0
      %4304 = vmatpush1.msra.mxu0 0.0
      %4305 = vmatprep.subr.mxu0 0.0
      %4306 = vmatpush1.msra.mxu0 0.0
      %4307 = vmatprep.subr.mxu0 0.0
      %4308 = vmatpush1.msra.mxu0 0.0
      %4309 = vmatprep.subr.mxu0 0.0
      %4310 = vmatpush1.msra.mxu0 0.0
      %4311 = vmatprep.subr.mxu0 0.0
      %4312 = vmatpush1.msra.mxu0 0.0
      %4313 = vmatprep.subr.mxu0 0.0
      %4314 = vmatpush1.msra.mxu0 0.0
      %4315 = vmatprep.subr.mxu0 0.0
      %4316 = vmatpush1.msra.mxu0 0.0
      %4317 = vmatprep.subr.mxu0 0.0
      %4318 = vmatpush1.msra.mxu0 0.0
      %4319 = vmatprep.subr.mxu0 0.0
      %4320 = vmatpush1.msra.mxu0 0.0
      %4321 = vmatprep.subr.mxu0 0.0
      %4322 = vmatpush1.msra.mxu0 0.0
      %4323 = vmatprep.mubr.f32.mxu0 0.0
      %4324 = vmatmul.mubr.f32.gmra.mrb[0].mxu0 %v446
      %v4325 = vpop.f32.mrb[0].mxu0
      %v4326 = vadd.f32 0.0, %v4325
      %v4327 = vpop.f32.mrb[0].mxu0
      %4328 = vmatprep.mubr.f32.mxu0 0.0
      %4329 = vmatmul.mubr.f32.gmra.mrb[0].mxu0 %v449
      %v4330 = vpop.f32.mrb[0].mxu0
      %v4331 = vadd.f32 0.0, %v4330
      %v4332 = vpop.f32.mrb[0].mxu0
      %4333 = vmatprep.mubr.f32.mxu0 0.0
      %4334 = vmatmul.mubr.f32.gmra.mrb[0].mxu0 %v452
      %v4335 = vpop.f32.mrb[0].mxu0
      %v4336 = vadd.f32 0.0, %v4335
      %v4337 = vpop.f32.mrb[0].mxu0
      %4338 = vmatprep.mubr.f32.mxu0 0.0
      %4339 = vmatmul.mubr.f32.gmra.mrb[0].mxu0 %v455
      %v4340 = vpop.f32.mrb[0].mxu0
      %v4341 = vadd.f32 0.0, %v4340
      %v4342 = vpop.f32.mrb[0].mxu0
      %4343 = vmatprep.mubr.f32.mxu0 0.0
      %4344 = vmatmul.mubr.f32.gmra.mrb[0].mxu0 %v458
      %v4345 = vpop.f32.mrb[0].mxu0
      %v4346 = vadd.f32 0.0, %v4345
      %v4347 = vpop.f32.mrb[0].mxu0
      %4348 = vmatprep.mubr.f32.mxu0 0.0
      %4349 = vmatmul.mubr.f32.gmra.mrb[0].mxu0 %v461
      %v4350 = vpop.f32.mrb[0].mxu0
      %v4351 = vadd.f32 0.0, %v4350
      %v4352 = vpop.f32.mrb[0].mxu0
      %4353 = vmatprep.mubr.f32.mxu0 0.0
      %4354 = vmatmul.mubr.f32.gmra.mrb[0].mxu0 %v464
      %v4355 = vpop.f32.mrb[0].mxu0
      %v4356 = vadd.f32 0.0, %v4355
      %v4357 = vpop.f32.mrb[0].mxu0
      %4358 = vmatprep.mubr.f32.mxu0 0.0
      %4359 = vmatmul.mubr.f32.gmra.mrb[0].mxu0 %v467
      %v4360 = vpop.f32.mrb[0].mxu0
      %v4361 = vadd.f32 0.0, %v4360
      %v4362 = vpop.f32.mrb[0].mxu0
      %4363 = vmatprep.mubr.f32.mxu0 0.0
      %4364 = vmatmul.mubr.f32.gmra.mrb[0].mxu0 %v470
      %v4365 = vpop.f32.mrb[0].mxu0
      %v4366 = vadd.f32 0.0, %v4365
      %v4367 = vpop.f32.mrb[0].mxu0
      %4368 = vmatprep.mubr.f32.mxu0 0.0
      %4369 = vmatmul.mubr.f32.gmra.mrb[0].mxu0 %v473
      %v4370 = vpop.f32.mrb[0].mxu0
      %v4371 = vadd.f32 0.0, %v4370
      %v4372 = vpop.f32.mrb[0].mxu0
      %4373 = vmatprep.mubr.f32.mxu0 0.0
      %4374 = vmatmul.mubr.f32.gmra.mrb[0].mxu0 %v476
      %v4375 = vpop.f32.mrb[0].mxu0
      %v4376 = vadd.f32 0.0, %v4375
      %v4377 = vpop.f32.mrb[0].mxu0
      %4378 = vmatprep.mubr.f32.mxu0 0.0
      %4379 = vmatmul.mubr.f32.gmra.mrb[0].mxu0 %v479
      %v4380 = vpop.f32.mrb[0].mxu0
      %v4381 = vadd.f32 0.0, %v4380
      %v4382 = vpop.f32.mrb[0].mxu0
      %4383 = vmatprep.mubr.f32.mxu0 0.0
      %4384 = vmatmul.mubr.f32.gmra.mrb[0].mxu0 %v482
      %v4385 = vpop.f32.mrb[0].mxu0
      %v4386 = vadd.f32 0.0, %v4385
      %v4387 = vpop.f32.mrb[0].mxu0
      %4388 = vmatprep.mubr.f32.mxu0 0.0
      %4389 = vmatmul.mubr.f32.gmra.mrb[0].mxu0 %v485
      %v4390 = vpop.f32.mrb[0].mxu0
      %v4391 = vadd.f32 0.0, %v4390
      %v4392 = vpop.f32.mrb[0].mxu0
      %4393 = vmatprep.mubr.f32.mxu0 0.0
      %4394 = vmatmul.mubr.f32.gmra.mrb[0].mxu0 %v488
      %v4395 = vpop.f32.mrb[0].mxu0
      %v4396 = vadd.f32 0.0, %v4395
      %v4397 = vpop.f32.mrb[0].mxu0
      %4398 = vmatprep.mubr.f32.mxu0 0.0
      %4399 = vmatmul.mubr.f32.gmra.mrb[0].mxu0 %v491
      %v4400 = vpop.f32.mrb[0].mxu0
      %v4401 = vadd.f32 0.0, %v4400
      %v4402 = vpop.f32.mrb[0].mxu0
      %4403 = vdwg.mxu0
      %4404 = vset.pattern.permute.xlu0 15
      %4405 = vperm.xlu0 %4404, %v404
      %v4406 = vpop.permute.xlu0 %4405
      %4408 = vset.pattern.permute.xlu0 15
      %4409 = vperm.xlu0 %4408, %v405
      %v4410 = vpop.permute.xlu0 %4409
      %4412 = vset.pattern.permute.xlu0 15
      %4413 = vperm.xlu0 %4412, %v406
      %v4414 = vpop.permute.xlu0 %4413
      %4416 = vset.pattern.permute.xlu0 15
      %4417 = vperm.xlu0 %4416, %v407
      %v4418 = vpop.permute.xlu0 %4417
      %4420 = vset.pattern.permute.xlu0 15
      %4421 = vperm.xlu0 %4420, %v408
      %v4422 = vpop.permute.xlu0 %4421
      %4424 = vset.pattern.permute.xlu0 15
      %4425 = vperm.xlu0 %4424, %v409
      %v4426 = vpop.permute.xlu0 %4425
      %4428 = vset.pattern.permute.xlu0 15
      %4429 = vperm.xlu0 %4428, %v410
      %v4430 = vpop.permute.xlu0 %4429
      %4432 = vset.pattern.permute.xlu0 15
      %4433 = vperm.xlu0 %4432, %v411
      %v4434 = vpop.permute.xlu0 %4433
      %4436 = vset.pattern.permute.xlu0 15
      %4437 = vperm.xlu0 %4436, %v412
      %v4438 = vpop.permute.xlu0 %4437
      %4440 = vset.pattern.permute.xlu0 15
      %4441 = vperm.xlu0 %4440, %v413
      %v4442 = vpop.permute.xlu0 %4441
      %4444 = vset.pattern.permute.xlu0 15
      %4445 = vperm.xlu0 %4444, %v414
      %v4446 = vpop.permute.xlu0 %4445
      %4448 = vset.pattern.permute.xlu0 15
      %4449 = vperm.xlu0 %4448, %v415
      %v4450 = vpop.permute.xlu0 %4449
      %4452 = vset.pattern.permute.xlu0 15
      %4453 = vperm.xlu0 %4452, %v416
      %v4454 = vpop.permute.xlu0 %4453
      %4456 = vset.pattern.permute.xlu0 15
      %4457 = vperm.xlu0 %4456, %v417
      %v4458 = vpop.permute.xlu0 %4457
      %4460 = vset.pattern.permute.xlu0 15
      %4461 = vperm.xlu0 %4460, %v418
      %v4462 = vpop.permute.xlu0 %4461
      %4464 = vset.pattern.permute.xlu0 15
      %4465 = vperm.xlu0 %4464, %v419
      %v4466 = vpop.permute.xlu0 %4465
      %v4468 = vmul.f32 %v4406, %v4326
      %v4469 = vmul.f32 %v4410, %v4331
      %v4470 = vmul.f32 %v4414, %v4336
      %v4471 = vmul.f32 %v4418, %v4341
      %v4472 = vmul.f32 %v4422, %v4346
      %v4473 = vmul.f32 %v4426, %v4351
      %v4474 = vmul.f32 %v4430, %v4356
      %v4475 = vmul.f32 %v4434, %v4361
      %v4476 = vmul.f32 %v4438, %v4366
      %v4477 = vmul.f32 %v4442, %v4371
      %v4478 = vmul.f32 %v4446, %v4376
      %v4479 = vmul.f32 %v4450, %v4381
      %v4480 = vmul.f32 %v4454, %v4386
      %v4481 = vmul.f32 %v4458, %v4391
      %v4482 = vmul.f32 %v4462, %v4396
      %v4483 = vmul.f32 %v4466, %v4401
      %v4484 = vadd.f32 %v4234, %v4468
      %v4485 = vadd.f32 %v4235, %v4469
      %v4486 = vadd.f32 %v4236, %v4470
      %v4487 = vadd.f32 %v4237, %v4471
      %v4488 = vadd.f32 %v4238, %v4472
      %v4489 = vadd.f32 %v4239, %v4473
      %v4490 = vadd.f32 %v4240, %v4474
      %v4491 = vadd.f32 %v4241, %v4475
      %v4492 = vadd.f32 %v4242, %v4476
      %v4493 = vadd.f32 %v4243, %v4477
      %v4494 = vadd.f32 %v4244, %v4478
      %v4495 = vadd.f32 %v4245, %v4479
      %v4496 = vadd.f32 %v4246, %v4480
      %v4497 = vadd.f32 %v4247, %v4481
      %v4498 = vadd.f32 %v4248, %v4482
      %v4499 = vadd.f32 %v4249, %v4483
      %v4500 = vld [vmem:[#allocation2] sm:$0xff]
      %v4501 = vld [vmem:[#allocation2 + $0x8] sm:$0xff]
      %v4502 = vld [vmem:[#allocation2 + $0x10] sm:$0xff]
      %v4503 = vld [vmem:[#allocation2 + $0x18] sm:$0xff]
      %v4504 = vld [vmem:[#allocation2 + $0x20] sm:$0xff]
      %v4505 = vld [vmem:[#allocation2 + $0x28] sm:$0xff]
      %v4506 = vld [vmem:[#allocation2 + $0x30] sm:$0xff]
      %v4507 = vld [vmem:[#allocation2 + $0x38] sm:$0xff]
      %v4508 = vld [vmem:[#allocation2 + $0x40] sm:$0xff]
      %v4509 = vld [vmem:[#allocation2 + $0x48] sm:$0xff]
      %v4510 = vld [vmem:[#allocation2 + $0x50] sm:$0xff]
      %v4511 = vld [vmem:[#allocation2 + $0x58] sm:$0xff]
      %v4512 = vld [vmem:[#allocation2 + $0x60] sm:$0xff]
      %v4513 = vld [vmem:[#allocation2 + $0x68] sm:$0xff]
      %v4514 = vld [vmem:[#allocation2 + $0x70] sm:$0xff]
      %v4515 = vld [vmem:[#allocation2 + $0x78] sm:$0xff]
      %v4516 = vadd.f32 %v4500, %v4484
      %v4517 = vadd.f32 %v4501, %v4485
      %v4518 = vadd.f32 %v4502, %v4486
      %v4519 = vadd.f32 %v4503, %v4487
      %v4520 = vadd.f32 %v4504, %v4488
      %v4521 = vadd.f32 %v4505, %v4489
      %v4522 = vadd.f32 %v4506, %v4490
      %v4523 = vadd.f32 %v4507, %v4491
      %v4524 = vadd.f32 %v4508, %v4492
      %v4525 = vadd.f32 %v4509, %v4493
      %v4526 = vadd.f32 %v4510, %v4494
      %v4527 = vadd.f32 %v4511, %v4495
      %v4528 = vadd.f32 %v4512, %v4496
      %v4529 = vadd.f32 %v4513, %v4497
      %v4530 = vadd.f32 %v4514, %v4498
      %v4531 = vadd.f32 %v4515, %v4499
      %4532 = vst [vmem:[#allocation2] sm:$0xff] %v4516
      %4533 = vst [vmem:[#allocation2 + $0x8] sm:$0xff] %v4517
      %4534 = vst [vmem:[#allocation2 + $0x10] sm:$0xff] %v4518
      %4535 = vst [vmem:[#allocation2 + $0x18] sm:$0xff] %v4519
      %4536 = vst [vmem:[#allocation2 + $0x20] sm:$0xff] %v4520
      %4537 = vst [vmem:[#allocation2 + $0x28] sm:$0xff] %v4521
      %4538 = vst [vmem:[#allocation2 + $0x30] sm:$0xff] %v4522
      %4539 = vst [vmem:[#allocation2 + $0x38] sm:$0xff] %v4523
      %4540 = vst [vmem:[#allocation2 + $0x40] sm:$0xff] %v4524
      %4541 = vst [vmem:[#allocation2 + $0x48] sm:$0xff] %v4525
      %4542 = vst [vmem:[#allocation2 + $0x50] sm:$0xff] %v4526
      %4543 = vst [vmem:[#allocation2 + $0x58] sm:$0xff] %v4527
      %4544 = vst [vmem:[#allocation2 + $0x60] sm:$0xff] %v4528
      %4545 = vst [vmem:[#allocation2 + $0x68] sm:$0xff] %v4529
      %4546 = vst [vmem:[#allocation2 + $0x70] sm:$0xff] %v4530
      %4547 = vst [vmem:[#allocation2 + $0x78] sm:$0xff] %v4531
      %p4548 = scmp.eq.s32.totalorder %s26, 1
      // Predicated region
      $region57: #{binn_forward.1} parent=51 // pred_check
        %p4549 = pneg %p4548
      $region58: #{binn_forward.1} parent=51 // pred_check_branch
        %4551 = sbr.rel (%p4549) target = $region60
      $region59: #{binn_forward.1} parent=51 // pred_region
        %v4552 = vld [vmem:[#allocation2] sm:$0xff]
        %v4553 = vld [vmem:[#allocation2 + $0x8] sm:$0xff]
        %v4554 = vld [vmem:[#allocation2 + $0x10] sm:$0xff]
        %v4555 = vld [vmem:[#allocation2 + $0x18] sm:$0xff]
        %v4556 = vld [vmem:[#allocation2 + $0x20] sm:$0xff]
        %v4557 = vld [vmem:[#allocation2 + $0x28] sm:$0xff]
        %v4558 = vld [vmem:[#allocation2 + $0x30] sm:$0xff]
        %v4559 = vld [vmem:[#allocation2 + $0x38] sm:$0xff]
        %v4560 = vld [vmem:[#allocation2 + $0x40] sm:$0xff]
        %v4561 = vld [vmem:[#allocation2 + $0x48] sm:$0xff]
        %v4562 = vld [vmem:[#allocation2 + $0x50] sm:$0xff]
        %v4563 = vld [vmem:[#allocation2 + $0x58] sm:$0xff]
        %v4564 = vld [vmem:[#allocation2 + $0x60] sm:$0xff]
        %v4565 = vld [vmem:[#allocation2 + $0x68] sm:$0xff]
        %v4566 = vld [vmem:[#allocation2 + $0x70] sm:$0xff]
        %v4567 = vld [vmem:[#allocation2 + $0x78] sm:$0xff]
        %v4568 = vld [vmem:[%s3] sm:$0x1]
        %v4570 = vlaneseq
        %v4571 = vshrl.u32 %v4570, 7
        %v4572 = vsub.s32 0, %v4571
        %v4573 = vrot.slane %v4568, %v4572
        %v4575 = vadd.f32 %v4552, %v4573
        %v4576 = vadd.f32 %v4553, %v4573
        %v4577 = vadd.f32 %v4554, %v4573
        %v4578 = vadd.f32 %v4555, %v4573
        %v4579 = vadd.f32 %v4556, %v4573
        %v4580 = vadd.f32 %v4557, %v4573
        %v4581 = vadd.f32 %v4558, %v4573
        %v4582 = vadd.f32 %v4559, %v4573
        %v4583 = vadd.f32 %v4560, %v4573
        %v4584 = vadd.f32 %v4561, %v4573
        %v4585 = vadd.f32 %v4562, %v4573
        %v4586 = vadd.f32 %v4563, %v4573
        %v4587 = vadd.f32 %v4564, %v4573
        %v4588 = vadd.f32 %v4565, %v4573
        %v4589 = vadd.f32 %v4566, %v4573
        %v4590 = vadd.f32 %v4567, %v4573
        %v4591 = vld [vmem:[%s4] sm:$0xff]
        %v4592 = vld [vmem:[%s4 + $0x8] sm:$0xff]
        %v4593 = vld [vmem:[%s4 + $0x10] sm:$0xff]
        %v4594 = vld [vmem:[%s4 + $0x18] sm:$0xff]
        %v4595 = vld [vmem:[%s4 + $0x20] sm:$0xff]
        %v4596 = vld [vmem:[%s4 + $0x28] sm:$0xff]
        %v4597 = vld [vmem:[%s4 + $0x30] sm:$0xff]
        %v4598 = vld [vmem:[%s4 + $0x38] sm:$0xff]
        %v4599 = vld [vmem:[%s4 + $0x40] sm:$0xff]
        %v4600 = vld [vmem:[%s4 + $0x48] sm:$0xff]
        %v4601 = vld [vmem:[%s4 + $0x50] sm:$0xff]
        %v4602 = vld [vmem:[%s4 + $0x58] sm:$0xff]
        %v4603 = vld [vmem:[%s4 + $0x60] sm:$0xff]
        %v4604 = vld [vmem:[%s4 + $0x68] sm:$0xff]
        %v4605 = vld [vmem:[%s4 + $0x70] sm:$0xff]
        %v4606 = vld [vmem:[%s4 + $0x78] sm:$0xff]
        %v4607 = vld [vmem:[%s5] sm:$0x1]
        %v4609 = vlaneseq
        %v4610 = vshrl.u32 %v4609, 7
        %v4611 = vsub.s32 0, %v4610
        %v4612 = vrot.slane %v4607, %v4611
        %4614 = vmatprep.subr.mxu0 0.0
        %4615 = vmatpush1.msra.mxu0 %v4591
        %4616 = vmatprep.subr.mxu0 0.0
        %4617 = vmatpush1.msra.mxu0 %v4592
        %4618 = vmatprep.subr.mxu0 0.0
        %4619 = vmatpush1.msra.mxu0 %v4593
        %4620 = vmatprep.subr.mxu0 0.0
        %4621 = vmatpush1.msra.mxu0 %v4594
        %4622 = vmatprep.subr.mxu0 0.0
        %4623 = vmatpush1.msra.mxu0 %v4595
        %4624 = vmatprep.subr.mxu0 0.0
        %4625 = vmatpush1.msra.mxu0 %v4596
        %4626 = vmatprep.subr.mxu0 0.0
        %4627 = vmatpush1.msra.mxu0 %v4597
        %4628 = vmatprep.subr.mxu0 0.0
        %4629 = vmatpush1.msra.mxu0 %v4598
        %4630 = vmatprep.subr.mxu0 0.0
        %4631 = vmatpush1.msra.mxu0 %v4599
        %4632 = vmatprep.subr.mxu0 0.0
        %4633 = vmatpush1.msra.mxu0 %v4600
        %4634 = vmatprep.subr.mxu0 0.0
        %4635 = vmatpush1.msra.mxu0 %v4601
        %4636 = vmatprep.subr.mxu0 0.0
        %4637 = vmatpush1.msra.mxu0 %v4602
        %4638 = vmatprep.subr.mxu0 0.0
        %4639 = vmatpush1.msra.mxu0 %v4603
        %4640 = vmatprep.subr.mxu0 0.0
        %4641 = vmatpush1.msra.mxu0 %v4604
        %4642 = vmatprep.subr.mxu0 0.0
        %4643 = vmatpush1.msra.mxu0 %v4605
        %4644 = vmatprep.subr.mxu0 0.0
        %4645 = vmatpush1.msra.mxu0 %v4606
        %4646 = vmatprep.subr.mxu0 0.0
        %4647 = vmatpush1.msra.mxu0 0.0
        %4648 = vmatprep.subr.mxu0 0.0
        %4649 = vmatpush1.msra.mxu0 0.0
        %4650 = vmatprep.subr.mxu0 0.0
        %4651 = vmatpush1.msra.mxu0 0.0
        %4652 = vmatprep.subr.mxu0 0.0
        %4653 = vmatpush1.msra.mxu0 0.0
        %4654 = vmatprep.subr.mxu0 0.0
        %4655 = vmatpush1.msra.mxu0 0.0
        %4656 = vmatprep.subr.mxu0 0.0
        %4657 = vmatpush1.msra.mxu0 0.0
        %4658 = vmatprep.subr.mxu0 0.0
        %4659 = vmatpush1.msra.mxu0 0.0
        %4660 = vmatprep.subr.mxu0 0.0
        %4661 = vmatpush1.msra.mxu0 0.0
        %4662 = vmatprep.subr.mxu0 0.0
        %4663 = vmatpush1.msra.mxu0 0.0
        %4664 = vmatprep.subr.mxu0 0.0
        %4665 = vmatpush1.msra.mxu0 0.0
        %4666 = vmatprep.subr.mxu0 0.0
        %4667 = vmatpush1.msra.mxu0 0.0
        %4668 = vmatprep.subr.mxu0 0.0
        %4669 = vmatpush1.msra.mxu0 0.0
        %4670 = vmatprep.subr.mxu0 0.0
        %4671 = vmatpush1.msra.mxu0 0.0
        %4672 = vmatprep.subr.mxu0 0.0
        %4673 = vmatpush1.msra.mxu0 0.0
        %4674 = vmatprep.subr.mxu0 0.0
        %4675 = vmatpush1.msra.mxu0 0.0
        %4676 = vmatprep.subr.mxu0 0.0
        %4677 = vmatpush1.msra.mxu0 0.0
        %4678 = vmatprep.mubr.f32.mxu0 0.0
        %4679 = vmatmul.mubr.f32.gmra.mrb[0].mxu0 %v4575
        %v4680 = vpop.f32.mrb[0].mxu0
        %v4681 = vadd.f32 %v4612, %v4680
        %v4682 = vpop.f32.mrb[0].mxu0
        %4683 = vmatprep.mubr.f32.mxu0 0.0
        %4684 = vmatmul.mubr.f32.gmra.mrb[0].mxu0 %v4576
        %v4685 = vpop.f32.mrb[0].mxu0
        %v4686 = vadd.f32 %v4612, %v4685
        %v4687 = vpop.f32.mrb[0].mxu0
        %4688 = vmatprep.mubr.f32.mxu0 0.0
        %4689 = vmatmul.mubr.f32.gmra.mrb[0].mxu0 %v4577
        %v4690 = vpop.f32.mrb[0].mxu0
        %v4691 = vadd.f32 %v4612, %v4690
        %v4692 = vpop.f32.mrb[0].mxu0
        %4693 = vmatprep.mubr.f32.mxu0 0.0
        %4694 = vmatmul.mubr.f32.gmra.mrb[0].mxu0 %v4578
        %v4695 = vpop.f32.mrb[0].mxu0
        %v4696 = vadd.f32 %v4612, %v4695
        %v4697 = vpop.f32.mrb[0].mxu0
        %4698 = vmatprep.mubr.f32.mxu0 0.0
        %4699 = vmatmul.mubr.f32.gmra.mrb[0].mxu0 %v4579
        %v4700 = vpop.f32.mrb[0].mxu0
        %v4701 = vadd.f32 %v4612, %v4700
        %v4702 = vpop.f32.mrb[0].mxu0
        %4703 = vmatprep.mubr.f32.mxu0 0.0
        %4704 = vmatmul.mubr.f32.gmra.mrb[0].mxu0 %v4580
        %v4705 = vpop.f32.mrb[0].mxu0
        %v4706 = vadd.f32 %v4612, %v4705
        %v4707 = vpop.f32.mrb[0].mxu0
        %4708 = vmatprep.mubr.f32.mxu0 0.0
        %4709 = vmatmul.mubr.f32.gmra.mrb[0].mxu0 %v4581
        %v4710 = vpop.f32.mrb[0].mxu0
        %v4711 = vadd.f32 %v4612, %v4710
        %v4712 = vpop.f32.mrb[0].mxu0
        %4713 = vmatprep.mubr.f32.mxu0 0.0
        %4714 = vmatmul.mubr.f32.gmra.mrb[0].mxu0 %v4582
        %v4715 = vpop.f32.mrb[0].mxu0
        %v4716 = vadd.f32 %v4612, %v4715
        %v4717 = vpop.f32.mrb[0].mxu0
        %4718 = vmatprep.mubr.f32.mxu0 0.0
        %4719 = vmatmul.mubr.f32.gmra.mrb[0].mxu0 %v4583
        %v4720 = vpop.f32.mrb[0].mxu0
        %v4721 = vadd.f32 %v4612, %v4720
        %v4722 = vpop.f32.mrb[0].mxu0
        %4723 = vmatprep.mubr.f32.mxu0 0.0
        %4724 = vmatmul.mubr.f32.gmra.mrb[0].mxu0 %v4584
        %v4725 = vpop.f32.mrb[0].mxu0
        %v4726 = vadd.f32 %v4612, %v4725
        %v4727 = vpop.f32.mrb[0].mxu0
        %4728 = vmatprep.mubr.f32.mxu0 0.0
        %4729 = vmatmul.mubr.f32.gmra.mrb[0].mxu0 %v4585
        %v4730 = vpop.f32.mrb[0].mxu0
        %v4731 = vadd.f32 %v4612, %v4730
        %v4732 = vpop.f32.mrb[0].mxu0
        %4733 = vmatprep.mubr.f32.mxu0 0.0
        %4734 = vmatmul.mubr.f32.gmra.mrb[0].mxu0 %v4586
        %v4735 = vpop.f32.mrb[0].mxu0
        %v4736 = vadd.f32 %v4612, %v4735
        %v4737 = vpop.f32.mrb[0].mxu0
        %4738 = vmatprep.mubr.f32.mxu0 0.0
        %4739 = vmatmul.mubr.f32.gmra.mrb[0].mxu0 %v4587
        %v4740 = vpop.f32.mrb[0].mxu0
        %v4741 = vadd.f32 %v4612, %v4740
        %v4742 = vpop.f32.mrb[0].mxu0
        %4743 = vmatprep.mubr.f32.mxu0 0.0
        %4744 = vmatmul.mubr.f32.gmra.mrb[0].mxu0 %v4588
        %v4745 = vpop.f32.mrb[0].mxu0
        %v4746 = vadd.f32 %v4612, %v4745
        %v4747 = vpop.f32.mrb[0].mxu0
        %4748 = vmatprep.mubr.f32.mxu0 0.0
        %4749 = vmatmul.mubr.f32.gmra.mrb[0].mxu0 %v4589
        %v4750 = vpop.f32.mrb[0].mxu0
        %v4751 = vadd.f32 %v4612, %v4750
        %v4752 = vpop.f32.mrb[0].mxu0
        %4753 = vmatprep.mubr.f32.mxu0 0.0
        %4754 = vmatmul.mubr.f32.gmra.mrb[0].mxu0 %v4590
        %v4755 = vpop.f32.mrb[0].mxu0
        %v4756 = vadd.f32 %v4612, %v4755
        %v4757 = vpop.f32.mrb[0].mxu0
        %4758 = vdwg.mxu0
        %v4759 = vmax.f32 %v4681, 0.0
        %v4760 = vmax.f32 %v4686, 0.0
        %v4761 = vmax.f32 %v4691, 0.0
        %v4762 = vmax.f32 %v4696, 0.0
        %v4763 = vmax.f32 %v4701, 0.0
        %v4764 = vmax.f32 %v4706, 0.0
        %v4765 = vmax.f32 %v4711, 0.0
        %v4766 = vmax.f32 %v4716, 0.0
        %v4767 = vmax.f32 %v4721, 0.0
        %v4768 = vmax.f32 %v4726, 0.0
        %v4769 = vmax.f32 %v4731, 0.0
        %v4770 = vmax.f32 %v4736, 0.0
        %v4771 = vmax.f32 %v4741, 0.0
        %v4772 = vmax.f32 %v4746, 0.0
        %v4773 = vmax.f32 %v4751, 0.0
        %v4774 = vmax.f32 %v4756, 0.0
        %v4775 = vld [vmem:[%s6] sm:$0x1]
        %v4777 = vlaneseq
        %v4778 = vshrl.u32 %v4777, 7
        %v4779 = vsub.s32 0, %v4778
        %v4780 = vrot.slane %v4775, %v4779
        %v4782 = vmul.f32 %v4759, %v4780
        %v4783 = vmul.f32 %v4760, %v4780
        %v4784 = vmul.f32 %v4761, %v4780
        %v4785 = vmul.f32 %v4762, %v4780
        %v4786 = vmul.f32 %v4763, %v4780
        %v4787 = vmul.f32 %v4764, %v4780
        %v4788 = vmul.f32 %v4765, %v4780
        %v4789 = vmul.f32 %v4766, %v4780
        %v4790 = vmul.f32 %v4767, %v4780
        %v4791 = vmul.f32 %v4768, %v4780
        %v4792 = vmul.f32 %v4769, %v4780
        %v4793 = vmul.f32 %v4770, %v4780
        %v4794 = vmul.f32 %v4771, %v4780
        %v4795 = vmul.f32 %v4772, %v4780
        %v4796 = vmul.f32 %v4773, %v4780
        %v4797 = vmul.f32 %v4774, %v4780
        %vm4798 = vcmask 523264
        %v4799 = vsel %vm4798, %v4782, 0.0
        %4800 = vadd.xlane.f32.xlu0 %v4799
        %v4801 = vpop.xlane.xlu0 %4800
        %v4802 = vsel %vm4798, %v4783, 0.0
        %4803 = vadd.xlane.f32.xlu0 %v4802
        %v4804 = vpop.xlane.xlu0 %4803
        %v4805 = vsel %vm4798, %v4784, 0.0
        %4806 = vadd.xlane.f32.xlu0 %v4805
        %v4807 = vpop.xlane.xlu0 %4806
        %v4808 = vsel %vm4798, %v4785, 0.0
        %4809 = vadd.xlane.f32.xlu0 %v4808
        %v4810 = vpop.xlane.xlu0 %4809
        %v4811 = vsel %vm4798, %v4786, 0.0
        %4812 = vadd.xlane.f32.xlu0 %v4811
        %v4813 = vpop.xlane.xlu0 %4812
        %v4814 = vsel %vm4798, %v4787, 0.0
        %4815 = vadd.xlane.f32.xlu0 %v4814
        %v4816 = vpop.xlane.xlu0 %4815
        %v4817 = vsel %vm4798, %v4788, 0.0
        %4818 = vadd.xlane.f32.xlu0 %v4817
        %v4819 = vpop.xlane.xlu0 %4818
        %v4820 = vsel %vm4798, %v4789, 0.0
        %4821 = vadd.xlane.f32.xlu0 %v4820
        %v4822 = vpop.xlane.xlu0 %4821
        %v4823 = vsel %vm4798, %v4790, 0.0
        %4824 = vadd.xlane.f32.xlu0 %v4823
        %v4825 = vpop.xlane.xlu0 %4824
        %v4826 = vsel %vm4798, %v4791, 0.0
        %4827 = vadd.xlane.f32.xlu0 %v4826
        %v4828 = vpop.xlane.xlu0 %4827
        %v4829 = vsel %vm4798, %v4792, 0.0
        %4830 = vadd.xlane.f32.xlu0 %v4829
        %v4831 = vpop.xlane.xlu0 %4830
        %v4832 = vsel %vm4798, %v4793, 0.0
        %4833 = vadd.xlane.f32.xlu0 %v4832
        %v4834 = vpop.xlane.xlu0 %4833
        %v4835 = vsel %vm4798, %v4794, 0.0
        %4836 = vadd.xlane.f32.xlu0 %v4835
        %v4837 = vpop.xlane.xlu0 %4836
        %v4838 = vsel %vm4798, %v4795, 0.0
        %4839 = vadd.xlane.f32.xlu0 %v4838
        %v4840 = vpop.xlane.xlu0 %4839
        %v4841 = vsel %vm4798, %v4796, 0.0
        %4842 = vadd.xlane.f32.xlu0 %v4841
        %v4843 = vpop.xlane.xlu0 %4842
        %v4844 = vsel %vm4798, %v4797, 0.0
        %4845 = vadd.xlane.f32.xlu0 %v4844
        %v4846 = vpop.xlane.xlu0 %4845
        %v4847 = vld [vmem:[#allocation3] sm:$0x1]
        %v4849 = vlaneseq
        %v4850 = vshrl.u32 %v4849, 7
        %v4851 = vsub.s32 0, %v4850
        %v4852 = vrot.slane %v4847, %v4851
        %v4854 = vadd.f32 %v4801, %v4852
        %v4855 = vadd.f32 %v4804, %v4852
        %v4856 = vadd.f32 %v4807, %v4852
        %v4857 = vadd.f32 %v4810, %v4852
        %v4858 = vadd.f32 %v4813, %v4852
        %v4859 = vadd.f32 %v4816, %v4852
        %v4860 = vadd.f32 %v4819, %v4852
        %v4861 = vadd.f32 %v4822, %v4852
        %v4862 = vadd.f32 %v4825, %v4852
        %v4863 = vadd.f32 %v4828, %v4852
        %v4864 = vadd.f32 %v4831, %v4852
        %v4865 = vadd.f32 %v4834, %v4852
        %v4866 = vadd.f32 %v4837, %v4852
        %v4867 = vadd.f32 %v4840, %v4852
        %v4868 = vadd.f32 %v4843, %v4852
        %v4869 = vadd.f32 %v4846, %v4852
        %v4870 = vxor.u32 %v4854, 2147483648
        %v4871 = vxor.u32 %v4855, 2147483648
        %v4872 = vxor.u32 %v4856, 2147483648
        %v4873 = vxor.u32 %v4857, 2147483648
        %v4874 = vxor.u32 %v4858, 2147483648
        %v4875 = vxor.u32 %v4859, 2147483648
        %v4876 = vxor.u32 %v4860, 2147483648
        %v4877 = vxor.u32 %v4861, 2147483648
        %v4878 = vxor.u32 %v4862, 2147483648
        %v4879 = vxor.u32 %v4863, 2147483648
        %v4880 = vxor.u32 %v4864, 2147483648
        %v4881 = vxor.u32 %v4865, 2147483648
        %v4882 = vxor.u32 %v4866, 2147483648
        %v4883 = vxor.u32 %v4867, 2147483648
        %v4884 = vxor.u32 %v4868, 2147483648
        %v4885 = vxor.u32 %v4869, 2147483648
        %v4886 = vmul.f32 %v4870, 1.442695
        %v4887 = vpow.pop %v4886
        %v4888 = vmul.f32 %v4871, 1.442695
        %v4889 = vpow.pop %v4888
        %v4890 = vmul.f32 %v4872, 1.442695
        %v4891 = vpow.pop %v4890
        %v4892 = vmul.f32 %v4873, 1.442695
        %v4893 = vpow.pop %v4892
        %v4894 = vmul.f32 %v4874, 1.442695
        %v4895 = vpow.pop %v4894
        %v4896 = vmul.f32 %v4875, 1.442695
        %v4897 = vpow.pop %v4896
        %v4898 = vmul.f32 %v4876, 1.442695
        %v4899 = vpow.pop %v4898
        %v4900 = vmul.f32 %v4877, 1.442695
        %v4901 = vpow.pop %v4900
        %v4902 = vmul.f32 %v4878, 1.442695
        %v4903 = vpow.pop %v4902
        %v4904 = vmul.f32 %v4879, 1.442695
        %v4905 = vpow.pop %v4904
        %v4906 = vmul.f32 %v4880, 1.442695
        %v4907 = vpow.pop %v4906
        %v4908 = vmul.f32 %v4881, 1.442695
        %v4909 = vpow.pop %v4908
        %v4910 = vmul.f32 %v4882, 1.442695
        %v4911 = vpow.pop %v4910
        %v4912 = vmul.f32 %v4883, 1.442695
        %v4913 = vpow.pop %v4912
        %v4914 = vmul.f32 %v4884, 1.442695
        %v4915 = vpow.pop %v4914
        %v4916 = vmul.f32 %v4885, 1.442695
        %v4917 = vpow.pop %v4916
        %v4918 = vadd.f32 %v4887, 1.0
        %v4919 = vadd.f32 %v4889, 1.0
        %v4920 = vadd.f32 %v4891, 1.0
        %v4921 = vadd.f32 %v4893, 1.0
        %v4922 = vadd.f32 %v4895, 1.0
        %v4923 = vadd.f32 %v4897, 1.0
        %v4924 = vadd.f32 %v4899, 1.0
        %v4925 = vadd.f32 %v4901, 1.0
        %v4926 = vadd.f32 %v4903, 1.0
        %v4927 = vadd.f32 %v4905, 1.0
        %v4928 = vadd.f32 %v4907, 1.0
        %v4929 = vadd.f32 %v4909, 1.0
        %v4930 = vadd.f32 %v4911, 1.0
        %v4931 = vadd.f32 %v4913, 1.0
        %v4932 = vadd.f32 %v4915, 1.0
        %v4933 = vadd.f32 %v4917, 1.0
        %v4934 = vrcp.pop %v4918
        %v4935 = vmul.f32 1.0, %v4934
        %v4936 = vrcp.pop %v4919
        %v4937 = vmul.f32 1.0, %v4936
        %v4938 = vrcp.pop %v4920
        %v4939 = vmul.f32 1.0, %v4938
        %v4940 = vrcp.pop %v4921
        %v4941 = vmul.f32 1.0, %v4940
        %v4942 = vrcp.pop %v4922
        %v4943 = vmul.f32 1.0, %v4942
        %v4944 = vrcp.pop %v4923
        %v4945 = vmul.f32 1.0, %v4944
        %v4946 = vrcp.pop %v4924
        %v4947 = vmul.f32 1.0, %v4946
        %v4948 = vrcp.pop %v4925
        %v4949 = vmul.f32 1.0, %v4948
        %v4950 = vrcp.pop %v4926
        %v4951 = vmul.f32 1.0, %v4950
        %v4952 = vrcp.pop %v4927
        %v4953 = vmul.f32 1.0, %v4952
        %v4954 = vrcp.pop %v4928
        %v4955 = vmul.f32 1.0, %v4954
        %v4956 = vrcp.pop %v4929
        %v4957 = vmul.f32 1.0, %v4956
        %v4958 = vrcp.pop %v4930
        %v4959 = vmul.f32 1.0, %v4958
        %v4960 = vrcp.pop %v4931
        %v4961 = vmul.f32 1.0, %v4960
        %v4962 = vrcp.pop %v4932
        %v4963 = vmul.f32 1.0, %v4962
        %v4964 = vrcp.pop %v4933
        %v4965 = vmul.f32 1.0, %v4964
        %4967 = vset.pattern.permute.xlu0 0
        %4968 = vperm.xlu0 %4967, %v4935
        %v4969 = vpop.permute.xlu0 %4968
        %4972 = vset.pattern.permute.xlu0 0
        %4973 = vperm.xlu0 %4972, %v4937
        %v4974 = vpop.permute.xlu0 %4973
        %4977 = vset.pattern.permute.xlu0 0
        %4978 = vperm.xlu0 %4977, %v4939
        %v4979 = vpop.permute.xlu0 %4978
        %4982 = vset.pattern.permute.xlu0 0
        %4983 = vperm.xlu0 %4982, %v4941
        %v4984 = vpop.permute.xlu0 %4983
        %4987 = vset.pattern.permute.xlu0 0
        %4988 = vperm.xlu0 %4987, %v4943
        %v4989 = vpop.permute.xlu0 %4988
        %4992 = vset.pattern.permute.xlu0 0
        %4993 = vperm.xlu0 %4992, %v4945
        %v4994 = vpop.permute.xlu0 %4993
        %4997 = vset.pattern.permute.xlu0 0
        %4998 = vperm.xlu0 %4997, %v4947
        %v4999 = vpop.permute.xlu0 %4998
        %5002 = vset.pattern.permute.xlu0 0
        %5003 = vperm.xlu0 %5002, %v4949
        %v5004 = vpop.permute.xlu0 %5003
        %5007 = vset.pattern.permute.xlu0 0
        %5008 = vperm.xlu0 %5007, %v4951
        %v5009 = vpop.permute.xlu0 %5008
        %5012 = vset.pattern.permute.xlu0 0
        %5013 = vperm.xlu0 %5012, %v4953
        %v5014 = vpop.permute.xlu0 %5013
        %5017 = vset.pattern.permute.xlu0 0
        %5018 = vperm.xlu0 %5017, %v4955
        %v5019 = vpop.permute.xlu0 %5018
        %5022 = vset.pattern.permute.xlu0 0
        %5023 = vperm.xlu0 %5022, %v4957
        %v5024 = vpop.permute.xlu0 %5023
        %5027 = vset.pattern.permute.xlu0 0
        %5028 = vperm.xlu0 %5027, %v4959
        %v5029 = vpop.permute.xlu0 %5028
        %5032 = vset.pattern.permute.xlu0 0
        %5033 = vperm.xlu0 %5032, %v4961
        %v5034 = vpop.permute.xlu0 %5033
        %5037 = vset.pattern.permute.xlu0 0
        %5038 = vperm.xlu0 %5037, %v4963
        %v5039 = vpop.permute.xlu0 %5038
        %5042 = vset.pattern.permute.xlu0 0
        %5043 = vperm.xlu0 %5042, %v4965
        %v5044 = vpop.permute.xlu0 %5043
        %5046 = vst [vmem:[%s382] sm:$0xff] %v4969
        %5047 = vst [vmem:[%s382 + $0x8] sm:$0xff] %v4974
        %5048 = vst [vmem:[%s382 + $0x10] sm:$0xff] %v4979
        %5049 = vst [vmem:[%s382 + $0x18] sm:$0xff] %v4984
        %5050 = vst [vmem:[%s382 + $0x20] sm:$0xff] %v4989
        %5051 = vst [vmem:[%s382 + $0x28] sm:$0xff] %v4994
        %5052 = vst [vmem:[%s382 + $0x30] sm:$0xff] %v4999
        %5053 = vst [vmem:[%s382 + $0x38] sm:$0xff] %v5004
        %5054 = vst [vmem:[%s382 + $0x40] sm:$0xff] %v5009
        %5055 = vst [vmem:[%s382 + $0x48] sm:$0xff] %v5014
        %5056 = vst [vmem:[%s382 + $0x50] sm:$0xff] %v5019
        %5057 = vst [vmem:[%s382 + $0x58] sm:$0xff] %v5024
        %5058 = vst [vmem:[%s382 + $0x60] sm:$0xff] %v5029
        %5059 = vst [vmem:[%s382 + $0x68] sm:$0xff] %v5034
        %5060 = vst [vmem:[%s382 + $0x70] sm:$0xff] %v5039
        %5061 = vst [vmem:[%s382 + $0x78] sm:$0xff] %v5044
      $region60: #{binn_forward.1} parent=51 // pred_fallthru
        _
      %s5062 = smul.u32 16, %s25
      %p5063 = scmp.lt.s32.totalorder %s5062, 15
      %s5064 = scalar_select %p5063, %s5062, 15
      %s5065 = smul.addr %s5064, 8
      %s5066 = scalar_lea.vmem %s8, %s5065
      // Predicated region
      $region61: #{binn_forward.1} parent=51 // pred_check
        %p5067 = pneg %p236
      $region62: #{binn_forward.1} parent=51 // pred_check_branch
        %5069 = sbr.rel (%p5067) target = $region64
      $region63: #{binn_forward.1} parent=51 // pred_region
        %s5070 = smul.u32 16, %s25
      $region64: #{binn_forward.1} parent=51 // pred_fallthru
        _
      // Predicated region
      $region65: #{binn_forward.1} parent=51 // pred_check
        %p5071 = pneg %p236
      $region66: #{binn_forward.1} parent=51 // pred_check_branch
        %5073 = sbr.rel (%p5071) target = $region68
      $region67: #{binn_forward.1} parent=51 // pred_region
        %s5074 = smul.u32 16, %s25
        %p5075 = scmp.lt.s32.totalorder %s5074, 15
        %s5076 = scalar_select %p5075, %s5074, 15
        %s5077 = smul.addr %s5076, 8
        %s5078 = scalar_lea.vmem %s8, %s5077
      $region68: #{binn_forward.1} parent=51 // pred_fallthru
        _
    $region52: #{binn_forward.1} parent=5 // pred_fallthru
      _
    %p5079 = scmp.le.s32.totalorder 2, %s16
    // Predicated region
    $region69: #{binn_forward.1} parent=5 // pred_check
      %p5080 = pneg %p5079
    $region70: #{binn_forward.1} parent=5 // pred_check_branch
      %5082 = sbr.rel (%p5080) target = $region72
    $region71: #{binn_forward.1} parent=5 // pred_region
      %s5083 = ssub.s32 %s16, 2
    $region72: #{binn_forward.1} parent=5 // pred_fallthru
      _
  $region6: #{binn_forward.1} parent=0 // loop_footer
    %s20 = sadd.s32 1, %s16
  $region7: #{binn_forward.1} parent=0 // loop_footer_branch
    %15 = sbr.rel target = $region3
  $region8: #{binn_forward.1} parent=0 // loop_exit
    _

</llo_original>
